<compile_context>
chip_gen: v6e
topology: v6e:2x2x1
jax: 0.10.0
libtpu: 0.0.40
codegen_flags: <defaults>
</compile_context>

<pallas_src>
import numpy as np
import jax
import jax.numpy as jnp
from jax.experimental import pallas as pl
from jax.experimental.pallas import tpu as pltpu


def _round_up(x, m):
    return ((x + m - 1) // m) * m


# ----------------------------- parameters (host-side pre-fusion) -----------------------------

def init_params(key, input_shape, latent_size):
    """Create PyTorch-shaped parameters, then pre-fuse them into the block-Toeplitz /
    block-diagonal matrices consumed by the kernel (host-side, zero in-kernel cost)."""
    N = int(input_shape)
    Z = int(latent_size)
    P = 1 << (N.bit_length() - 1)          # == 2**floor(log2(N)) -- matches the torch reference
    assert P >= 8, "closest_pow2(input_shape) must be >= 8 (three MaxPool1d(2,2) stages)"

    def uni(k, shape, fan_in):
        bound = 1.0 / float(np.sqrt(fan_in))
        return np.asarray(jax.random.uniform(k, shape, jnp.float32, -bound, bound))

    ks = jax.random.split(key, 20)
    raw = {
        "l1_w": uni(ks[0], (P, N), N),          "l1_b": uni(ks[1], (P,), N),
        "c1_w": uni(ks[2], (64, 1, 3), 3),      "c1_b": uni(ks[3], (64,), 3),
        "c2_w": uni(ks[4], (32, 64, 3), 192),   "c2_b": uni(ks[5], (32,), 192),
        "c3_w": uni(ks[6], (16, 32, 3), 96),    "c3_b": uni(ks[7], (16,), 96),
        "l2_w": uni(ks[8], (Z, 2 * P), 2 * P),  "l2_b": uni(ks[9], (Z,), 2 * P),
        "l3_w": uni(ks[10], (2 * P, Z), Z),     "l3_b": uni(ks[11], (2 * P,), Z),
        "d1_w": uni(ks[12], (16, 32, 2), 32),   "d1_b": uni(ks[13], (32,), 32),
        "d2_w": uni(ks[14], (32, 64, 2), 64),   "d2_b": uni(ks[15], (64,), 64),
        "d3_w": uni(ks[16], (64, 1, 2), 128),   "d3_b": uni(ks[17], (1,), 128),
        "l4_w": uni(ks[18], (N, P), P),         "l4_b": uni(ks[19], (N,), P),
    }
    l1_w, l1_b = raw["l1_w"], raw["l1_b"]
    c1_w, c1_b = raw["c1_w"], raw["c1_b"]
    c2_w, c2_b = raw["c2_w"], raw["c2_b"]
    c3_w, c3_b = raw["c3_w"], raw["c3_b"]
    l2_w, l2_b = raw["l2_w"], raw["l2_b"]
    l3_w, l3_b = raw["l3_w"], raw["l3_b"]
    d1_w, d1_b = raw["d1_w"], raw["d1_b"]
    d2_w, d2_b = raw["d2_w"], raw["d2_b"]
    d3_w, d3_b = raw["d3_w"], raw["d3_b"]
    l4_w, l4_b = raw["l4_w"], raw["l4_b"]

    # Pooled half widths, lane-padded to multiples of 128 so every maxpool is a
    # max of two 128-aligned contiguous lane slices.  Padded columns carry zero
    # weights/biases (relu(0)=0, max(0,0)=0) and the next layer's padded rows are zero.
    H1 = _round_up((P // 2) * 64, 128)     # after conv1 / pool1
    H2 = _round_up((P // 4) * 32, 128)     # after conv2 / pool2
    H3 = _round_up((P // 8) * 16, 128)     # after conv3 / pool3
    OUTW = _round_up(N + Z, 128)           # packed lane-dense output slab

    # ---- stage 1: linear1 folded into conv1 (Cin=1); output cols = [even pos | odd pos]
    m1 = np.zeros((N, 2 * H1), np.float32)
    mb1 = np.zeros((2 * H1,), np.float32)
    for l in range(P):
        base = (l // 2) * 64 if l % 2 == 0 else H1 + ((l - 1) // 2) * 64
        cols = base + np.arange(64)
        for k in range(3):
            src = l + k - 1
            if 0 <= src < P:
                m1[:, cols] += np.outer(l1_w[src, :], c1_w[:, 0, k])
                mb1[cols] += l1_b[src] * c1_w[:, 0, k]
        mb1[cols] += c1_b

    def conv_toeplitz(w, b, Lpos, Cin, Cout, rows_pad, half_pad):
        """Block-Toeplitz matrix for Conv1d(Cin,Cout,3,padding=1) on a flat
        (position-major, channel-contiguous) layout; output columns split into
        [even positions | odd positions] halves (maxpool-ready)."""
        W = np.zeros((rows_pad, 2 * half_pad), np.float32)
        B = np.zeros((2 * half_pad,), np.float32)
        for l in range(Lpos):
            base = (l // 2) * Cout if l % 2 == 0 else half_pad + ((l - 1) // 2) * Cout
            cols = base + np.arange(Cout)
            for k in range(3):
                src = l + k - 1
                if 0 <= src < Lpos:
                    rows = src * Cin + np.arange(Cin)
                    W[np.ix_(rows, cols)] += w[:, :, k].T
            B[cols] += b
        return W, B

    w2c, bc2 = conv_toeplitz(c2_w, c2_b, P // 2, 64, 32, H1, H2)   # (H1, 2*H2)
    w3c, bc3 = conv_toeplitz(c3_w, c3_b, P // 4, 32, 16, H2, H3)   # (H2, 2*H3)

    # ---- bottleneck: channel-major flatten/unflatten permutation folded into the weights
    Lr = P // 8
    w2lin = np.zeros((H3, Z), np.float32)
    w3lin = np.zeros((Z, 2 * P), np.float32)
    b3 = np.zeros((2 * P,), np.float32)
    for l in range(Lr):
        for c in range(16):
            w2lin[l * 16 + c, :] = l2_w[:, c * Lr + l]
            w3lin[:, l * 16 + c] = l3_w[c * Lr + l, :]
            b3[l * 16 + c] = l3_b[c * Lr + l]
    b2 = l2_b.copy()

    def deconv_blockdiag(w, b, Lpos, Cin, Cout):
        """Block-diagonal matrix for ConvTranspose1d(Cin,Cout,2,stride=2) on the
        flat layout: out[(2l+k)*Cout + co] = sum_ci in[l*Cin + ci] * w[ci, co, k]."""
        W = np.zeros((Lpos * Cin, 2 * Lpos * Cout), np.float32)
        for l in range(Lpos):
            rows = l * Cin + np.arange(Cin)
            for k in range(2):
                cols = (2 * l + k) * Cout + np.arange(Cout)
                W[np.ix_(rows, cols)] = w[:, :, k]
        return W, np.tile(b, 2 * Lpos)

    D1, bd1 = deconv_blockdiag(d1_w, d1_b, P // 8, 16, 32)   # (2P, 8P)
    D2, bd2 = deconv_blockdiag(d2_w, d2_b, P // 4, 32, 64)   # (8P, 32P)
    D3, bd3 = deconv_blockdiag(d3_w, d3_b, P // 2, 64, 1)    # (32P, P)

    # ---- output head: recon (linear4) in cols [0,N), code copied into [N,N+Z)
    w4 = np.zeros((P, OUTW), np.float32)
    w4[:, :N] = l4_w.T
    ecat = np.zeros((Z, OUTW), np.float32)
    ecat[np.arange(Z), N + np.arange(Z)] = 1.0
    bcat = np.zeros((OUTW,), np.float32)
    bcat[:N] = l4_b

    # ---- consolidate parameter DMAs: group weights by row count, pack all biases into one row
    wmats = {"m1": m1, "w2c": w2c, "w3c": w3c, "w2lin": w2lin, "w3lin": w3lin,
             "d1": D1, "d2": D2, "d3": D3, "w4": w4, "ecat": ecat}
    bvecs = {"mb1": mb1, "bc2": bc2, "bc3": bc3, "b2": b2, "b3": b3,
             "bd1": bd1, "bd2": bd2, "bd3": bd3, "bcat": bcat}

    groups = {}
    for name, a in wmats.items():
        groups.setdefault(a.shape[0], []).append((name, a))
    packed_w, wlayout = [], {}
    for gi, rows in enumerate(sorted(groups)):
        items = sorted(groups[rows], key=lambda kv: -kv[1].shape[1])   # widest first -> 128-aligned offsets
        off, parts = 0, []
        for name, a in items:
            wlayout[name] = (gi, off, a.shape[1])
            parts.append(a)
            off += a.shape[1]
        packed_w.append(jnp.asarray(np.concatenate(parts, axis=1)))

    blayout, bparts, boff = {}, [], 0
    for name, b in bvecs.items():
        w = int(b.shape[0])
        slot = _round_up(w, 128)                                        # keep every offset 128-aligned
        buf = np.zeros((1, slot), np.float32)
        buf[0, :w] = b
        blayout[name] = (boff, w)
        bparts.append(buf)
        boff += slot
    packed_b = jnp.asarray(np.concatenate(bparts, axis=1))

    return {
        "weights": packed_w, "bias": packed_b,
        "wlayout": wlayout, "blayout": blayout,
        "dims": {"N": N, "P": P, "latent": Z, "H1": H1, "H2": H2, "H3": H3, "OUTW": OUTW},
        "raw": raw,
    }


# ----------------------------------- fused kernel + wrapper -----------------------------------

def ae_forward(x, params, num_blocks=1):
    """Fused AE forward.  num_blocks=1 (single grid step) is best on v5e/v6e (1 TC);
    use num_blocks=2 on v7x so the two TensorCores split the batch ("parallel" grid)."""
    B, N = x.shape
    dims = params["dims"]
    assert N == dims["N"]
    latent, OUTW = dims["latent"], dims["OUTW"]
    H1, H2, H3 = dims["H1"], dims["H2"], dims["H3"]
    wlayout, blayout = params["wlayout"], params["blayout"]
    packed_w, packed_b = params["weights"], params["bias"]
    ngroups = len(packed_w)

    assert B % num_blocks == 0, "batch must divide evenly into num_blocks"
    block_b = B // num_blocks

    def kernel(x_ref, *rest):
        grefs = rest[:ngroups]
        b_ref = rest[ngroups]
        out_ref = rest[ngroups + 1]

        def W(name):                       # static 128-aligned lane slice of a packed weight group
            gi, off, w = wlayout[name]
            return grefs[gi][:, off:off + w]

        def bias(name):                    # static lane slice of the packed bias row
            off, w = blayout[name]
            return b_ref[:, off:off + w]

        def mm(a, w):                      # f32 x f32 MXU matmul, f32 accumulation
            return jnp.dot(a, w, preferred_element_type=jnp.float32)

        xv = x_ref[...]                                            # (Bb, N)

        # encoder: each conv layer is ONE block-Toeplitz matmul whose output columns
        # are already split [even positions | odd positions]; MaxPool1d(2,2) is a max
        # of two 128-aligned contiguous lane halves.
        y = jnp.maximum(mm(xv, W("m1")) + bias("mb1"), 0.0)        # linear1 + conv1, relu
        a = jnp.maximum(y[:, :H1], y[:, H1:])                      # maxpool 1
        y = jnp.maximum(mm(a, W("w2c")) + bias("bc2"), 0.0)        # conv2, relu
        a = jnp.maximum(y[:, :H2], y[:, H2:])                      # maxpool 2
        y = jnp.maximum(mm(a, W("w3c")) + bias("bc3"), 0.0)        # conv3, relu
        a = jnp.maximum(y[:, :H3], y[:, H3:])                      # maxpool 3

        # bottleneck (channel-major flatten/unflatten folded into w2lin / w3lin)
        code = mm(a, W("w2lin")) + bias("b2")                      # (Bb, latent)
        h = mm(code, W("w3lin")) + bias("b3")                      # (Bb, 2P)

        # decoder: each ConvTranspose1d(k=2, s=2) is ONE block-diagonal matmul
        h = jnp.maximum(mm(h, W("d1")) + bias("bd1"), 0.0)         # (Bb, 8P)
        h = jnp.maximum(mm(h, W("d2")) + bias("bd2"), 0.0)         # (Bb, 32P)
        s = jax.nn.sigmoid(mm(h, W("d3")) + bias("bd3"))           # (Bb, P)

        # lane-dense packed output slab: recon in cols [0,N), code in [N,N+latent)
        out_ref[...] = mm(s, W("w4")) + mm(code, W("ecat")) + bias("bcat")

    def const_spec(a):
        return pl.BlockSpec(a.shape, lambda i: (0, 0))             # weights DMA'd once

    in_specs = ([pl.BlockSpec((block_b, N), lambda i: (i, 0))]
                + [const_spec(w) for w in packed_w]
                + [const_spec(packed_b)])
    out_spec = pl.BlockSpec((block_b, OUTW), lambda i: (i, 0))

    out = pl.pallas_call(
        kernel,
        grid=(num_blocks,),
        in_specs=in_specs,
        out_specs=out_spec,
        out_shape=jax.ShapeDtypeStruct((B, OUTW), jnp.float32),
        compiler_params=pltpu.CompilerParams(dimension_semantics=("parallel",)),
    )(x, *packed_w, packed_b)

    return out[:, :N], out[:, N:N + latent]


# ----------------------------------- pure-JAX reference -----------------------------------

def ae_reference(x, raw):
    """Layer-by-layer mirror of the PyTorch module, for numerical validation."""
    def conv1d(a, w, b):                     # a: (B, Cin, L), w: (Cout, Cin, 3), padding=1
        L = a.shape[-1]
        ap = jnp.pad(a, ((0, 0), (0, 0), (1, 1)))
        out = sum(jnp.einsum("bcl,oc->bol", ap[:, :, k:k + L], w[:, :, k]) for k in range(3))
        return out + b[None, :, None]

    def maxpool2(a):
        B_, C_, L_ = a.shape
        return jnp.max(a.reshape(B_, C_, L_ // 2, 2), axis=-1)

    def deconv(a, w, b):                     # w: (Cin, Cout, 2), stride=2
        y = jnp.einsum("bcl,cok->bolk", a, w)
        B_, Co, L_, _ = y.shape
        return y.reshape(B_, Co, 2 * L_) + b[None, :, None]

    act = x @ raw["l1_w"].T + raw["l1_b"]
    act = act[:, None, :]
    act = maxpool2(jnp.maximum(conv1d(act, raw["c1_w"], raw["c1_b"]), 0.0))
    act = maxpool2(jnp.maximum(conv1d(act, raw["c2_w"], raw["c2_b"]), 0.0))
    act = maxpool2(jnp.maximum(conv1d(act, raw["c3_w"], raw["c3_b"]), 0.0))
    Bsz, C, L = act.shape
    flat = act.reshape(Bsz, C * L)
    code = flat @ raw["l2_w"].T + raw["l2_b"]
    act = (code @ raw["l3_w"].T + raw["l3_b"]).reshape(Bsz, C, L)
    act = jnp.maximum(deconv(act, raw["d1_w"], raw["d1_b"]), 0.0)
    act = jnp.maximum(deconv(act, raw["d2_w"], raw["d2_b"]), 0.0)
    act = jax.nn.sigmoid(deconv(act, raw["d3_w"], raw["d3_b"]))
    recon = act.reshape(Bsz, -1) @ raw["l4_w"].T + raw["l4_b"]
    return recon, code


# --------------------------------------------- main ---------------------------------------------

if __name__ == "__main__":
    input_shape = 24      # closest_pow2 -> P = 16 (floor(log2), matching the torch reference)
    latent_size = 8
    batch = 128           # fills sublanes; one grid step amortizes all fixed overhead

    key = jax.random.PRNGKey(0)
    kx, kp = jax.random.split(key)
    x = jax.random.normal(kx, (batch, input_shape), jnp.float32)
    params = init_params(kp, input_shape, latent_size)

    recon, code = ae_forward(x, params, num_blocks=1)
    jax.block_until_ready((recon, code))

    assert recon.shape == (batch, input_shape), recon.shape
    assert code.shape == (batch, latent_size), code.shape

    recon_ref, code_ref = ae_reference(x, params["raw"])
    np.testing.assert_allclose(np.asarray(code), np.asarray(code_ref), rtol=5e-2, atol=5e-2)
    np.testing.assert_allclose(np.asarray(recon), np.asarray(recon_ref), rtol=5e-2, atol=5e-2)

    print("KERNEL_OK")
</pallas_src>

<mosaic_0001>
module attributes {stable_mosaic.version = 11 : i64} {
  func.func @kernel(%arg0: i32, %arg1: memref<128x24xf32, #tpu.memory_space<vmem>>, %arg2: memref<8x160xf32, #tpu.memory_space<vmem>>, %arg3: memref<16x128xf32, #tpu.memory_space<vmem>>, %arg4: memref<24x1024xf32, #tpu.memory_space<vmem>>, %arg5: memref<32x128xf32, #tpu.memory_space<vmem>>, %arg6: memref<128x776xf32, #tpu.memory_space<vmem>>, %arg7: memref<512x272xf32, #tpu.memory_space<vmem>>, %arg8: memref<1x2688xf32, #tpu.memory_space<vmem>>, %arg9: memref<128x128xf32, #tpu.memory_space<vmem>>) attributes {dimension_semantics = [#tpu.dimension_semantics<parallel>], iteration_bounds = array<i64: 1>, scalar_prefetch = 0 : i64, scratch_operands = 0 : i64, tpu.core_type = #tpu.core_type<tc>, window_params = [{transform_indices = @transform_0, window_bounds = array<i64: 128, 24>}, {pipeline_mode = #tpu.pipeline_mode<synchronous>, transform_indices = @transform_1, window_bounds = array<i64: 8, 160>}, {pipeline_mode = #tpu.pipeline_mode<synchronous>, transform_indices = @transform_2, window_bounds = array<i64: 16, 128>}, {pipeline_mode = #tpu.pipeline_mode<synchronous>, transform_indices = @transform_3, window_bounds = array<i64: 24, 1024>}, {pipeline_mode = #tpu.pipeline_mode<synchronous>, transform_indices = @transform_4, window_bounds = array<i64: 32, 128>}, {pipeline_mode = #tpu.pipeline_mode<synchronous>, transform_indices = @transform_5, window_bounds = array<i64: 128, 776>}, {pipeline_mode = #tpu.pipeline_mode<synchronous>, transform_indices = @transform_6, window_bounds = array<i64: 512, 272>}, {pipeline_mode = #tpu.pipeline_mode<synchronous>, transform_indices = @transform_7, window_bounds = array<i64: 1, 2688>}, {transform_indices = @transform_8, window_bounds = array<i64: 128, 128>}]} {
    %c0 = arith.constant 0 : index
    %c0_0 = arith.constant 0 : index
    %0 = vector.load %arg1[%c0, %c0_0] : memref<128x24xf32, #tpu.memory_space<vmem>>, vector<128x24xf32>
    %c0_1 = arith.constant 0 : index
    %c0_2 = arith.constant 0 : index
    %1 = vector.load %arg4[%c0_1, %c0_2] : memref<24x1024xf32, #tpu.memory_space<vmem>>, vector<24x1024xf32>
    %cst = arith.constant dense<0.000000e+00> : vector<128x1024xf32>
    %2 = tpu.matmul %0, %1, %cst {dimension_numbers = #tpu.dot_dimension_numbers<[1], [0], [0], [1], [0, 0, 1, 1], [], []>} : vector<128x24xf32>, vector<24x1024xf32>, vector<128x1024xf32> -> vector<128x1024xf32>
    %c0_3 = arith.constant 0 : index
    %c0_4 = arith.constant 0 : index
    %3 = vector.load %arg8[%c0_3, %c0_4] : memref<1x2688xf32, #tpu.memory_space<vmem>>, vector<1x1024xf32>
    %4 = vector.broadcast %3 : vector<1x1024xf32> to vector<128x1024xf32>
    %5 = arith.addf %2, %4 : vector<128x1024xf32>
    %cst_5 = arith.constant 0.000000e+00 : f32
    %6 = vector.broadcast %cst_5 : f32 to vector<128x1024xf32>
    %7 = arith.maximumf %5, %6 : vector<128x1024xf32>
    %8 = vector.extract_strided_slice %7 {offsets = [0, 0], sizes = [128, 512], strides = [1, 1]} : vector<128x1024xf32> to vector<128x512xf32>
    %9 = vector.extract_strided_slice %7 {offsets = [0, 512], sizes = [128, 512], strides = [1, 1]} : vector<128x1024xf32> to vector<128x512xf32>
    %10 = arith.maximumf %8, %9 : vector<128x512xf32>
    %c0_6 = arith.constant 0 : index
    %c0_7 = arith.constant 0 : index
    %11 = vector.load %arg7[%c0_6, %c0_7] : memref<512x272xf32, #tpu.memory_space<vmem>>, vector<512x256xf32>
    %cst_8 = arith.constant dense<0.000000e+00> : vector<128x256xf32>
    %12 = tpu.matmul %10, %11, %cst_8 {dimension_numbers = #tpu.dot_dimension_numbers<[1], [0], [0], [1], [0, 0, 1, 1], [], []>} : vector<128x512xf32>, vector<512x256xf32>, vector<128x256xf32> -> vector<128x256xf32>
    %c0_9 = arith.constant 0 : index
    %c1024 = arith.constant 1024 : index
    %13 = vector.load %arg8[%c0_9, %c1024] : memref<1x2688xf32, #tpu.memory_space<vmem>>, vector<1x256xf32>
    %14 = vector.broadcast %13 : vector<1x256xf32> to vector<128x256xf32>
    %15 = arith.addf %12, %14 : vector<128x256xf32>
    %cst_10 = arith.constant 0.000000e+00 : f32
    %16 = vector.broadcast %cst_10 : f32 to vector<128x256xf32>
    %17 = arith.maximumf %15, %16 : vector<128x256xf32>
    %18 = vector.extract_strided_slice %17 {offsets = [0, 0], sizes = [128, 128], strides = [1, 1]} : vector<128x256xf32> to vector<128x128xf32>
    %19 = vector.extract_strided_slice %17 {offsets = [0, 128], sizes = [128, 128], strides = [1, 1]} : vector<128x256xf32> to vector<128x128xf32>
    %20 = arith.maximumf %18, %19 : vector<128x128xf32>
    %c0_11 = arith.constant 0 : index
    %c512 = arith.constant 512 : index
    %21 = vector.load %arg6[%c0_11, %c512] : memref<128x776xf32, #tpu.memory_space<vmem>>, vector<128x256xf32>
    %cst_12 = arith.constant dense<0.000000e+00> : vector<128x256xf32>
    %22 = tpu.matmul %20, %21, %cst_12 {dimension_numbers = #tpu.dot_dimension_numbers<[1], [0], [0], [1], [0, 0, 1, 1], [], []>} : vector<128x128xf32>, vector<128x256xf32>, vector<128x256xf32> -> vector<128x256xf32>
    %c0_13 = arith.constant 0 : index
    %c1280 = arith.constant 1280 : index
    %23 = vector.load %arg8[%c0_13, %c1280] : memref<1x2688xf32, #tpu.memory_space<vmem>>, vector<1x256xf32>
    %24 = vector.broadcast %23 : vector<1x256xf32> to vector<128x256xf32>
    %25 = arith.addf %22, %24 : vector<128x256xf32>
    %cst_14 = arith.constant 0.000000e+00 : f32
    %26 = vector.broadcast %cst_14 : f32 to vector<128x256xf32>
    %27 = arith.maximumf %25, %26 : vector<128x256xf32>
    %28 = vector.extract_strided_slice %27 {offsets = [0, 0], sizes = [128, 128], strides = [1, 1]} : vector<128x256xf32> to vector<128x128xf32>
    %29 = vector.extract_strided_slice %27 {offsets = [0, 128], sizes = [128, 128], strides = [1, 1]} : vector<128x256xf32> to vector<128x128xf32>
    %30 = arith.maximumf %28, %29 : vector<128x128xf32>
    %c0_15 = arith.constant 0 : index
    %c768 = arith.constant 768 : index
    %31 = vector.load %arg6[%c0_15, %c768] : memref<128x776xf32, #tpu.memory_space<vmem>>, vector<128x8xf32>
    %cst_16 = arith.constant dense<0.000000e+00> : vector<128x8xf32>
    %32 = tpu.matmul %30, %31, %cst_16 {dimension_numbers = #tpu.dot_dimension_numbers<[1], [0], [0], [1], [0, 0, 1, 1], [], []>} : vector<128x128xf32>, vector<128x8xf32>, vector<128x8xf32> -> vector<128x8xf32>
    %c0_17 = arith.constant 0 : index
    %c1536 = arith.constant 1536 : index
    %33 = vector.load %arg8[%c0_17, %c1536] : memref<1x2688xf32, #tpu.memory_space<vmem>>, vector<1x8xf32>
    %34 = vector.broadcast %33 : vector<1x8xf32> to vector<128x8xf32>
    %35 = arith.addf %32, %34 : vector<128x8xf32>
    %c0_18 = arith.constant 0 : index
    %c128 = arith.constant 128 : index
    %36 = vector.load %arg2[%c0_18, %c128] : memref<8x160xf32, #tpu.memory_space<vmem>>, vector<8x32xf32>
    %cst_19 = arith.constant dense<0.000000e+00> : vector<128x32xf32>
    %37 = tpu.matmul %35, %36, %cst_19 {dimension_numbers = #tpu.dot_dimension_numbers<[1], [0], [0], [1], [0, 0, 1, 1], [], []>} : vector<128x8xf32>, vector<8x32xf32>, vector<128x32xf32> -> vector<128x32xf32>
    %c0_20 = arith.constant 0 : index
    %c1664 = arith.constant 1664 : index
    %38 = vector.load %arg8[%c0_20, %c1664] : memref<1x2688xf32, #tpu.memory_space<vmem>>, vector<1x32xf32>
    %39 = vector.broadcast %38 : vector<1x32xf32> to vector<128x32xf32>
    %40 = arith.addf %37, %39 : vector<128x32xf32>
    %c0_21 = arith.constant 0 : index
    %c0_22 = arith.constant 0 : index
    %41 = vector.load %arg5[%c0_21, %c0_22] : memref<32x128xf32, #tpu.memory_space<vmem>>, vector<32x128xf32>
    %cst_23 = arith.constant dense<0.000000e+00> : vector<128x128xf32>
    %42 = tpu.matmul %40, %41, %cst_23 {dimension_numbers = #tpu.dot_dimension_numbers<[1], [0], [0], [1], [0, 0, 1, 1], [], []>} : vector<128x32xf32>, vector<32x128xf32>, vector<128x128xf32> -> vector<128x128xf32>
    %c0_24 = arith.constant 0 : index
    %c1792 = arith.constant 1792 : index
    %43 = vector.load %arg8[%c0_24, %c1792] : memref<1x2688xf32, #tpu.memory_space<vmem>>, vector<1x128xf32>
    %44 = vector.broadcast %43 : vector<1x128xf32> to vector<128x128xf32>
    %45 = arith.addf %42, %44 : vector<128x128xf32>
    %cst_25 = arith.constant 0.000000e+00 : f32
    %46 = vector.broadcast %cst_25 : f32 to vector<128x128xf32>
    %47 = arith.maximumf %45, %46 : vector<128x128xf32>
    %c0_26 = arith.constant 0 : index
    %c0_27 = arith.constant 0 : index
    %48 = vector.load %arg6[%c0_26, %c0_27] : memref<128x776xf32, #tpu.memory_space<vmem>>, vector<128x512xf32>
    %cst_28 = arith.constant dense<0.000000e+00> : vector<128x512xf32>
    %49 = tpu.matmul %47, %48, %cst_28 {dimension_numbers = #tpu.dot_dimension_numbers<[1], [0], [0], [1], [0, 0, 1, 1], [], []>} : vector<128x128xf32>, vector<128x512xf32>, vector<128x512xf32> -> vector<128x512xf32>
    %c0_29 = arith.constant 0 : index
    %c1920 = arith.constant 1920 : index
    %50 = vector.load %arg8[%c0_29, %c1920] : memref<1x2688xf32, #tpu.memory_space<vmem>>, vector<1x512xf32>
    %51 = vector.broadcast %50 : vector<1x512xf32> to vector<128x512xf32>
    %52 = arith.addf %49, %51 : vector<128x512xf32>
    %cst_30 = arith.constant 0.000000e+00 : f32
    %53 = vector.broadcast %cst_30 : f32 to vector<128x512xf32>
    %54 = arith.maximumf %52, %53 : vector<128x512xf32>
    %c0_31 = arith.constant 0 : index
    %c256 = arith.constant 256 : index
    %55 = vector.load %arg7[%c0_31, %c256] : memref<512x272xf32, #tpu.memory_space<vmem>>, vector<512x16xf32>
    %cst_32 = arith.constant dense<0.000000e+00> : vector<128x16xf32>
    %56 = tpu.matmul %54, %55, %cst_32 {dimension_numbers = #tpu.dot_dimension_numbers<[1], [0], [0], [1], [0, 0, 1, 1], [], []>} : vector<128x512xf32>, vector<512x16xf32>, vector<128x16xf32> -> vector<128x16xf32>
    %c0_33 = arith.constant 0 : index
    %c2432 = arith.constant 2432 : index
    %57 = vector.load %arg8[%c0_33, %c2432] : memref<1x2688xf32, #tpu.memory_space<vmem>>, vector<1x16xf32>
    %58 = vector.broadcast %57 : vector<1x16xf32> to vector<128x16xf32>
    %59 = arith.addf %56, %58 : vector<128x16xf32>
    %60 = arith.negf %59 : vector<128x16xf32>
    %61 = math.exp %60 : vector<128x16xf32>
    %cst_34 = arith.constant 1.000000e+00 : f32
    %62 = vector.broadcast %cst_34 : f32 to vector<128x16xf32>
    %63 = arith.addf %62, %61 : vector<128x16xf32>
    %64 = arith.divf %62, %63 : vector<128x16xf32>
    %c0_35 = arith.constant 0 : index
    %c0_36 = arith.constant 0 : index
    %65 = vector.load %arg3[%c0_35, %c0_36] : memref<16x128xf32, #tpu.memory_space<vmem>>, vector<16x128xf32>
    %cst_37 = arith.constant dense<0.000000e+00> : vector<128x128xf32>
    %66 = tpu.matmul %64, %65, %cst_37 {dimension_numbers = #tpu.dot_dimension_numbers<[1], [0], [0], [1], [0, 0, 1, 1], [], []>} : vector<128x16xf32>, vector<16x128xf32>, vector<128x128xf32> -> vector<128x128xf32>
    %c0_38 = arith.constant 0 : index
    %c0_39 = arith.constant 0 : index
    %67 = vector.load %arg2[%c0_38, %c0_39] : memref<8x160xf32, #tpu.memory_space<vmem>>, vector<8x128xf32>
    %cst_40 = arith.constant dense<0.000000e+00> : vector<128x128xf32>
    %68 = tpu.matmul %35, %67, %cst_40 {dimension_numbers = #tpu.dot_dimension_numbers<[1], [0], [0], [1], [0, 0, 1, 1], [], []>} : vector<128x8xf32>, vector<8x128xf32>, vector<128x128xf32> -> vector<128x128xf32>
    %69 = arith.addf %66, %68 : vector<128x128xf32>
    %c0_41 = arith.constant 0 : index
    %c2560 = arith.constant 2560 : index
    %70 = vector.load %arg8[%c0_41, %c2560] : memref<1x2688xf32, #tpu.memory_space<vmem>>, vector<1x128xf32>
    %71 = vector.broadcast %70 : vector<1x128xf32> to vector<128x128xf32>
    %72 = arith.addf %69, %71 : vector<128x128xf32>
    %c0_42 = arith.constant 0 : index
    %c0_43 = arith.constant 0 : index
    %73 = vector.load %arg9[%c0_42, %c0_43] : memref<128x128xf32, #tpu.memory_space<vmem>>, vector<128x128xf32>
    tpu.vector_store %arg9[%c0_42, %c0_43], %72 {strides = array<i32>} : memref<128x128xf32, #tpu.memory_space<vmem>>, vector<128x128xf32>,
    return
  }
  func.func @transform_0(%arg0: i32) -> (i32, i32) {
    %c0_i32 = arith.constant 0 : i32
    %c0_i32_0 = arith.constant 0 : i32
    return %arg0, %c0_i32 : i32, i32
  }
  func.func @transform_1(%arg0: i32) -> (i32, i32) {
    %c0_i32 = arith.constant 0 : i32
    %c0_i32_0 = arith.constant 0 : i32
    %c0_i32_1 = arith.constant 0 : i32
    return %c0_i32, %c0_i32_0 : i32, i32
  }
  func.func @transform_2(%arg0: i32) -> (i32, i32) {
    %c0_i32 = arith.constant 0 : i32
    %c0_i32_0 = arith.constant 0 : i32
    %c0_i32_1 = arith.constant 0 : i32
    return %c0_i32, %c0_i32_0 : i32, i32
  }
  func.func @transform_3(%arg0: i32) -> (i32, i32) {
    %c0_i32 = arith.constant 0 : i32
    %c0_i32_0 = arith.constant 0 : i32
    %c0_i32_1 = arith.constant 0 : i32
    return %c0_i32, %c0_i32_0 : i32, i32
  }
  func.func @transform_4(%arg0: i32) -> (i32, i32) {
    %c0_i32 = arith.constant 0 : i32
    %c0_i32_0 = arith.constant 0 : i32
    %c0_i32_1 = arith.constant 0 : i32
    return %c0_i32, %c0_i32_0 : i32, i32
  }
  func.func @transform_5(%arg0: i32) -> (i32, i32) {
    %c0_i32 = arith.constant 0 : i32
    %c0_i32_0 = arith.constant 0 : i32
    %c0_i32_1 = arith.constant 0 : i32
    return %c0_i32, %c0_i32_0 : i32, i32
  }
  func.func @transform_6(%arg0: i32) -> (i32, i32) {
    %c0_i32 = arith.constant 0 : i32
    %c0_i32_0 = arith.constant 0 : i32
    %c0_i32_1 = arith.constant 0 : i32
    return %c0_i32, %c0_i32_0 : i32, i32
  }
  func.func @transform_7(%arg0: i32) -> (i32, i32) {
    %c0_i32 = arith.constant 0 : i32
    %c0_i32_0 = arith.constant 0 : i32
    %c0_i32_1 = arith.constant 0 : i32
    return %c0_i32, %c0_i32_0 : i32, i32
  }
  func.func @transform_8(%arg0: i32) -> (i32, i32) {
    %c0_i32 = arith.constant 0 : i32
    %c0_i32_0 = arith.constant 0 : i32
    return %arg0, %c0_i32 : i32, i32
  }
}

</mosaic_0001>

<llo_original>
// kernel: tpu_custom_call.1
$region0: #{tpu_custom_call.1}
  #allocation0 [shape = 'u32[]', space=smem, size = 0x4, offset = 0x4, fixed_abs, tag = 'smem constant byte address 0x4 - core index']
  #allocation1 [shape = 'u32[144,128]{1,0:T(1,128)}', space=vmem, size = 0x12000, scoped, tag = 'internal scratch']
  %s0 = inlined_call_operand.vmem [shape: f32[128,24], index: 0, kind: input, shape index: {}]
  %s1 = inlined_call_operand.vmem [shape: f32[8,160], index: 1, kind: input, shape index: {}]
  %s2 = inlined_call_operand.vmem [shape: f32[16,128], index: 2, kind: input, shape index: {}]
  %s3 = inlined_call_operand.vmem [shape: f32[24,1024], index: 3, kind: input, shape index: {}]
  %s4 = inlined_call_operand.vmem [shape: f32[32,128], index: 4, kind: input, shape index: {}]
  %s5 = inlined_call_operand.vmem [shape: f32[128,776], index: 5, kind: input, shape index: {}]
  %s6 = inlined_call_operand.vmem [shape: f32[512,272], index: 6, kind: input, shape index: {}]
  %s7 = inlined_call_operand.vmem [shape: f32[1,2688], index: 7, kind: input, shape index: {}]
  %s8 = inlined_call_operand.hbm [shape: f32[128,128], index: 8, kind: output, shape index: {}]
  %s9 = sld [smem:[#allocation0]]
  $region42: #{tpu_custom_call.1} parent=0
    _
  %s11 = ssub.s32 1, %s9
  %s12 = scalar_select 0, %s11, %s9
  $region1: #{tpu_custom_call.1} parent=0
    #allocation2 [shape = 'u8[65536]{0}', space=vmem, size = 0x10000, scoped, tag = 'output window, operand 0, single buffered']
    #allocation3 [shape = 's32[1]{0}', space=sflag, size = 0x4, scoped, tag = 'scoped memory for tpu_custom_call.1']
    %13 = vsyncpa [#allocation3], 0
    // Predicated region
    $region2: #{tpu_custom_call.1} parent=1 // pred_check
      _
    $region3: #{tpu_custom_call.1} parent=1 // pred_check_branch
      %15 = sbr.rel (0) target = $region5
    $region4: #{tpu_custom_call.1} parent=1 // pred_region
      _
    $region5: #{tpu_custom_call.1} parent=1 // pred_fallthru
      _
    // Predicated region
    $region6: #{tpu_custom_call.1} parent=1 // pred_check
      _
    $region7: #{tpu_custom_call.1} parent=1 // pred_check_branch
      %17 = sbr.rel (0) target = $region9
    $region8: #{tpu_custom_call.1} parent=1 // pred_region
      _
    $region9: #{tpu_custom_call.1} parent=1 // pred_fallthru
      _
    // Predicated region
    $region10: #{tpu_custom_call.1} parent=1 // pred_check
      _
    $region11: #{tpu_custom_call.1} parent=1 // pred_check_branch
      %19 = sbr.rel (0) target = $region13
    $region12: #{tpu_custom_call.1} parent=1 // pred_region
      _
    $region13: #{tpu_custom_call.1} parent=1 // pred_fallthru
      _
    // Predicated region
    $region14: #{tpu_custom_call.1} parent=1 // pred_check
      _
    $region15: #{tpu_custom_call.1} parent=1 // pred_check_branch
      %21 = sbr.rel (0) target = $region17
    $region16: #{tpu_custom_call.1} parent=1 // pred_region
      _
    $region17: #{tpu_custom_call.1} parent=1 // pred_fallthru
      _
    // Predicated region
    $region18: #{tpu_custom_call.1} parent=1 // pred_check
      _
    $region19: #{tpu_custom_call.1} parent=1 // pred_check_branch
      %23 = sbr.rel (0) target = $region21
    $region20: #{tpu_custom_call.1} parent=1 // pred_region
      _
    $region21: #{tpu_custom_call.1} parent=1 // pred_fallthru
      _
    // Predicated region
    $region22: #{tpu_custom_call.1} parent=1 // pred_check
      _
    $region23: #{tpu_custom_call.1} parent=1 // pred_check_branch
      %25 = sbr.rel (0) target = $region25
    $region24: #{tpu_custom_call.1} parent=1 // pred_region
      _
    $region25: #{tpu_custom_call.1} parent=1 // pred_fallthru
      _
    // Predicated region
    $region26: #{tpu_custom_call.1} parent=1 // pred_check
      _
    $region27: #{tpu_custom_call.1} parent=1 // pred_check_branch
      %27 = sbr.rel (0) target = $region29
    $region28: #{tpu_custom_call.1} parent=1 // pred_region
      _
    $region29: #{tpu_custom_call.1} parent=1 // pred_fallthru
      _
    // Predicated region
    $region30: #{tpu_custom_call.1} parent=1 // pred_check
      _
    $region31: #{tpu_custom_call.1} parent=1 // pred_check_branch
      %29 = sbr.rel (0) target = $region33
    $region32: #{tpu_custom_call.1} parent=1 // pred_region
      _
    $region33: #{tpu_custom_call.1} parent=1 // pred_fallthru
      _
    %v30 = vld [vmem:[%s0] sm:$0xff]
    %v31 = vld [vmem:[%s0 + $0x8] sm:$0xff]
    %v32 = vld [vmem:[%s0 + $0x10] sm:$0xff]
    %v33 = vld [vmem:[%s0 + $0x18] sm:$0xff]
    %v34 = vld [vmem:[%s0 + $0x20] sm:$0xff]
    %v35 = vld [vmem:[%s0 + $0x28] sm:$0xff]
    %v36 = vld [vmem:[%s0 + $0x30] sm:$0xff]
    %v37 = vld [vmem:[%s0 + $0x38] sm:$0xff]
    %v38 = vld [vmem:[%s0 + $0x40] sm:$0xff]
    %v39 = vld [vmem:[%s0 + $0x48] sm:$0xff]
    %v40 = vld [vmem:[%s0 + $0x50] sm:$0xff]
    %v41 = vld [vmem:[%s0 + $0x58] sm:$0xff]
    %v42 = vld [vmem:[%s0 + $0x60] sm:$0xff]
    %v43 = vld [vmem:[%s0 + $0x68] sm:$0xff]
    %v44 = vld [vmem:[%s0 + $0x70] sm:$0xff]
    %v45 = vld [vmem:[%s0 + $0x78] sm:$0xff]
    %v46 = vld [vmem:[%s3] sm:$0xff]
    %v47 = vld [vmem:[%s3 + $0x8] sm:$0xff]
    %v48 = vld [vmem:[%s3 + $0x10] sm:$0xff]
    %v49 = vld [vmem:[%s3 + $0x18] sm:$0xff]
    %v50 = vld [vmem:[%s3 + $0x20] sm:$0xff]
    %v51 = vld [vmem:[%s3 + $0x28] sm:$0xff]
    %v52 = vld [vmem:[%s3 + $0x30] sm:$0xff]
    %v53 = vld [vmem:[%s3 + $0x38] sm:$0xff]
    %v54 = vld [vmem:[%s3 + $0x40] sm:$0xff]
    %v55 = vld [vmem:[%s3 + $0x48] sm:$0xff]
    %v56 = vld [vmem:[%s3 + $0x50] sm:$0xff]
    %v57 = vld [vmem:[%s3 + $0x58] sm:$0xff]
    %v58 = vld [vmem:[%s3 + $0x60] sm:$0xff]
    %v59 = vld [vmem:[%s3 + $0x68] sm:$0xff]
    %v60 = vld [vmem:[%s3 + $0x70] sm:$0xff]
    %v61 = vld [vmem:[%s3 + $0x78] sm:$0xff]
    %v62 = vld [vmem:[%s3 + $0x80] sm:$0xff]
    %v63 = vld [vmem:[%s3 + $0x88] sm:$0xff]
    %v64 = vld [vmem:[%s3 + $0x90] sm:$0xff]
    %v65 = vld [vmem:[%s3 + $0x98] sm:$0xff]
    %v66 = vld [vmem:[%s3 + $0xa0] sm:$0xff]
    %v67 = vld [vmem:[%s3 + $0xa8] sm:$0xff]
    %v68 = vld [vmem:[%s3 + $0xb0] sm:$0xff]
    %v69 = vld [vmem:[%s3 + $0xb8] sm:$0xff]
    %v70 = vld [vmem:[%s7] sm:$0xff]
    %v72 = vlaneseq
    %v73 = vshrl.u32 %v72, 7
    %v74 = vsub.s32 0, %v73
    %v75 = vrot.slane %v70, %v74
    %v76 = vlaneseq
    %v77 = vshrl.u32 %v76, 7
    %v78 = vsub.s32 1, %v77
    %v79 = vrot.slane %v70, %v78
    %v80 = vlaneseq
    %v81 = vshrl.u32 %v80, 7
    %v82 = vsub.s32 2, %v81
    %v83 = vrot.slane %v70, %v82
    %v84 = vlaneseq
    %v85 = vshrl.u32 %v84, 7
    %v86 = vsub.s32 3, %v85
    %v87 = vrot.slane %v70, %v86
    %v88 = vlaneseq
    %v89 = vshrl.u32 %v88, 7
    %v90 = vsub.s32 4, %v89
    %v91 = vrot.slane %v70, %v90
    %v92 = vlaneseq
    %v93 = vshrl.u32 %v92, 7
    %v94 = vsub.s32 5, %v93
    %v95 = vrot.slane %v70, %v94
    %v96 = vlaneseq
    %v97 = vshrl.u32 %v96, 7
    %v98 = vsub.s32 6, %v97
    %v99 = vrot.slane %v70, %v98
    %v100 = vlaneseq
    %v101 = vshrl.u32 %v100, 7
    %v102 = vsub.s32 7, %v101
    %v103 = vrot.slane %v70, %v102
    %vm112 = vcmask 195584
    %v114 = vsel %vm112, %v30, 0
    %v117 = vsel %vm112, %v31, 0
    %v120 = vsel %vm112, %v32, 0
    %v123 = vsel %vm112, %v33, 0
    %v126 = vsel %vm112, %v34, 0
    %v129 = vsel %vm112, %v35, 0
    %v132 = vsel %vm112, %v36, 0
    %v135 = vsel %vm112, %v37, 0
    %v138 = vsel %vm112, %v38, 0
    %v141 = vsel %vm112, %v39, 0
    %v144 = vsel %vm112, %v40, 0
    %v147 = vsel %vm112, %v41, 0
    %v150 = vsel %vm112, %v42, 0
    %v153 = vsel %vm112, %v43, 0
    %v156 = vsel %vm112, %v44, 0
    %v159 = vsel %vm112, %v45, 0
    %161 = vmatprep.subr.mxu0 0.0
    %162 = vmatpush1.msra.mxu0 0.0
    %163 = vmatprep.subr.mxu0 0.0
    %164 = vmatpush1.msra.mxu0 0.0
    %165 = vmatprep.subr.mxu0 0.0
    %166 = vmatpush1.msra.mxu0 0.0
    %167 = vmatprep.subr.mxu0 0.0
    %168 = vmatpush1.msra.mxu0 0.0
    %169 = vmatprep.subr.mxu0 0.0
    %170 = vmatpush1.msra.mxu0 0.0
    %171 = vmatprep.subr.mxu0 0.0
    %172 = vmatpush1.msra.mxu0 0.0
    %173 = vmatprep.subr.mxu0 0.0
    %174 = vmatpush1.msra.mxu0 0.0
    %175 = vmatprep.subr.mxu0 0.0
    %176 = vmatpush1.msra.mxu0 0.0
    %177 = vmatprep.subr.mxu0 0.0
    %178 = vmatpush1.msra.mxu0 0.0
    %179 = vmatprep.subr.mxu0 0.0
    %180 = vmatpush1.msra.mxu0 0.0
    %181 = vmatprep.subr.mxu0 0.0
    %182 = vmatpush1.msra.mxu0 0.0
    %183 = vmatprep.subr.mxu0 0.0
    %184 = vmatpush1.msra.mxu0 0.0
    %185 = vmatprep.subr.mxu0 0.0
    %186 = vmatpush1.msra.mxu0 0.0
    %187 = vmatprep.subr.mxu0 %v63
    %188 = vmatpush1.msra.mxu0 %v62
    %189 = vmatprep.subr.mxu0 %v55
    %190 = vmatpush1.msra.mxu0 %v54
    %191 = vmatprep.subr.mxu0 %v47
    %192 = vmatpush1.msra.mxu0 %v46
    %193 = vmatprep.subr.mxu0 0.0
    %194 = vmatpush2.msra.mxu0 0.0
    %195 = vmatprep.subr.mxu0 0.0
    %196 = vmatpush2.msra.mxu0 0.0
    %197 = vmatprep.subr.mxu0 0.0
    %198 = vmatpush2.msra.mxu0 0.0
    %199 = vmatprep.subr.mxu0 0.0
    %200 = vmatpush2.msra.mxu0 0.0
    %201 = vmatprep.subr.mxu0 0.0
    %202 = vmatpush2.msra.mxu0 0.0
    %203 = vmatprep.subr.mxu0 0.0
    %204 = vmatpush2.msra.mxu0 0.0
    %205 = vmatprep.subr.mxu0 0.0
    %206 = vmatpush2.msra.mxu0 0.0
    %207 = vmatprep.subr.mxu0 0.0
    %208 = vmatpush2.msra.mxu0 0.0
    %209 = vmatprep.subr.mxu0 0.0
    %210 = vmatpush2.msra.mxu0 0.0
    %211 = vmatprep.subr.mxu0 0.0
    %212 = vmatpush2.msra.mxu0 0.0
    %213 = vmatprep.subr.mxu0 0.0
    %214 = vmatpush2.msra.mxu0 0.0
    %215 = vmatprep.subr.mxu0 0.0
    %216 = vmatpush2.msra.mxu0 0.0
    %217 = vmatprep.subr.mxu0 0.0
    %218 = vmatpush2.msra.mxu0 0.0
    %219 = vmatprep.subr.mxu0 0.0
    %220 = vmatpush2.msra.mxu0 0.0
    %221 = vmatprep.subr.mxu0 0.0
    %222 = vmatpush2.msra.mxu0 0.0
    %223 = vmatprep.subr.mxu0 0.0
    %224 = vmatpush2.msra.mxu0 0.0
    %225 = vmatprep.mubr.f32.mxu0 0.0
    %226 = vmatmul.mubr.f32.gmra.mxu0 %v114
    %v227 = vpop.f32.mrf.mxu0
    %v228 = vadd.f32 %v75, %v227
    %v229 = vpop.f32.mrf.mxu0
    %v230 = vadd.f32 %v79, %v229
    %231 = vmatprep.mubr.f32.mxu0 0.0
    %232 = vmatmul.mubr.f32.gmra.mxu0 %v117
    %v233 = vpop.f32.mrf.mxu0
    %v234 = vadd.f32 %v75, %v233
    %v235 = vpop.f32.mrf.mxu0
    %v236 = vadd.f32 %v79, %v235
    %237 = vmatprep.mubr.f32.mxu0 0.0
    %238 = vmatmul.mubr.f32.gmra.mxu0 %v120
    %v239 = vpop.f32.mrf.mxu0
    %v240 = vadd.f32 %v75, %v239
    %v241 = vpop.f32.mrf.mxu0
    %v242 = vadd.f32 %v79, %v241
    %243 = vmatprep.mubr.f32.mxu0 0.0
    %244 = vmatmul.mubr.f32.gmra.mxu0 %v123
    %v245 = vpop.f32.mrf.mxu0
    %v246 = vadd.f32 %v75, %v245
    %v247 = vpop.f32.mrf.mxu0
    %v248 = vadd.f32 %v79, %v247
    %249 = vmatprep.mubr.f32.mxu0 0.0
    %250 = vmatmul.mubr.f32.gmra.mxu0 %v126
    %v251 = vpop.f32.mrf.mxu0
    %v252 = vadd.f32 %v75, %v251
    %v253 = vpop.f32.mrf.mxu0
    %v254 = vadd.f32 %v79, %v253
    %255 = vmatprep.mubr.f32.mxu0 0.0
    %256 = vmatmul.mubr.f32.gmra.mxu0 %v129
    %v257 = vpop.f32.mrf.mxu0
    %v258 = vadd.f32 %v75, %v257
    %v259 = vpop.f32.mrf.mxu0
    %v260 = vadd.f32 %v79, %v259
    %261 = vmatprep.mubr.f32.mxu0 0.0
    %262 = vmatmul.mubr.f32.gmra.mxu0 %v132
    %v263 = vpop.f32.mrf.mxu0
    %v264 = vadd.f32 %v75, %v263
    %v265 = vpop.f32.mrf.mxu0
    %v266 = vadd.f32 %v79, %v265
    %267 = vmatprep.mubr.f32.mxu0 0.0
    %268 = vmatmul.mubr.f32.gmra.mxu0 %v135
    %v269 = vpop.f32.mrf.mxu0
    %v270 = vadd.f32 %v75, %v269
    %v271 = vpop.f32.mrf.mxu0
    %v272 = vadd.f32 %v79, %v271
    %273 = vmatprep.mubr.f32.mxu0 0.0
    %274 = vmatmul.mubr.f32.gmra.mxu0 %v138
    %v275 = vpop.f32.mrf.mxu0
    %v276 = vadd.f32 %v75, %v275
    %v277 = vpop.f32.mrf.mxu0
    %v278 = vadd.f32 %v79, %v277
    %279 = vmatprep.mubr.f32.mxu0 0.0
    %280 = vmatmul.mubr.f32.gmra.mxu0 %v141
    %v281 = vpop.f32.mrf.mxu0
    %v282 = vadd.f32 %v75, %v281
    %v283 = vpop.f32.mrf.mxu0
    %v284 = vadd.f32 %v79, %v283
    %285 = vmatprep.mubr.f32.mxu0 0.0
    %286 = vmatmul.mubr.f32.gmra.mxu0 %v144
    %v287 = vpop.f32.mrf.mxu0
    %v288 = vadd.f32 %v75, %v287
    %v289 = vpop.f32.mrf.mxu0
    %v290 = vadd.f32 %v79, %v289
    %291 = vmatprep.mubr.f32.mxu0 0.0
    %292 = vmatmul.mubr.f32.gmra.mxu0 %v147
    %v293 = vpop.f32.mrf.mxu0
    %v294 = vadd.f32 %v75, %v293
    %v295 = vpop.f32.mrf.mxu0
    %v296 = vadd.f32 %v79, %v295
    %297 = vmatprep.mubr.f32.mxu0 0.0
    %298 = vmatmul.mubr.f32.gmra.mxu0 %v150
    %v299 = vpop.f32.mrf.mxu0
    %v300 = vadd.f32 %v75, %v299
    %v301 = vpop.f32.mrf.mxu0
    %v302 = vadd.f32 %v79, %v301
    %303 = vmatprep.mubr.f32.mxu0 0.0
    %304 = vmatmul.mubr.f32.gmra.mxu0 %v153
    %v305 = vpop.f32.mrf.mxu0
    %v306 = vadd.f32 %v75, %v305
    %v307 = vpop.f32.mrf.mxu0
    %v308 = vadd.f32 %v79, %v307
    %309 = vmatprep.mubr.f32.mxu0 0.0
    %310 = vmatmul.mubr.f32.gmra.mxu0 %v156
    %v311 = vpop.f32.mrf.mxu0
    %v312 = vadd.f32 %v75, %v311
    %v313 = vpop.f32.mrf.mxu0
    %v314 = vadd.f32 %v79, %v313
    %315 = vmatprep.mubr.f32.mxu0 0.0
    %316 = vmatmul.mubr.f32.gmra.mxu0 %v159
    %v317 = vpop.f32.mrf.mxu0
    %v318 = vadd.f32 %v75, %v317
    %v319 = vpop.f32.mrf.mxu0
    %v320 = vadd.f32 %v79, %v319
    %321 = vdwg.mxu0
    %322 = vmatprep.subr.mxu0 0.0
    %323 = vmatpush1.msra.mxu0 0.0
    %324 = vmatprep.subr.mxu0 0.0
    %325 = vmatpush1.msra.mxu0 0.0
    %326 = vmatprep.subr.mxu0 0.0
    %327 = vmatpush1.msra.mxu0 0.0
    %328 = vmatprep.subr.mxu0 0.0
    %329 = vmatpush1.msra.mxu0 0.0
    %330 = vmatprep.subr.mxu0 0.0
    %331 = vmatpush1.msra.mxu0 0.0
    %332 = vmatprep.subr.mxu0 0.0
    %333 = vmatpush1.msra.mxu0 0.0
    %334 = vmatprep.subr.mxu0 0.0
    %335 = vmatpush1.msra.mxu0 0.0
    %336 = vmatprep.subr.mxu0 0.0
    %337 = vmatpush1.msra.mxu0 0.0
    %338 = vmatprep.subr.mxu0 0.0
    %339 = vmatpush1.msra.mxu0 0.0
    %340 = vmatprep.subr.mxu0 0.0
    %341 = vmatpush1.msra.mxu0 0.0
    %342 = vmatprep.subr.mxu0 0.0
    %343 = vmatpush1.msra.mxu0 0.0
    %344 = vmatprep.subr.mxu0 0.0
    %345 = vmatpush1.msra.mxu0 0.0
    %346 = vmatprep.subr.mxu0 0.0
    %347 = vmatpush1.msra.mxu0 0.0
    %348 = vmatprep.subr.mxu0 %v65
    %349 = vmatpush1.msra.mxu0 %v64
    %350 = vmatprep.subr.mxu0 %v57
    %351 = vmatpush1.msra.mxu0 %v56
    %352 = vmatprep.subr.mxu0 %v49
    %353 = vmatpush1.msra.mxu0 %v48
    %354 = vmatprep.subr.mxu0 0.0
    %355 = vmatpush2.msra.mxu0 0.0
    %356 = vmatprep.subr.mxu0 0.0
    %357 = vmatpush2.msra.mxu0 0.0
    %358 = vmatprep.subr.mxu0 0.0
    %359 = vmatpush2.msra.mxu0 0.0
    %360 = vmatprep.subr.mxu0 0.0
    %361 = vmatpush2.msra.mxu0 0.0
    %362 = vmatprep.subr.mxu0 0.0
    %363 = vmatpush2.msra.mxu0 0.0
    %364 = vmatprep.subr.mxu0 0.0
    %365 = vmatpush2.msra.mxu0 0.0
    %366 = vmatprep.subr.mxu0 0.0
    %367 = vmatpush2.msra.mxu0 0.0
    %368 = vmatprep.subr.mxu0 0.0
    %369 = vmatpush2.msra.mxu0 0.0
    %370 = vmatprep.subr.mxu0 0.0
    %371 = vmatpush2.msra.mxu0 0.0
    %372 = vmatprep.subr.mxu0 0.0
    %373 = vmatpush2.msra.mxu0 0.0
    %374 = vmatprep.subr.mxu0 0.0
    %375 = vmatpush2.msra.mxu0 0.0
    %376 = vmatprep.subr.mxu0 0.0
    %377 = vmatpush2.msra.mxu0 0.0
    %378 = vmatprep.subr.mxu0 0.0
    %379 = vmatpush2.msra.mxu0 0.0
    %380 = vmatprep.subr.mxu0 0.0
    %381 = vmatpush2.msra.mxu0 0.0
    %382 = vmatprep.subr.mxu0 0.0
    %383 = vmatpush2.msra.mxu0 0.0
    %384 = vmatprep.subr.mxu0 0.0
    %385 = vmatpush2.msra.mxu0 0.0
    %386 = vmatprep.mubr.f32.mxu0 0.0
    %387 = vmatmul.mubr.f32.gmra.mxu0 %v114
    %v388 = vpop.f32.mrf.mxu0
    %v389 = vadd.f32 %v83, %v388
    %v390 = vpop.f32.mrf.mxu0
    %v391 = vadd.f32 %v87, %v390
    %392 = vmatprep.mubr.f32.mxu0 0.0
    %393 = vmatmul.mubr.f32.gmra.mxu0 %v117
    %v394 = vpop.f32.mrf.mxu0
    %v395 = vadd.f32 %v83, %v394
    %v396 = vpop.f32.mrf.mxu0
    %v397 = vadd.f32 %v87, %v396
    %398 = vmatprep.mubr.f32.mxu0 0.0
    %399 = vmatmul.mubr.f32.gmra.mxu0 %v120
    %v400 = vpop.f32.mrf.mxu0
    %v401 = vadd.f32 %v83, %v400
    %v402 = vpop.f32.mrf.mxu0
    %v403 = vadd.f32 %v87, %v402
    %404 = vmatprep.mubr.f32.mxu0 0.0
    %405 = vmatmul.mubr.f32.gmra.mxu0 %v123
    %v406 = vpop.f32.mrf.mxu0
    %v407 = vadd.f32 %v83, %v406
    %v408 = vpop.f32.mrf.mxu0
    %v409 = vadd.f32 %v87, %v408
    %410 = vmatprep.mubr.f32.mxu0 0.0
    %411 = vmatmul.mubr.f32.gmra.mxu0 %v126
    %v412 = vpop.f32.mrf.mxu0
    %v413 = vadd.f32 %v83, %v412
    %v414 = vpop.f32.mrf.mxu0
    %v415 = vadd.f32 %v87, %v414
    %416 = vmatprep.mubr.f32.mxu0 0.0
    %417 = vmatmul.mubr.f32.gmra.mxu0 %v129
    %v418 = vpop.f32.mrf.mxu0
    %v419 = vadd.f32 %v83, %v418
    %v420 = vpop.f32.mrf.mxu0
    %v421 = vadd.f32 %v87, %v420
    %422 = vmatprep.mubr.f32.mxu0 0.0
    %423 = vmatmul.mubr.f32.gmra.mxu0 %v132
    %v424 = vpop.f32.mrf.mxu0
    %v425 = vadd.f32 %v83, %v424
    %v426 = vpop.f32.mrf.mxu0
    %v427 = vadd.f32 %v87, %v426
    %428 = vmatprep.mubr.f32.mxu0 0.0
    %429 = vmatmul.mubr.f32.gmra.mxu0 %v135
    %v430 = vpop.f32.mrf.mxu0
    %v431 = vadd.f32 %v83, %v430
    %v432 = vpop.f32.mrf.mxu0
    %v433 = vadd.f32 %v87, %v432
    %434 = vmatprep.mubr.f32.mxu0 0.0
    %435 = vmatmul.mubr.f32.gmra.mxu0 %v138
    %v436 = vpop.f32.mrf.mxu0
    %v437 = vadd.f32 %v83, %v436
    %v438 = vpop.f32.mrf.mxu0
    %v439 = vadd.f32 %v87, %v438
    %440 = vmatprep.mubr.f32.mxu0 0.0
    %441 = vmatmul.mubr.f32.gmra.mxu0 %v141
    %v442 = vpop.f32.mrf.mxu0
    %v443 = vadd.f32 %v83, %v442
    %v444 = vpop.f32.mrf.mxu0
    %v445 = vadd.f32 %v87, %v444
    %446 = vmatprep.mubr.f32.mxu0 0.0
    %447 = vmatmul.mubr.f32.gmra.mxu0 %v144
    %v448 = vpop.f32.mrf.mxu0
    %v449 = vadd.f32 %v83, %v448
    %v450 = vpop.f32.mrf.mxu0
    %v451 = vadd.f32 %v87, %v450
    %452 = vmatprep.mubr.f32.mxu0 0.0
    %453 = vmatmul.mubr.f32.gmra.mxu0 %v147
    %v454 = vpop.f32.mrf.mxu0
    %v455 = vadd.f32 %v83, %v454
    %v456 = vpop.f32.mrf.mxu0
    %v457 = vadd.f32 %v87, %v456
    %458 = vmatprep.mubr.f32.mxu0 0.0
    %459 = vmatmul.mubr.f32.gmra.mxu0 %v150
    %v460 = vpop.f32.mrf.mxu0
    %v461 = vadd.f32 %v83, %v460
    %v462 = vpop.f32.mrf.mxu0
    %v463 = vadd.f32 %v87, %v462
    %464 = vmatprep.mubr.f32.mxu0 0.0
    %465 = vmatmul.mubr.f32.gmra.mxu0 %v153
    %v466 = vpop.f32.mrf.mxu0
    %v467 = vadd.f32 %v83, %v466
    %v468 = vpop.f32.mrf.mxu0
    %v469 = vadd.f32 %v87, %v468
    %470 = vmatprep.mubr.f32.mxu0 0.0
    %471 = vmatmul.mubr.f32.gmra.mxu0 %v156
    %v472 = vpop.f32.mrf.mxu0
    %v473 = vadd.f32 %v83, %v472
    %v474 = vpop.f32.mrf.mxu0
    %v475 = vadd.f32 %v87, %v474
    %476 = vmatprep.mubr.f32.mxu0 0.0
    %477 = vmatmul.mubr.f32.gmra.mxu0 %v159
    %v478 = vpop.f32.mrf.mxu0
    %v479 = vadd.f32 %v83, %v478
    %v480 = vpop.f32.mrf.mxu0
    %v481 = vadd.f32 %v87, %v480
    %482 = vdwg.mxu0
    %483 = vmatprep.subr.mxu0 0.0
    %484 = vmatpush1.msra.mxu0 0.0
    %485 = vmatprep.subr.mxu0 0.0
    %486 = vmatpush1.msra.mxu0 0.0
    %487 = vmatprep.subr.mxu0 0.0
    %488 = vmatpush1.msra.mxu0 0.0
    %489 = vmatprep.subr.mxu0 0.0
    %490 = vmatpush1.msra.mxu0 0.0
    %491 = vmatprep.subr.mxu0 0.0
    %492 = vmatpush1.msra.mxu0 0.0
    %493 = vmatprep.subr.mxu0 0.0
    %494 = vmatpush1.msra.mxu0 0.0
    %495 = vmatprep.subr.mxu0 0.0
    %496 = vmatpush1.msra.mxu0 0.0
    %497 = vmatprep.subr.mxu0 0.0
    %498 = vmatpush1.msra.mxu0 0.0
    %499 = vmatprep.subr.mxu0 0.0
    %500 = vmatpush1.msra.mxu0 0.0
    %501 = vmatprep.subr.mxu0 0.0
    %502 = vmatpush1.msra.mxu0 0.0
    %503 = vmatprep.subr.mxu0 0.0
    %504 = vmatpush1.msra.mxu0 0.0
    %505 = vmatprep.subr.mxu0 0.0
    %506 = vmatpush1.msra.mxu0 0.0
    %507 = vmatprep.subr.mxu0 0.0
    %508 = vmatpush1.msra.mxu0 0.0
    %509 = vmatprep.subr.mxu0 %v67
    %510 = vmatpush1.msra.mxu0 %v66
    %511 = vmatprep.subr.mxu0 %v59
    %512 = vmatpush1.msra.mxu0 %v58
    %513 = vmatprep.subr.mxu0 %v51
    %514 = vmatpush1.msra.mxu0 %v50
    %515 = vmatprep.subr.mxu0 0.0
    %516 = vmatpush2.msra.mxu0 0.0
    %517 = vmatprep.subr.mxu0 0.0
    %518 = vmatpush2.msra.mxu0 0.0
    %519 = vmatprep.subr.mxu0 0.0
    %520 = vmatpush2.msra.mxu0 0.0
    %521 = vmatprep.subr.mxu0 0.0
    %522 = vmatpush2.msra.mxu0 0.0
    %523 = vmatprep.subr.mxu0 0.0
    %524 = vmatpush2.msra.mxu0 0.0
    %525 = vmatprep.subr.mxu0 0.0
    %526 = vmatpush2.msra.mxu0 0.0
    %527 = vmatprep.subr.mxu0 0.0
    %528 = vmatpush2.msra.mxu0 0.0
    %529 = vmatprep.subr.mxu0 0.0
    %530 = vmatpush2.msra.mxu0 0.0
    %531 = vmatprep.subr.mxu0 0.0
    %532 = vmatpush2.msra.mxu0 0.0
    %533 = vmatprep.subr.mxu0 0.0
    %534 = vmatpush2.msra.mxu0 0.0
    %535 = vmatprep.subr.mxu0 0.0
    %536 = vmatpush2.msra.mxu0 0.0
    %537 = vmatprep.subr.mxu0 0.0
    %538 = vmatpush2.msra.mxu0 0.0
    %539 = vmatprep.subr.mxu0 0.0
    %540 = vmatpush2.msra.mxu0 0.0
    %541 = vmatprep.subr.mxu0 0.0
    %542 = vmatpush2.msra.mxu0 0.0
    %543 = vmatprep.subr.mxu0 0.0
    %544 = vmatpush2.msra.mxu0 0.0
    %545 = vmatprep.subr.mxu0 0.0
    %546 = vmatpush2.msra.mxu0 0.0
    %547 = vmatprep.mubr.f32.mxu0 0.0
    %548 = vmatmul.mubr.f32.gmra.mxu0 %v114
    %v549 = vpop.f32.mrf.mxu0
    %v550 = vadd.f32 %v91, %v549
    %v551 = vpop.f32.mrf.mxu0
    %v552 = vadd.f32 %v95, %v551
    %553 = vmatprep.mubr.f32.mxu0 0.0
    %554 = vmatmul.mubr.f32.gmra.mxu0 %v117
    %v555 = vpop.f32.mrf.mxu0
    %v556 = vadd.f32 %v91, %v555
    %v557 = vpop.f32.mrf.mxu0
    %v558 = vadd.f32 %v95, %v557
    %559 = vmatprep.mubr.f32.mxu0 0.0
    %560 = vmatmul.mubr.f32.gmra.mxu0 %v120
    %v561 = vpop.f32.mrf.mxu0
    %v562 = vadd.f32 %v91, %v561
    %v563 = vpop.f32.mrf.mxu0
    %v564 = vadd.f32 %v95, %v563
    %565 = vmatprep.mubr.f32.mxu0 0.0
    %566 = vmatmul.mubr.f32.gmra.mxu0 %v123
    %v567 = vpop.f32.mrf.mxu0
    %v568 = vadd.f32 %v91, %v567
    %v569 = vpop.f32.mrf.mxu0
    %v570 = vadd.f32 %v95, %v569
    %571 = vmatprep.mubr.f32.mxu0 0.0
    %572 = vmatmul.mubr.f32.gmra.mxu0 %v126
    %v573 = vpop.f32.mrf.mxu0
    %v574 = vadd.f32 %v91, %v573
    %v575 = vpop.f32.mrf.mxu0
    %v576 = vadd.f32 %v95, %v575
    %577 = vmatprep.mubr.f32.mxu0 0.0
    %578 = vmatmul.mubr.f32.gmra.mxu0 %v129
    %v579 = vpop.f32.mrf.mxu0
    %v580 = vadd.f32 %v91, %v579
    %v581 = vpop.f32.mrf.mxu0
    %v582 = vadd.f32 %v95, %v581
    %583 = vmatprep.mubr.f32.mxu0 0.0
    %584 = vmatmul.mubr.f32.gmra.mxu0 %v132
    %v585 = vpop.f32.mrf.mxu0
    %v586 = vadd.f32 %v91, %v585
    %v587 = vpop.f32.mrf.mxu0
    %v588 = vadd.f32 %v95, %v587
    %589 = vmatprep.mubr.f32.mxu0 0.0
    %590 = vmatmul.mubr.f32.gmra.mxu0 %v135
    %v591 = vpop.f32.mrf.mxu0
    %v592 = vadd.f32 %v91, %v591
    %v593 = vpop.f32.mrf.mxu0
    %v594 = vadd.f32 %v95, %v593
    %595 = vmatprep.mubr.f32.mxu0 0.0
    %596 = vmatmul.mubr.f32.gmra.mxu0 %v138
    %v597 = vpop.f32.mrf.mxu0
    %v598 = vadd.f32 %v91, %v597
    %v599 = vpop.f32.mrf.mxu0
    %v600 = vadd.f32 %v95, %v599
    %601 = vmatprep.mubr.f32.mxu0 0.0
    %602 = vmatmul.mubr.f32.gmra.mxu0 %v141
    %v603 = vpop.f32.mrf.mxu0
    %v604 = vadd.f32 %v91, %v603
    %v605 = vpop.f32.mrf.mxu0
    %v606 = vadd.f32 %v95, %v605
    %607 = vmatprep.mubr.f32.mxu0 0.0
    %608 = vmatmul.mubr.f32.gmra.mxu0 %v144
    %v609 = vpop.f32.mrf.mxu0
    %v610 = vadd.f32 %v91, %v609
    %v611 = vpop.f32.mrf.mxu0
    %v612 = vadd.f32 %v95, %v611
    %613 = vmatprep.mubr.f32.mxu0 0.0
    %614 = vmatmul.mubr.f32.gmra.mxu0 %v147
    %v615 = vpop.f32.mrf.mxu0
    %v616 = vadd.f32 %v91, %v615
    %v617 = vpop.f32.mrf.mxu0
    %v618 = vadd.f32 %v95, %v617
    %619 = vmatprep.mubr.f32.mxu0 0.0
    %620 = vmatmul.mubr.f32.gmra.mxu0 %v150
    %v621 = vpop.f32.mrf.mxu0
    %v622 = vadd.f32 %v91, %v621
    %v623 = vpop.f32.mrf.mxu0
    %v624 = vadd.f32 %v95, %v623
    %625 = vmatprep.mubr.f32.mxu0 0.0
    %626 = vmatmul.mubr.f32.gmra.mxu0 %v153
    %v627 = vpop.f32.mrf.mxu0
    %v628 = vadd.f32 %v91, %v627
    %v629 = vpop.f32.mrf.mxu0
    %v630 = vadd.f32 %v95, %v629
    %631 = vmatprep.mubr.f32.mxu0 0.0
    %632 = vmatmul.mubr.f32.gmra.mxu0 %v156
    %v633 = vpop.f32.mrf.mxu0
    %v634 = vadd.f32 %v91, %v633
    %v635 = vpop.f32.mrf.mxu0
    %v636 = vadd.f32 %v95, %v635
    %637 = vmatprep.mubr.f32.mxu0 0.0
    %638 = vmatmul.mubr.f32.gmra.mxu0 %v159
    %v639 = vpop.f32.mrf.mxu0
    %v640 = vadd.f32 %v91, %v639
    %v641 = vpop.f32.mrf.mxu0
    %v642 = vadd.f32 %v95, %v641
    %643 = vdwg.mxu0
    %644 = vmatprep.subr.mxu0 0.0
    %645 = vmatpush1.msra.mxu0 0.0
    %646 = vmatprep.subr.mxu0 0.0
    %647 = vmatpush1.msra.mxu0 0.0
    %648 = vmatprep.subr.mxu0 0.0
    %649 = vmatpush1.msra.mxu0 0.0
    %650 = vmatprep.subr.mxu0 0.0
    %651 = vmatpush1.msra.mxu0 0.0
    %652 = vmatprep.subr.mxu0 0.0
    %653 = vmatpush1.msra.mxu0 0.0
    %654 = vmatprep.subr.mxu0 0.0
    %655 = vmatpush1.msra.mxu0 0.0
    %656 = vmatprep.subr.mxu0 0.0
    %657 = vmatpush1.msra.mxu0 0.0
    %658 = vmatprep.subr.mxu0 0.0
    %659 = vmatpush1.msra.mxu0 0.0
    %660 = vmatprep.subr.mxu0 0.0
    %661 = vmatpush1.msra.mxu0 0.0
    %662 = vmatprep.subr.mxu0 0.0
    %663 = vmatpush1.msra.mxu0 0.0
    %664 = vmatprep.subr.mxu0 0.0
    %665 = vmatpush1.msra.mxu0 0.0
    %666 = vmatprep.subr.mxu0 0.0
    %667 = vmatpush1.msra.mxu0 0.0
    %668 = vmatprep.subr.mxu0 0.0
    %669 = vmatpush1.msra.mxu0 0.0
    %670 = vmatprep.subr.mxu0 %v69
    %671 = vmatpush1.msra.mxu0 %v68
    %672 = vmatprep.subr.mxu0 %v61
    %673 = vmatpush1.msra.mxu0 %v60
    %674 = vmatprep.subr.mxu0 %v53
    %675 = vmatpush1.msra.mxu0 %v52
    %676 = vmatprep.subr.mxu0 0.0
    %677 = vmatpush2.msra.mxu0 0.0
    %678 = vmatprep.subr.mxu0 0.0
    %679 = vmatpush2.msra.mxu0 0.0
    %680 = vmatprep.subr.mxu0 0.0
    %681 = vmatpush2.msra.mxu0 0.0
    %682 = vmatprep.subr.mxu0 0.0
    %683 = vmatpush2.msra.mxu0 0.0
    %684 = vmatprep.subr.mxu0 0.0
    %685 = vmatpush2.msra.mxu0 0.0
    %686 = vmatprep.subr.mxu0 0.0
    %687 = vmatpush2.msra.mxu0 0.0
    %688 = vmatprep.subr.mxu0 0.0
    %689 = vmatpush2.msra.mxu0 0.0
    %690 = vmatprep.subr.mxu0 0.0
    %691 = vmatpush2.msra.mxu0 0.0
    %692 = vmatprep.subr.mxu0 0.0
    %693 = vmatpush2.msra.mxu0 0.0
    %694 = vmatprep.subr.mxu0 0.0
    %695 = vmatpush2.msra.mxu0 0.0
    %696 = vmatprep.subr.mxu0 0.0
    %697 = vmatpush2.msra.mxu0 0.0
    %698 = vmatprep.subr.mxu0 0.0
    %699 = vmatpush2.msra.mxu0 0.0
    %700 = vmatprep.subr.mxu0 0.0
    %701 = vmatpush2.msra.mxu0 0.0
    %702 = vmatprep.subr.mxu0 0.0
    %703 = vmatpush2.msra.mxu0 0.0
    %704 = vmatprep.subr.mxu0 0.0
    %705 = vmatpush2.msra.mxu0 0.0
    %706 = vmatprep.subr.mxu0 0.0
    %707 = vmatpush2.msra.mxu0 0.0
    %708 = vmatprep.mubr.f32.mxu0 0.0
    %709 = vmatmul.mubr.f32.gmra.mxu0 %v114
    %v710 = vpop.f32.mrf.mxu0
    %v711 = vadd.f32 %v99, %v710
    %v712 = vpop.f32.mrf.mxu0
    %v713 = vadd.f32 %v103, %v712
    %714 = vmatprep.mubr.f32.mxu0 0.0
    %715 = vmatmul.mubr.f32.gmra.mxu0 %v117
    %v716 = vpop.f32.mrf.mxu0
    %v717 = vadd.f32 %v99, %v716
    %v718 = vpop.f32.mrf.mxu0
    %v719 = vadd.f32 %v103, %v718
    %720 = vmatprep.mubr.f32.mxu0 0.0
    %721 = vmatmul.mubr.f32.gmra.mxu0 %v120
    %v722 = vpop.f32.mrf.mxu0
    %v723 = vadd.f32 %v99, %v722
    %v724 = vpop.f32.mrf.mxu0
    %v725 = vadd.f32 %v103, %v724
    %726 = vmatprep.mubr.f32.mxu0 0.0
    %727 = vmatmul.mubr.f32.gmra.mxu0 %v123
    %v728 = vpop.f32.mrf.mxu0
    %v729 = vadd.f32 %v99, %v728
    %v730 = vpop.f32.mrf.mxu0
    %v731 = vadd.f32 %v103, %v730
    %732 = vmatprep.mubr.f32.mxu0 0.0
    %733 = vmatmul.mubr.f32.gmra.mxu0 %v126
    %v734 = vpop.f32.mrf.mxu0
    %v735 = vadd.f32 %v99, %v734
    %v736 = vpop.f32.mrf.mxu0
    %v737 = vadd.f32 %v103, %v736
    %738 = vmatprep.mubr.f32.mxu0 0.0
    %739 = vmatmul.mubr.f32.gmra.mxu0 %v129
    %v740 = vpop.f32.mrf.mxu0
    %v741 = vadd.f32 %v99, %v740
    %v742 = vpop.f32.mrf.mxu0
    %v743 = vadd.f32 %v103, %v742
    %744 = vmatprep.mubr.f32.mxu0 0.0
    %745 = vmatmul.mubr.f32.gmra.mxu0 %v132
    %v746 = vpop.f32.mrf.mxu0
    %v747 = vadd.f32 %v99, %v746
    %v748 = vpop.f32.mrf.mxu0
    %v749 = vadd.f32 %v103, %v748
    %750 = vmatprep.mubr.f32.mxu0 0.0
    %751 = vmatmul.mubr.f32.gmra.mxu0 %v135
    %v752 = vpop.f32.mrf.mxu0
    %v753 = vadd.f32 %v99, %v752
    %v754 = vpop.f32.mrf.mxu0
    %v755 = vadd.f32 %v103, %v754
    %756 = vmatprep.mubr.f32.mxu0 0.0
    %757 = vmatmul.mubr.f32.gmra.mxu0 %v138
    %v758 = vpop.f32.mrf.mxu0
    %v759 = vadd.f32 %v99, %v758
    %v760 = vpop.f32.mrf.mxu0
    %v761 = vadd.f32 %v103, %v760
    %762 = vmatprep.mubr.f32.mxu0 0.0
    %763 = vmatmul.mubr.f32.gmra.mxu0 %v141
    %v764 = vpop.f32.mrf.mxu0
    %v765 = vadd.f32 %v99, %v764
    %v766 = vpop.f32.mrf.mxu0
    %v767 = vadd.f32 %v103, %v766
    %768 = vmatprep.mubr.f32.mxu0 0.0
    %769 = vmatmul.mubr.f32.gmra.mxu0 %v144
    %v770 = vpop.f32.mrf.mxu0
    %v771 = vadd.f32 %v99, %v770
    %v772 = vpop.f32.mrf.mxu0
    %v773 = vadd.f32 %v103, %v772
    %774 = vmatprep.mubr.f32.mxu0 0.0
    %775 = vmatmul.mubr.f32.gmra.mxu0 %v147
    %v776 = vpop.f32.mrf.mxu0
    %v777 = vadd.f32 %v99, %v776
    %v778 = vpop.f32.mrf.mxu0
    %v779 = vadd.f32 %v103, %v778
    %780 = vmatprep.mubr.f32.mxu0 0.0
    %781 = vmatmul.mubr.f32.gmra.mxu0 %v150
    %v782 = vpop.f32.mrf.mxu0
    %v783 = vadd.f32 %v99, %v782
    %v784 = vpop.f32.mrf.mxu0
    %v785 = vadd.f32 %v103, %v784
    %786 = vmatprep.mubr.f32.mxu0 0.0
    %787 = vmatmul.mubr.f32.gmra.mxu0 %v153
    %v788 = vpop.f32.mrf.mxu0
    %v789 = vadd.f32 %v99, %v788
    %v790 = vpop.f32.mrf.mxu0
    %v791 = vadd.f32 %v103, %v790
    %792 = vmatprep.mubr.f32.mxu0 0.0
    %793 = vmatmul.mubr.f32.gmra.mxu0 %v156
    %v794 = vpop.f32.mrf.mxu0
    %v795 = vadd.f32 %v99, %v794
    %v796 = vpop.f32.mrf.mxu0
    %v797 = vadd.f32 %v103, %v796
    %798 = vmatprep.mubr.f32.mxu0 0.0
    %799 = vmatmul.mubr.f32.gmra.mxu0 %v159
    %v800 = vpop.f32.mrf.mxu0
    %v801 = vadd.f32 %v99, %v800
    %v802 = vpop.f32.mrf.mxu0
    %v803 = vadd.f32 %v103, %v802
    %804 = vdwg.mxu0
    %v805 = vmax.f32 %v228, 0.0
    %v806 = vmax.f32 %v230, 0.0
    %v807 = vmax.f32 %v389, 0.0
    %v808 = vmax.f32 %v391, 0.0
    %v809 = vmax.f32 %v550, 0.0
    %v810 = vmax.f32 %v552, 0.0
    %v811 = vmax.f32 %v711, 0.0
    %v812 = vmax.f32 %v713, 0.0
    %v813 = vmax.f32 %v234, 0.0
    %v814 = vmax.f32 %v236, 0.0
    %v815 = vmax.f32 %v395, 0.0
    %v816 = vmax.f32 %v397, 0.0
    %v817 = vmax.f32 %v556, 0.0
    %v818 = vmax.f32 %v558, 0.0
    %v819 = vmax.f32 %v717, 0.0
    %v820 = vmax.f32 %v719, 0.0
    %v821 = vmax.f32 %v240, 0.0
    %v822 = vmax.f32 %v242, 0.0
    %v823 = vmax.f32 %v401, 0.0
    %v824 = vmax.f32 %v403, 0.0
    %v825 = vmax.f32 %v562, 0.0
    %v826 = vmax.f32 %v564, 0.0
    %v827 = vmax.f32 %v723, 0.0
    %v828 = vmax.f32 %v725, 0.0
    %v829 = vmax.f32 %v246, 0.0
    %v830 = vmax.f32 %v248, 0.0
    %v831 = vmax.f32 %v407, 0.0
    %v832 = vmax.f32 %v409, 0.0
    %v833 = vmax.f32 %v568, 0.0
    %v834 = vmax.f32 %v570, 0.0
    %v835 = vmax.f32 %v729, 0.0
    %v836 = vmax.f32 %v731, 0.0
    %v837 = vmax.f32 %v252, 0.0
    %v838 = vmax.f32 %v254, 0.0
    %v839 = vmax.f32 %v413, 0.0
    %v840 = vmax.f32 %v415, 0.0
    %v841 = vmax.f32 %v574, 0.0
    %v842 = vmax.f32 %v576, 0.0
    %v843 = vmax.f32 %v735, 0.0
    %v844 = vmax.f32 %v737, 0.0
    %v845 = vmax.f32 %v258, 0.0
    %v846 = vmax.f32 %v260, 0.0
    %v847 = vmax.f32 %v419, 0.0
    %v848 = vmax.f32 %v421, 0.0
    %v849 = vmax.f32 %v580, 0.0
    %v850 = vmax.f32 %v582, 0.0
    %v851 = vmax.f32 %v741, 0.0
    %v852 = vmax.f32 %v743, 0.0
    %v853 = vmax.f32 %v264, 0.0
    %v854 = vmax.f32 %v266, 0.0
    %v855 = vmax.f32 %v425, 0.0
    %v856 = vmax.f32 %v427, 0.0
    %v857 = vmax.f32 %v586, 0.0
    %v858 = vmax.f32 %v588, 0.0
    %v859 = vmax.f32 %v747, 0.0
    %v860 = vmax.f32 %v749, 0.0
    %v861 = vmax.f32 %v270, 0.0
    %v862 = vmax.f32 %v272, 0.0
    %v863 = vmax.f32 %v431, 0.0
    %v864 = vmax.f32 %v433, 0.0
    %v865 = vmax.f32 %v592, 0.0
    %v866 = vmax.f32 %v594, 0.0
    %v867 = vmax.f32 %v753, 0.0
    %v868 = vmax.f32 %v755, 0.0
    %v869 = vmax.f32 %v276, 0.0
    %v870 = vmax.f32 %v278, 0.0
    %v871 = vmax.f32 %v437, 0.0
    %v872 = vmax.f32 %v439, 0.0
    %v873 = vmax.f32 %v598, 0.0
    %v874 = vmax.f32 %v600, 0.0
    %v875 = vmax.f32 %v759, 0.0
    %v876 = vmax.f32 %v761, 0.0
    %v877 = vmax.f32 %v282, 0.0
    %v878 = vmax.f32 %v284, 0.0
    %v879 = vmax.f32 %v443, 0.0
    %v880 = vmax.f32 %v445, 0.0
    %v881 = vmax.f32 %v604, 0.0
    %v882 = vmax.f32 %v606, 0.0
    %v883 = vmax.f32 %v765, 0.0
    %v884 = vmax.f32 %v767, 0.0
    %v885 = vmax.f32 %v288, 0.0
    %v886 = vmax.f32 %v290, 0.0
    %v887 = vmax.f32 %v449, 0.0
    %v888 = vmax.f32 %v451, 0.0
    %v889 = vmax.f32 %v610, 0.0
    %v890 = vmax.f32 %v612, 0.0
    %v891 = vmax.f32 %v771, 0.0
    %v892 = vmax.f32 %v773, 0.0
    %v893 = vmax.f32 %v294, 0.0
    %v894 = vmax.f32 %v296, 0.0
    %v895 = vmax.f32 %v455, 0.0
    %v896 = vmax.f32 %v457, 0.0
    %v897 = vmax.f32 %v616, 0.0
    %v898 = vmax.f32 %v618, 0.0
    %v899 = vmax.f32 %v777, 0.0
    %v900 = vmax.f32 %v779, 0.0
    %v901 = vmax.f32 %v300, 0.0
    %v902 = vmax.f32 %v302, 0.0
    %v903 = vmax.f32 %v461, 0.0
    %v904 = vmax.f32 %v463, 0.0
    %v905 = vmax.f32 %v622, 0.0
    %v906 = vmax.f32 %v624, 0.0
    %v907 = vmax.f32 %v783, 0.0
    %v908 = vmax.f32 %v785, 0.0
    %v909 = vmax.f32 %v306, 0.0
    %v910 = vmax.f32 %v308, 0.0
    %v911 = vmax.f32 %v467, 0.0
    %v912 = vmax.f32 %v469, 0.0
    %v913 = vmax.f32 %v628, 0.0
    %v914 = vmax.f32 %v630, 0.0
    %v915 = vmax.f32 %v789, 0.0
    %v916 = vmax.f32 %v791, 0.0
    %v917 = vmax.f32 %v312, 0.0
    %v918 = vmax.f32 %v314, 0.0
    %v919 = vmax.f32 %v473, 0.0
    %v920 = vmax.f32 %v475, 0.0
    %v921 = vmax.f32 %v634, 0.0
    %v922 = vmax.f32 %v636, 0.0
    %v923 = vmax.f32 %v795, 0.0
    %v924 = vmax.f32 %v797, 0.0
    %v925 = vmax.f32 %v318, 0.0
    %v926 = vmax.f32 %v320, 0.0
    %v927 = vmax.f32 %v479, 0.0
    %v928 = vmax.f32 %v481, 0.0
    %v929 = vmax.f32 %v640, 0.0
    %v930 = vmax.f32 %v642, 0.0
    %v931 = vmax.f32 %v801, 0.0
    %v932 = vmax.f32 %v803, 0.0
    %v933 = vmax.f32 %v805, %v809
    %v934 = vmax.f32 %v806, %v810
    %v935 = vmax.f32 %v807, %v811
    %v936 = vmax.f32 %v808, %v812
    %v937 = vmax.f32 %v813, %v817
    %v938 = vmax.f32 %v814, %v818
    %v939 = vmax.f32 %v815, %v819
    %v940 = vmax.f32 %v816, %v820
    %v941 = vmax.f32 %v821, %v825
    %v942 = vmax.f32 %v822, %v826
    %v943 = vmax.f32 %v823, %v827
    %v944 = vmax.f32 %v824, %v828
    %v945 = vmax.f32 %v829, %v833
    %v946 = vmax.f32 %v830, %v834
    %v947 = vmax.f32 %v831, %v835
    %v948 = vmax.f32 %v832, %v836
    %v949 = vmax.f32 %v837, %v841
    %v950 = vmax.f32 %v838, %v842
    %v951 = vmax.f32 %v839, %v843
    %v952 = vmax.f32 %v840, %v844
    %v953 = vmax.f32 %v845, %v849
    %v954 = vmax.f32 %v846, %v850
    %v955 = vmax.f32 %v847, %v851
    %v956 = vmax.f32 %v848, %v852
    %v957 = vmax.f32 %v853, %v857
    %v958 = vmax.f32 %v854, %v858
    %v959 = vmax.f32 %v855, %v859
    %v960 = vmax.f32 %v856, %v860
    %v961 = vmax.f32 %v861, %v865
    %v962 = vmax.f32 %v862, %v866
    %v963 = vmax.f32 %v863, %v867
    %v964 = vmax.f32 %v864, %v868
    %v965 = vmax.f32 %v869, %v873
    %v966 = vmax.f32 %v870, %v874
    %v967 = vmax.f32 %v871, %v875
    %v968 = vmax.f32 %v872, %v876
    %v969 = vmax.f32 %v877, %v881
    %v970 = vmax.f32 %v878, %v882
    %v971 = vmax.f32 %v879, %v883
    %v972 = vmax.f32 %v880, %v884
    %v973 = vmax.f32 %v885, %v889
    %v974 = vmax.f32 %v886, %v890
    %v975 = vmax.f32 %v887, %v891
    %v976 = vmax.f32 %v888, %v892
    %v977 = vmax.f32 %v893, %v897
    %v978 = vmax.f32 %v894, %v898
    %v979 = vmax.f32 %v895, %v899
    %v980 = vmax.f32 %v896, %v900
    %v981 = vmax.f32 %v901, %v905
    %v982 = vmax.f32 %v902, %v906
    %v983 = vmax.f32 %v903, %v907
    %v984 = vmax.f32 %v904, %v908
    %v985 = vmax.f32 %v909, %v913
    %v986 = vmax.f32 %v910, %v914
    %v987 = vmax.f32 %v911, %v915
    %v988 = vmax.f32 %v912, %v916
    %v989 = vmax.f32 %v917, %v921
    %v990 = vmax.f32 %v918, %v922
    %v991 = vmax.f32 %v919, %v923
    %v992 = vmax.f32 %v920, %v924
    %v993 = vmax.f32 %v925, %v929
    %v994 = vmax.f32 %v926, %v930
    %v995 = vmax.f32 %v927, %v931
    %v996 = vmax.f32 %v928, %v932
    %v997 = vld [vmem:[%s6] sm:$0xff]
    %v998 = vld [vmem:[%s6 + $0x8] sm:$0xff]
    %v999 = vld [vmem:[%s6 + $0x18] sm:$0xff]
    %v1000 = vld [vmem:[%s6 + $0x20] sm:$0xff]
    %v1001 = vld [vmem:[%s6 + $0x30] sm:$0xff]
    %v1002 = vld [vmem:[%s6 + $0x38] sm:$0xff]
    %v1003 = vld [vmem:[%s6 + $0x48] sm:$0xff]
    %v1004 = vld [vmem:[%s6 + $0x50] sm:$0xff]
    %v1005 = vld [vmem:[%s6 + $0x60] sm:$0xff]
    %v1006 = vld [vmem:[%s6 + $0x68] sm:$0xff]
    %v1007 = vld [vmem:[%s6 + $0x78] sm:$0xff]
    %v1008 = vld [vmem:[%s6 + $0x80] sm:$0xff]
    %v1009 = vld [vmem:[%s6 + $0x90] sm:$0xff]
    %v1010 = vld [vmem:[%s6 + $0x98] sm:$0xff]
    %v1011 = vld [vmem:[%s6 + $0xa8] sm:$0xff]
    %v1012 = vld [vmem:[%s6 + $0xb0] sm:$0xff]
    %v1013 = vld [vmem:[%s6 + $0xc0] sm:$0xff]
    %v1014 = vld [vmem:[%s6 + $0xc8] sm:$0xff]
    %v1015 = vld [vmem:[%s6 + $0xd8] sm:$0xff]
    %v1016 = vld [vmem:[%s6 + $0xe0] sm:$0xff]
    %v1017 = vld [vmem:[%s6 + $0xf0] sm:$0xff]
    %v1018 = vld [vmem:[%s6 + $0xf8] sm:$0xff]
    %v1019 = vld [vmem:[%s6 + $0x108] sm:$0xff]
    %v1020 = vld [vmem:[%s6 + $0x110] sm:$0xff]
    %v1021 = vld [vmem:[%s6 + $0x120] sm:$0xff]
    %v1022 = vld [vmem:[%s6 + $0x128] sm:$0xff]
    %v1023 = vld [vmem:[%s6 + $0x138] sm:$0xff]
    %v1024 = vld [vmem:[%s6 + $0x140] sm:$0xff]
    %v1025 = vld [vmem:[%s6 + $0x150] sm:$0xff]
    %v1026 = vld [vmem:[%s6 + $0x158] sm:$0xff]
    %v1027 = vld [vmem:[%s6 + $0x168] sm:$0xff]
    %v1028 = vld [vmem:[%s6 + $0x170] sm:$0xff]
    %v1029 = vld [vmem:[%s6 + $0x180] sm:$0xff]
    %v1030 = vld [vmem:[%s6 + $0x188] sm:$0xff]
    %v1031 = vld [vmem:[%s6 + $0x198] sm:$0xff]
    %v1032 = vld [vmem:[%s6 + $0x1a0] sm:$0xff]
    %v1033 = vld [vmem:[%s6 + $0x1b0] sm:$0xff]
    %v1034 = vld [vmem:[%s6 + $0x1b8] sm:$0xff]
    %v1035 = vld [vmem:[%s6 + $0x1c8] sm:$0xff]
    %v1036 = vld [vmem:[%s6 + $0x1d0] sm:$0xff]
    %v1037 = vld [vmem:[%s6 + $0x1e0] sm:$0xff]
    %v1038 = vld [vmem:[%s6 + $0x1e8] sm:$0xff]
    %v1039 = vld [vmem:[%s6 + $0x1f8] sm:$0xff]
    %v1040 = vld [vmem:[%s6 + $0x200] sm:$0xff]
    %v1041 = vld [vmem:[%s6 + $0x210] sm:$0xff]
    %v1042 = vld [vmem:[%s6 + $0x218] sm:$0xff]
    %v1043 = vld [vmem:[%s6 + $0x228] sm:$0xff]
    %v1044 = vld [vmem:[%s6 + $0x230] sm:$0xff]
    %v1045 = vld [vmem:[%s6 + $0x240] sm:$0xff]
    %v1046 = vld [vmem:[%s6 + $0x248] sm:$0xff]
    %v1047 = vld [vmem:[%s6 + $0x258] sm:$0xff]
    %v1048 = vld [vmem:[%s6 + $0x260] sm:$0xff]
    %v1049 = vld [vmem:[%s6 + $0x270] sm:$0xff]
    %v1050 = vld [vmem:[%s6 + $0x278] sm:$0xff]
    %v1051 = vld [vmem:[%s6 + $0x288] sm:$0xff]
    %v1052 = vld [vmem:[%s6 + $0x290] sm:$0xff]
    %v1053 = vld [vmem:[%s6 + $0x2a0] sm:$0xff]
    %v1054 = vld [vmem:[%s6 + $0x2a8] sm:$0xff]
    %v1055 = vld [vmem:[%s6 + $0x2b8] sm:$0xff]
    %v1056 = vld [vmem:[%s6 + $0x2c0] sm:$0xff]
    %v1057 = vld [vmem:[%s6 + $0x2d0] sm:$0xff]
    %v1058 = vld [vmem:[%s6 + $0x2d8] sm:$0xff]
    %v1059 = vld [vmem:[%s6 + $0x2e8] sm:$0xff]
    %v1060 = vld [vmem:[%s6 + $0x2f0] sm:$0xff]
    %v1061 = vld [vmem:[%s6 + $0x300] sm:$0xff]
    %v1062 = vld [vmem:[%s6 + $0x308] sm:$0xff]
    %v1063 = vld [vmem:[%s6 + $0x318] sm:$0xff]
    %v1064 = vld [vmem:[%s6 + $0x320] sm:$0xff]
    %v1065 = vld [vmem:[%s6 + $0x330] sm:$0xff]
    %v1066 = vld [vmem:[%s6 + $0x338] sm:$0xff]
    %v1067 = vld [vmem:[%s6 + $0x348] sm:$0xff]
    %v1068 = vld [vmem:[%s6 + $0x350] sm:$0xff]
    %v1069 = vld [vmem:[%s6 + $0x360] sm:$0xff]
    %v1070 = vld [vmem:[%s6 + $0x368] sm:$0xff]
    %v1071 = vld [vmem:[%s6 + $0x378] sm:$0xff]
    %v1072 = vld [vmem:[%s6 + $0x380] sm:$0xff]
    %v1073 = vld [vmem:[%s6 + $0x390] sm:$0xff]
    %v1074 = vld [vmem:[%s6 + $0x398] sm:$0xff]
    %v1075 = vld [vmem:[%s6 + $0x3a8] sm:$0xff]
    %v1076 = vld [vmem:[%s6 + $0x3b0] sm:$0xff]
    %v1077 = vld [vmem:[%s6 + $0x3c0] sm:$0xff]
    %v1078 = vld [vmem:[%s6 + $0x3c8] sm:$0xff]
    %v1079 = vld [vmem:[%s6 + $0x3d8] sm:$0xff]
    %v1080 = vld [vmem:[%s6 + $0x3e0] sm:$0xff]
    %v1081 = vld [vmem:[%s6 + $0x3f0] sm:$0xff]
    %v1082 = vld [vmem:[%s6 + $0x3f8] sm:$0xff]
    %v1083 = vld [vmem:[%s6 + $0x408] sm:$0xff]
    %v1084 = vld [vmem:[%s6 + $0x410] sm:$0xff]
    %v1085 = vld [vmem:[%s6 + $0x420] sm:$0xff]
    %v1086 = vld [vmem:[%s6 + $0x428] sm:$0xff]
    %v1087 = vld [vmem:[%s6 + $0x438] sm:$0xff]
    %v1088 = vld [vmem:[%s6 + $0x440] sm:$0xff]
    %v1089 = vld [vmem:[%s6 + $0x450] sm:$0xff]
    %v1090 = vld [vmem:[%s6 + $0x458] sm:$0xff]
    %v1091 = vld [vmem:[%s6 + $0x468] sm:$0xff]
    %v1092 = vld [vmem:[%s6 + $0x470] sm:$0xff]
    %v1093 = vld [vmem:[%s6 + $0x480] sm:$0xff]
    %v1094 = vld [vmem:[%s6 + $0x488] sm:$0xff]
    %v1095 = vld [vmem:[%s6 + $0x498] sm:$0xff]
    %v1096 = vld [vmem:[%s6 + $0x4a0] sm:$0xff]
    %v1097 = vld [vmem:[%s6 + $0x4b0] sm:$0xff]
    %v1098 = vld [vmem:[%s6 + $0x4b8] sm:$0xff]
    %v1099 = vld [vmem:[%s6 + $0x4c8] sm:$0xff]
    %v1100 = vld [vmem:[%s6 + $0x4d0] sm:$0xff]
    %v1101 = vld [vmem:[%s6 + $0x4e0] sm:$0xff]
    %v1102 = vld [vmem:[%s6 + $0x4e8] sm:$0xff]
    %v1103 = vld [vmem:[%s6 + $0x4f8] sm:$0xff]
    %v1104 = vld [vmem:[%s6 + $0x500] sm:$0xff]
    %v1105 = vld [vmem:[%s6 + $0x510] sm:$0xff]
    %v1106 = vld [vmem:[%s6 + $0x518] sm:$0xff]
    %v1107 = vld [vmem:[%s6 + $0x528] sm:$0xff]
    %v1108 = vld [vmem:[%s6 + $0x530] sm:$0xff]
    %v1109 = vld [vmem:[%s6 + $0x540] sm:$0xff]
    %v1110 = vld [vmem:[%s6 + $0x548] sm:$0xff]
    %v1111 = vld [vmem:[%s6 + $0x558] sm:$0xff]
    %v1112 = vld [vmem:[%s6 + $0x560] sm:$0xff]
    %v1113 = vld [vmem:[%s6 + $0x570] sm:$0xff]
    %v1114 = vld [vmem:[%s6 + $0x578] sm:$0xff]
    %v1115 = vld [vmem:[%s6 + $0x588] sm:$0xff]
    %v1116 = vld [vmem:[%s6 + $0x590] sm:$0xff]
    %v1117 = vld [vmem:[%s6 + $0x5a0] sm:$0xff]
    %v1118 = vld [vmem:[%s6 + $0x5a8] sm:$0xff]
    %v1119 = vld [vmem:[%s6 + $0x5b8] sm:$0xff]
    %v1120 = vld [vmem:[%s6 + $0x5c0] sm:$0xff]
    %v1121 = vld [vmem:[%s6 + $0x5d0] sm:$0xff]
    %v1122 = vld [vmem:[%s6 + $0x5d8] sm:$0xff]
    %v1123 = vld [vmem:[%s6 + $0x5e8] sm:$0xff]
    %v1124 = vld [vmem:[%s6 + $0x5f0] sm:$0xff]
    %v1125 = vld [vmem:[%s7 + $0x8] sm:$0x3]
    %v1127 = vlaneseq
    %v1128 = vshrl.u32 %v1127, 7
    %v1129 = vsub.s32 0, %v1128
    %v1130 = vrot.slane %v1125, %v1129
    %v1131 = vlaneseq
    %v1132 = vshrl.u32 %v1131, 7
    %v1133 = vsub.s32 1, %v1132
    %v1134 = vrot.slane %v1125, %v1133
    %1137 = vmatprep.subr.mxu0 %v1028
    %1138 = vmatpush1.msra.mxu0 %v1027
    %1139 = vmatprep.subr.mxu0 %v1026
    %1140 = vmatpush1.msra.mxu0 %v1025
    %1141 = vmatprep.subr.mxu0 %v1024
    %1142 = vmatpush1.msra.mxu0 %v1023
    %1143 = vmatprep.subr.mxu0 %v1022
    %1144 = vmatpush1.msra.mxu0 %v1021
    %1145 = vmatprep.subr.mxu0 %v1020
    %1146 = vmatpush1.msra.mxu0 %v1019
    %1147 = vmatprep.subr.mxu0 %v1018
    %1148 = vmatpush1.msra.mxu0 %v1017
    %1149 = vmatprep.subr.mxu0 %v1016
    %1150 = vmatpush1.msra.mxu0 %v1015
    %1151 = vmatprep.subr.mxu0 %v1014
    %1152 = vmatpush1.msra.mxu0 %v1013
    %1153 = vmatprep.subr.mxu0 %v1012
    %1154 = vmatpush1.msra.mxu0 %v1011
    %1155 = vmatprep.subr.mxu0 %v1010
    %1156 = vmatpush1.msra.mxu0 %v1009
    %1157 = vmatprep.subr.mxu0 %v1008
    %1158 = vmatpush1.msra.mxu0 %v1007
    %1159 = vmatprep.subr.mxu0 %v1006
    %1160 = vmatpush1.msra.mxu0 %v1005
    %1161 = vmatprep.subr.mxu0 %v1004
    %1162 = vmatpush1.msra.mxu0 %v1003
    %1163 = vmatprep.subr.mxu0 %v1002
    %1164 = vmatpush1.msra.mxu0 %v1001
    %1165 = vmatprep.subr.mxu0 %v1000
    %1166 = vmatpush1.msra.mxu0 %v999
    %1167 = vmatprep.subr.mxu0 %v998
    %1168 = vmatpush1.msra.mxu0 %v997
    %1169 = vmatprep.subr.mxu0 %v1060
    %1170 = vmatpush2.msra.mxu0 %v1059
    %1171 = vmatprep.subr.mxu0 %v1058
    %1172 = vmatpush2.msra.mxu0 %v1057
    %1173 = vmatprep.subr.mxu0 %v1056
    %1174 = vmatpush2.msra.mxu0 %v1055
    %1175 = vmatprep.subr.mxu0 %v1054
    %1176 = vmatpush2.msra.mxu0 %v1053
    %1177 = vmatprep.subr.mxu0 %v1052
    %1178 = vmatpush2.msra.mxu0 %v1051
    %1179 = vmatprep.subr.mxu0 %v1050
    %1180 = vmatpush2.msra.mxu0 %v1049
    %1181 = vmatprep.subr.mxu0 %v1048
    %1182 = vmatpush2.msra.mxu0 %v1047
    %1183 = vmatprep.subr.mxu0 %v1046
    %1184 = vmatpush2.msra.mxu0 %v1045
    %1185 = vmatprep.subr.mxu0 %v1044
    %1186 = vmatpush2.msra.mxu0 %v1043
    %1187 = vmatprep.subr.mxu0 %v1042
    %1188 = vmatpush2.msra.mxu0 %v1041
    %1189 = vmatprep.subr.mxu0 %v1040
    %1190 = vmatpush2.msra.mxu0 %v1039
    %1191 = vmatprep.subr.mxu0 %v1038
    %1192 = vmatpush2.msra.mxu0 %v1037
    %1193 = vmatprep.subr.mxu0 %v1036
    %1194 = vmatpush2.msra.mxu0 %v1035
    %1195 = vmatprep.subr.mxu0 %v1034
    %1196 = vmatpush2.msra.mxu0 %v1033
    %1197 = vmatprep.subr.mxu0 %v1032
    %1198 = vmatpush2.msra.mxu0 %v1031
    %1199 = vmatprep.subr.mxu0 %v1030
    %1200 = vmatpush2.msra.mxu0 %v1029
    %1201 = vmatprep.mubr.f32.mxu0 %v934
    %1202 = vmatmul.mubr.f32.gmra.mxu0 %v933
    %v1203 = vpop.f32.mrf.mxu0
    %v1204 = vadd.f32 %v1130, %v1203
    %v1205 = vpop.f32.mrf.mxu0
    %v1206 = vadd.f32 %v1134, %v1205
    %1207 = vmatprep.mubr.f32.mxu0 %v938
    %1208 = vmatmul.mubr.f32.gmra.mxu0 %v937
    %v1209 = vpop.f32.mrf.mxu0
    %v1210 = vadd.f32 %v1130, %v1209
    %v1211 = vpop.f32.mrf.mxu0
    %v1212 = vadd.f32 %v1134, %v1211
    %1213 = vmatprep.mubr.f32.mxu0 %v942
    %1214 = vmatmul.mubr.f32.gmra.mxu0 %v941
    %v1215 = vpop.f32.mrf.mxu0
    %v1216 = vadd.f32 %v1130, %v1215
    %v1217 = vpop.f32.mrf.mxu0
    %v1218 = vadd.f32 %v1134, %v1217
    %1219 = vmatprep.mubr.f32.mxu0 %v946
    %1220 = vmatmul.mubr.f32.gmra.mxu0 %v945
    %v1221 = vpop.f32.mrf.mxu0
    %v1222 = vadd.f32 %v1130, %v1221
    %v1223 = vpop.f32.mrf.mxu0
    %v1224 = vadd.f32 %v1134, %v1223
    %1225 = vmatprep.mubr.f32.mxu0 %v950
    %1226 = vmatmul.mubr.f32.gmra.mxu0 %v949
    %v1227 = vpop.f32.mrf.mxu0
    %v1228 = vadd.f32 %v1130, %v1227
    %v1229 = vpop.f32.mrf.mxu0
    %v1230 = vadd.f32 %v1134, %v1229
    %1231 = vmatprep.mubr.f32.mxu0 %v954
    %1232 = vmatmul.mubr.f32.gmra.mxu0 %v953
    %v1233 = vpop.f32.mrf.mxu0
    %v1234 = vadd.f32 %v1130, %v1233
    %v1235 = vpop.f32.mrf.mxu0
    %v1236 = vadd.f32 %v1134, %v1235
    %1237 = vmatprep.mubr.f32.mxu0 %v958
    %1238 = vmatmul.mubr.f32.gmra.mxu0 %v957
    %v1239 = vpop.f32.mrf.mxu0
    %v1240 = vadd.f32 %v1130, %v1239
    %v1241 = vpop.f32.mrf.mxu0
    %v1242 = vadd.f32 %v1134, %v1241
    %1243 = vmatprep.mubr.f32.mxu0 %v962
    %1244 = vmatmul.mubr.f32.gmra.mxu0 %v961
    %v1245 = vpop.f32.mrf.mxu0
    %v1246 = vadd.f32 %v1130, %v1245
    %v1247 = vpop.f32.mrf.mxu0
    %v1248 = vadd.f32 %v1134, %v1247
    %1249 = vmatprep.mubr.f32.mxu0 %v966
    %1250 = vmatmul.mubr.f32.gmra.mxu0 %v965
    %v1251 = vpop.f32.mrf.mxu0
    %v1252 = vadd.f32 %v1130, %v1251
    %v1253 = vpop.f32.mrf.mxu0
    %v1254 = vadd.f32 %v1134, %v1253
    %1255 = vmatprep.mubr.f32.mxu0 %v970
    %1256 = vmatmul.mubr.f32.gmra.mxu0 %v969
    %v1257 = vpop.f32.mrf.mxu0
    %v1258 = vadd.f32 %v1130, %v1257
    %v1259 = vpop.f32.mrf.mxu0
    %v1260 = vadd.f32 %v1134, %v1259
    %1261 = vmatprep.mubr.f32.mxu0 %v974
    %1262 = vmatmul.mubr.f32.gmra.mxu0 %v973
    %v1263 = vpop.f32.mrf.mxu0
    %v1264 = vadd.f32 %v1130, %v1263
    %v1265 = vpop.f32.mrf.mxu0
    %v1266 = vadd.f32 %v1134, %v1265
    %1267 = vmatprep.mubr.f32.mxu0 %v978
    %1268 = vmatmul.mubr.f32.gmra.mxu0 %v977
    %v1269 = vpop.f32.mrf.mxu0
    %v1270 = vadd.f32 %v1130, %v1269
    %v1271 = vpop.f32.mrf.mxu0
    %v1272 = vadd.f32 %v1134, %v1271
    %1273 = vmatprep.mubr.f32.mxu0 %v982
    %1274 = vmatmul.mubr.f32.gmra.mxu0 %v981
    %v1275 = vpop.f32.mrf.mxu0
    %v1276 = vadd.f32 %v1130, %v1275
    %v1277 = vpop.f32.mrf.mxu0
    %v1278 = vadd.f32 %v1134, %v1277
    %1279 = vmatprep.mubr.f32.mxu0 %v986
    %1280 = vmatmul.mubr.f32.gmra.mxu0 %v985
    %v1281 = vpop.f32.mrf.mxu0
    %v1282 = vadd.f32 %v1130, %v1281
    %v1283 = vpop.f32.mrf.mxu0
    %v1284 = vadd.f32 %v1134, %v1283
    %1285 = vmatprep.mubr.f32.mxu0 %v990
    %1286 = vmatmul.mubr.f32.gmra.mxu0 %v989
    %v1287 = vpop.f32.mrf.mxu0
    %v1288 = vadd.f32 %v1130, %v1287
    %v1289 = vpop.f32.mrf.mxu0
    %v1290 = vadd.f32 %v1134, %v1289
    %1291 = vmatprep.mubr.f32.mxu0 %v994
    %1292 = vmatmul.mubr.f32.gmra.mxu0 %v993
    %v1293 = vpop.f32.mrf.mxu0
    %v1294 = vadd.f32 %v1130, %v1293
    %v1295 = vpop.f32.mrf.mxu0
    %v1296 = vadd.f32 %v1134, %v1295
    %1297 = vdwg.mxu0
    %1298 = vmatprep.subr.mxu0 %v1092
    %1299 = vmatpush1.msra.mxu0 %v1091
    %1300 = vmatprep.subr.mxu0 %v1090
    %1301 = vmatpush1.msra.mxu0 %v1089
    %1302 = vmatprep.subr.mxu0 %v1088
    %1303 = vmatpush1.msra.mxu0 %v1087
    %1304 = vmatprep.subr.mxu0 %v1086
    %1305 = vmatpush1.msra.mxu0 %v1085
    %1306 = vmatprep.subr.mxu0 %v1084
    %1307 = vmatpush1.msra.mxu0 %v1083
    %1308 = vmatprep.subr.mxu0 %v1082
    %1309 = vmatpush1.msra.mxu0 %v1081
    %1310 = vmatprep.subr.mxu0 %v1080
    %1311 = vmatpush1.msra.mxu0 %v1079
    %1312 = vmatprep.subr.mxu0 %v1078
    %1313 = vmatpush1.msra.mxu0 %v1077
    %1314 = vmatprep.subr.mxu0 %v1076
    %1315 = vmatpush1.msra.mxu0 %v1075
    %1316 = vmatprep.subr.mxu0 %v1074
    %1317 = vmatpush1.msra.mxu0 %v1073
    %1318 = vmatprep.subr.mxu0 %v1072
    %1319 = vmatpush1.msra.mxu0 %v1071
    %1320 = vmatprep.subr.mxu0 %v1070
    %1321 = vmatpush1.msra.mxu0 %v1069
    %1322 = vmatprep.subr.mxu0 %v1068
    %1323 = vmatpush1.msra.mxu0 %v1067
    %1324 = vmatprep.subr.mxu0 %v1066
    %1325 = vmatpush1.msra.mxu0 %v1065
    %1326 = vmatprep.subr.mxu0 %v1064
    %1327 = vmatpush1.msra.mxu0 %v1063
    %1328 = vmatprep.subr.mxu0 %v1062
    %1329 = vmatpush1.msra.mxu0 %v1061
    %1330 = vmatprep.subr.mxu0 %v1124
    %1331 = vmatpush2.msra.mxu0 %v1123
    %1332 = vmatprep.subr.mxu0 %v1122
    %1333 = vmatpush2.msra.mxu0 %v1121
    %1334 = vmatprep.subr.mxu0 %v1120
    %1335 = vmatpush2.msra.mxu0 %v1119
    %1336 = vmatprep.subr.mxu0 %v1118
    %1337 = vmatpush2.msra.mxu0 %v1117
    %1338 = vmatprep.subr.mxu0 %v1116
    %1339 = vmatpush2.msra.mxu0 %v1115
    %1340 = vmatprep.subr.mxu0 %v1114
    %1341 = vmatpush2.msra.mxu0 %v1113
    %1342 = vmatprep.subr.mxu0 %v1112
    %1343 = vmatpush2.msra.mxu0 %v1111
    %1344 = vmatprep.subr.mxu0 %v1110
    %1345 = vmatpush2.msra.mxu0 %v1109
    %1346 = vmatprep.subr.mxu0 %v1108
    %1347 = vmatpush2.msra.mxu0 %v1107
    %1348 = vmatprep.subr.mxu0 %v1106
    %1349 = vmatpush2.msra.mxu0 %v1105
    %1350 = vmatprep.subr.mxu0 %v1104
    %1351 = vmatpush2.msra.mxu0 %v1103
    %1352 = vmatprep.subr.mxu0 %v1102
    %1353 = vmatpush2.msra.mxu0 %v1101
    %1354 = vmatprep.subr.mxu0 %v1100
    %1355 = vmatpush2.msra.mxu0 %v1099
    %1356 = vmatprep.subr.mxu0 %v1098
    %1357 = vmatpush2.msra.mxu0 %v1097
    %1358 = vmatprep.subr.mxu0 %v1096
    %1359 = vmatpush2.msra.mxu0 %v1095
    %1360 = vmatprep.subr.mxu0 %v1094
    %1361 = vmatpush2.msra.mxu0 %v1093
    %1362 = vmatprep.mubr.f32.mxu0 %v936
    %1363 = vmatmul.mubr.f32.gmra.mxu0 %v935
    %v1364 = vpop.f32.mrf.mxu0
    %v1365 = vadd.f32 %v1204, %v1364
    %v1366 = vpop.f32.mrf.mxu0
    %v1367 = vadd.f32 %v1206, %v1366
    %1368 = vmatprep.mubr.f32.mxu0 %v940
    %1369 = vmatmul.mubr.f32.gmra.mxu0 %v939
    %v1370 = vpop.f32.mrf.mxu0
    %v1371 = vadd.f32 %v1210, %v1370
    %v1372 = vpop.f32.mrf.mxu0
    %v1373 = vadd.f32 %v1212, %v1372
    %1374 = vmatprep.mubr.f32.mxu0 %v944
    %1375 = vmatmul.mubr.f32.gmra.mxu0 %v943
    %v1376 = vpop.f32.mrf.mxu0
    %v1377 = vadd.f32 %v1216, %v1376
    %v1378 = vpop.f32.mrf.mxu0
    %v1379 = vadd.f32 %v1218, %v1378
    %1380 = vmatprep.mubr.f32.mxu0 %v948
    %1381 = vmatmul.mubr.f32.gmra.mxu0 %v947
    %v1382 = vpop.f32.mrf.mxu0
    %v1383 = vadd.f32 %v1222, %v1382
    %v1384 = vpop.f32.mrf.mxu0
    %v1385 = vadd.f32 %v1224, %v1384
    %1386 = vmatprep.mubr.f32.mxu0 %v952
    %1387 = vmatmul.mubr.f32.gmra.mxu0 %v951
    %v1388 = vpop.f32.mrf.mxu0
    %v1389 = vadd.f32 %v1228, %v1388
    %v1390 = vpop.f32.mrf.mxu0
    %v1391 = vadd.f32 %v1230, %v1390
    %1392 = vmatprep.mubr.f32.mxu0 %v956
    %1393 = vmatmul.mubr.f32.gmra.mxu0 %v955
    %v1394 = vpop.f32.mrf.mxu0
    %v1395 = vadd.f32 %v1234, %v1394
    %v1396 = vpop.f32.mrf.mxu0
    %v1397 = vadd.f32 %v1236, %v1396
    %1398 = vmatprep.mubr.f32.mxu0 %v960
    %1399 = vmatmul.mubr.f32.gmra.mxu0 %v959
    %v1400 = vpop.f32.mrf.mxu0
    %v1401 = vadd.f32 %v1240, %v1400
    %v1402 = vpop.f32.mrf.mxu0
    %v1403 = vadd.f32 %v1242, %v1402
    %1404 = vmatprep.mubr.f32.mxu0 %v964
    %1405 = vmatmul.mubr.f32.gmra.mxu0 %v963
    %v1406 = vpop.f32.mrf.mxu0
    %v1407 = vadd.f32 %v1246, %v1406
    %v1408 = vpop.f32.mrf.mxu0
    %v1409 = vadd.f32 %v1248, %v1408
    %1410 = vmatprep.mubr.f32.mxu0 %v968
    %1411 = vmatmul.mubr.f32.gmra.mxu0 %v967
    %v1412 = vpop.f32.mrf.mxu0
    %v1413 = vadd.f32 %v1252, %v1412
    %v1414 = vpop.f32.mrf.mxu0
    %v1415 = vadd.f32 %v1254, %v1414
    %1416 = vmatprep.mubr.f32.mxu0 %v972
    %1417 = vmatmul.mubr.f32.gmra.mxu0 %v971
    %v1418 = vpop.f32.mrf.mxu0
    %v1419 = vadd.f32 %v1258, %v1418
    %v1420 = vpop.f32.mrf.mxu0
    %v1421 = vadd.f32 %v1260, %v1420
    %1422 = vmatprep.mubr.f32.mxu0 %v976
    %1423 = vmatmul.mubr.f32.gmra.mxu0 %v975
    %v1424 = vpop.f32.mrf.mxu0
    %v1425 = vadd.f32 %v1264, %v1424
    %v1426 = vpop.f32.mrf.mxu0
    %v1427 = vadd.f32 %v1266, %v1426
    %1428 = vmatprep.mubr.f32.mxu0 %v980
    %1429 = vmatmul.mubr.f32.gmra.mxu0 %v979
    %v1430 = vpop.f32.mrf.mxu0
    %v1431 = vadd.f32 %v1270, %v1430
    %v1432 = vpop.f32.mrf.mxu0
    %v1433 = vadd.f32 %v1272, %v1432
    %1434 = vmatprep.mubr.f32.mxu0 %v984
    %1435 = vmatmul.mubr.f32.gmra.mxu0 %v983
    %v1436 = vpop.f32.mrf.mxu0
    %v1437 = vadd.f32 %v1276, %v1436
    %v1438 = vpop.f32.mrf.mxu0
    %v1439 = vadd.f32 %v1278, %v1438
    %1440 = vmatprep.mubr.f32.mxu0 %v988
    %1441 = vmatmul.mubr.f32.gmra.mxu0 %v987
    %v1442 = vpop.f32.mrf.mxu0
    %v1443 = vadd.f32 %v1282, %v1442
    %v1444 = vpop.f32.mrf.mxu0
    %v1445 = vadd.f32 %v1284, %v1444
    %1446 = vmatprep.mubr.f32.mxu0 %v992
    %1447 = vmatmul.mubr.f32.gmra.mxu0 %v991
    %v1448 = vpop.f32.mrf.mxu0
    %v1449 = vadd.f32 %v1288, %v1448
    %v1450 = vpop.f32.mrf.mxu0
    %v1451 = vadd.f32 %v1290, %v1450
    %1452 = vmatprep.mubr.f32.mxu0 %v996
    %1453 = vmatmul.mubr.f32.gmra.mxu0 %v995
    %v1454 = vpop.f32.mrf.mxu0
    %v1455 = vadd.f32 %v1294, %v1454
    %v1456 = vpop.f32.mrf.mxu0
    %v1457 = vadd.f32 %v1296, %v1456
    %1458 = vdwg.mxu0
    %v1459 = vmax.f32 %v1365, 0.0
    %v1460 = vmax.f32 %v1367, 0.0
    %v1461 = vmax.f32 %v1371, 0.0
    %v1462 = vmax.f32 %v1373, 0.0
    %v1463 = vmax.f32 %v1377, 0.0
    %v1464 = vmax.f32 %v1379, 0.0
    %v1465 = vmax.f32 %v1383, 0.0
    %v1466 = vmax.f32 %v1385, 0.0
    %v1467 = vmax.f32 %v1389, 0.0
    %v1468 = vmax.f32 %v1391, 0.0
    %v1469 = vmax.f32 %v1395, 0.0
    %v1470 = vmax.f32 %v1397, 0.0
    %v1471 = vmax.f32 %v1401, 0.0
    %v1472 = vmax.f32 %v1403, 0.0
    %v1473 = vmax.f32 %v1407, 0.0
    %v1474 = vmax.f32 %v1409, 0.0
    %v1475 = vmax.f32 %v1413, 0.0
    %v1476 = vmax.f32 %v1415, 0.0
    %v1477 = vmax.f32 %v1419, 0.0
    %v1478 = vmax.f32 %v1421, 0.0
    %v1479 = vmax.f32 %v1425, 0.0
    %v1480 = vmax.f32 %v1427, 0.0
    %v1481 = vmax.f32 %v1431, 0.0
    %v1482 = vmax.f32 %v1433, 0.0
    %v1483 = vmax.f32 %v1437, 0.0
    %v1484 = vmax.f32 %v1439, 0.0
    %v1485 = vmax.f32 %v1443, 0.0
    %v1486 = vmax.f32 %v1445, 0.0
    %v1487 = vmax.f32 %v1449, 0.0
    %v1488 = vmax.f32 %v1451, 0.0
    %v1489 = vmax.f32 %v1455, 0.0
    %v1490 = vmax.f32 %v1457, 0.0
    %v1491 = vmax.f32 %v1459, %v1460
    %v1492 = vmax.f32 %v1461, %v1462
    %v1493 = vmax.f32 %v1463, %v1464
    %v1494 = vmax.f32 %v1465, %v1466
    %v1495 = vmax.f32 %v1467, %v1468
    %v1496 = vmax.f32 %v1469, %v1470
    %v1497 = vmax.f32 %v1471, %v1472
    %v1498 = vmax.f32 %v1473, %v1474
    %v1499 = vmax.f32 %v1475, %v1476
    %v1500 = vmax.f32 %v1477, %v1478
    %v1501 = vmax.f32 %v1479, %v1480
    %v1502 = vmax.f32 %v1481, %v1482
    %v1503 = vmax.f32 %v1483, %v1484
    %v1504 = vmax.f32 %v1485, %v1486
    %v1505 = vmax.f32 %v1487, %v1488
    %v1506 = vmax.f32 %v1489, %v1490
    %v1507 = vld [vmem:[%s5 + $0x20] sm:$0xff]
    %v1508 = vld [vmem:[%s5 + $0x28] sm:$0xff]
    %v1509 = vld [vmem:[%s5 + $0x58] sm:$0xff]
    %v1510 = vld [vmem:[%s5 + $0x60] sm:$0xff]
    %v1511 = vld [vmem:[%s5 + $0x90] sm:$0xff]
    %v1512 = vld [vmem:[%s5 + $0x98] sm:$0xff]
    %v1513 = vld [vmem:[%s5 + $0xc8] sm:$0xff]
    %v1514 = vld [vmem:[%s5 + $0xd0] sm:$0xff]
    %v1515 = vld [vmem:[%s5 + $0x100] sm:$0xff]
    %v1516 = vld [vmem:[%s5 + $0x108] sm:$0xff]
    %v1517 = vld [vmem:[%s5 + $0x138] sm:$0xff]
    %v1518 = vld [vmem:[%s5 + $0x140] sm:$0xff]
    %v1519 = vld [vmem:[%s5 + $0x170] sm:$0xff]
    %v1520 = vld [vmem:[%s5 + $0x178] sm:$0xff]
    %v1521 = vld [vmem:[%s5 + $0x1a8] sm:$0xff]
    %v1522 = vld [vmem:[%s5 + $0x1b0] sm:$0xff]
    %v1523 = vld [vmem:[%s5 + $0x1e0] sm:$0xff]
    %v1524 = vld [vmem:[%s5 + $0x1e8] sm:$0xff]
    %v1525 = vld [vmem:[%s5 + $0x218] sm:$0xff]
    %v1526 = vld [vmem:[%s5 + $0x220] sm:$0xff]
    %v1527 = vld [vmem:[%s5 + $0x250] sm:$0xff]
    %v1528 = vld [vmem:[%s5 + $0x258] sm:$0xff]
    %v1529 = vld [vmem:[%s5 + $0x288] sm:$0xff]
    %v1530 = vld [vmem:[%s5 + $0x290] sm:$0xff]
    %v1531 = vld [vmem:[%s5 + $0x2c0] sm:$0xff]
    %v1532 = vld [vmem:[%s5 + $0x2c8] sm:$0xff]
    %v1533 = vld [vmem:[%s5 + $0x2f8] sm:$0xff]
    %v1534 = vld [vmem:[%s5 + $0x300] sm:$0xff]
    %v1535 = vld [vmem:[%s5 + $0x330] sm:$0xff]
    %v1536 = vld [vmem:[%s5 + $0x338] sm:$0xff]
    %v1537 = vld [vmem:[%s5 + $0x368] sm:$0xff]
    %v1538 = vld [vmem:[%s5 + $0x370] sm:$0xff]
    %v1539 = vld [vmem:[%s7 + $0xa] sm:$0x3]
    %v1541 = vlaneseq
    %v1542 = vshrl.u32 %v1541, 7
    %v1543 = vsub.s32 0, %v1542
    %v1544 = vrot.slane %v1539, %v1543
    %v1545 = vlaneseq
    %v1546 = vshrl.u32 %v1545, 7
    %v1547 = vsub.s32 1, %v1546
    %v1548 = vrot.slane %v1539, %v1547
    %1551 = vmatprep.subr.mxu0 %v1538
    %1552 = vmatpush1.msra.mxu0 %v1537
    %1553 = vmatprep.subr.mxu0 %v1536
    %1554 = vmatpush1.msra.mxu0 %v1535
    %1555 = vmatprep.subr.mxu0 %v1534
    %1556 = vmatpush1.msra.mxu0 %v1533
    %1557 = vmatprep.subr.mxu0 %v1532
    %1558 = vmatpush1.msra.mxu0 %v1531
    %1559 = vmatprep.subr.mxu0 %v1530
    %1560 = vmatpush1.msra.mxu0 %v1529
    %1561 = vmatprep.subr.mxu0 %v1528
    %1562 = vmatpush1.msra.mxu0 %v1527
    %1563 = vmatprep.subr.mxu0 %v1526
    %1564 = vmatpush1.msra.mxu0 %v1525
    %1565 = vmatprep.subr.mxu0 %v1524
    %1566 = vmatpush1.msra.mxu0 %v1523
    %1567 = vmatprep.subr.mxu0 %v1522
    %1568 = vmatpush1.msra.mxu0 %v1521
    %1569 = vmatprep.subr.mxu0 %v1520
    %1570 = vmatpush1.msra.mxu0 %v1519
    %1571 = vmatprep.subr.mxu0 %v1518
    %1572 = vmatpush1.msra.mxu0 %v1517
    %1573 = vmatprep.subr.mxu0 %v1516
    %1574 = vmatpush1.msra.mxu0 %v1515
    %1575 = vmatprep.subr.mxu0 %v1514
    %1576 = vmatpush1.msra.mxu0 %v1513
    %1577 = vmatprep.subr.mxu0 %v1512
    %1578 = vmatpush1.msra.mxu0 %v1511
    %1579 = vmatprep.subr.mxu0 %v1510
    %1580 = vmatpush1.msra.mxu0 %v1509
    %1581 = vmatprep.subr.mxu0 %v1508
    %1582 = vmatpush1.msra.mxu0 %v1507
    %1583 = vmatprep.subr.mxu0 0.0
    %1584 = vmatpush2.msra.mxu0 0.0
    %1585 = vmatprep.subr.mxu0 0.0
    %1586 = vmatpush2.msra.mxu0 0.0
    %1587 = vmatprep.subr.mxu0 0.0
    %1588 = vmatpush2.msra.mxu0 0.0
    %1589 = vmatprep.subr.mxu0 0.0
    %1590 = vmatpush2.msra.mxu0 0.0
    %1591 = vmatprep.subr.mxu0 0.0
    %1592 = vmatpush2.msra.mxu0 0.0
    %1593 = vmatprep.subr.mxu0 0.0
    %1594 = vmatpush2.msra.mxu0 0.0
    %1595 = vmatprep.subr.mxu0 0.0
    %1596 = vmatpush2.msra.mxu0 0.0
    %1597 = vmatprep.subr.mxu0 0.0
    %1598 = vmatpush2.msra.mxu0 0.0
    %1599 = vmatprep.subr.mxu0 0.0
    %1600 = vmatpush2.msra.mxu0 0.0
    %1601 = vmatprep.subr.mxu0 0.0
    %1602 = vmatpush2.msra.mxu0 0.0
    %1603 = vmatprep.subr.mxu0 0.0
    %1604 = vmatpush2.msra.mxu0 0.0
    %1605 = vmatprep.subr.mxu0 0.0
    %1606 = vmatpush2.msra.mxu0 0.0
    %1607 = vmatprep.subr.mxu0 0.0
    %1608 = vmatpush2.msra.mxu0 0.0
    %1609 = vmatprep.subr.mxu0 0.0
    %1610 = vmatpush2.msra.mxu0 0.0
    %1611 = vmatprep.subr.mxu0 0.0
    %1612 = vmatpush2.msra.mxu0 0.0
    %1613 = vmatprep.subr.mxu0 0.0
    %1614 = vmatpush2.msra.mxu0 0.0
    %1615 = vmatprep.mubr.f32.mxu0 0.0
    %1616 = vmatmul.mubr.f32.gmra.mxu0 %v1491
    %v1617 = vpop.f32.mrf.mxu0
    %v1618 = vadd.f32 %v1544, %v1617
    %v1619 = vpop.f32.mrf.mxu0
    %v1620 = vadd.f32 %v1548, %v1619
    %1621 = vmatprep.mubr.f32.mxu0 0.0
    %1622 = vmatmul.mubr.f32.gmra.mxu0 %v1492
    %v1623 = vpop.f32.mrf.mxu0
    %v1624 = vadd.f32 %v1544, %v1623
    %v1625 = vpop.f32.mrf.mxu0
    %v1626 = vadd.f32 %v1548, %v1625
    %1627 = vmatprep.mubr.f32.mxu0 0.0
    %1628 = vmatmul.mubr.f32.gmra.mxu0 %v1493
    %v1629 = vpop.f32.mrf.mxu0
    %v1630 = vadd.f32 %v1544, %v1629
    %v1631 = vpop.f32.mrf.mxu0
    %v1632 = vadd.f32 %v1548, %v1631
    %1633 = vmatprep.mubr.f32.mxu0 0.0
    %1634 = vmatmul.mubr.f32.gmra.mxu0 %v1494
    %v1635 = vpop.f32.mrf.mxu0
    %v1636 = vadd.f32 %v1544, %v1635
    %v1637 = vpop.f32.mrf.mxu0
    %v1638 = vadd.f32 %v1548, %v1637
    %1639 = vmatprep.mubr.f32.mxu0 0.0
    %1640 = vmatmul.mubr.f32.gmra.mxu0 %v1495
    %v1641 = vpop.f32.mrf.mxu0
    %v1642 = vadd.f32 %v1544, %v1641
    %v1643 = vpop.f32.mrf.mxu0
    %v1644 = vadd.f32 %v1548, %v1643
    %1645 = vmatprep.mubr.f32.mxu0 0.0
    %1646 = vmatmul.mubr.f32.gmra.mxu0 %v1496
    %v1647 = vpop.f32.mrf.mxu0
    %v1648 = vadd.f32 %v1544, %v1647
    %v1649 = vpop.f32.mrf.mxu0
    %v1650 = vadd.f32 %v1548, %v1649
    %1651 = vmatprep.mubr.f32.mxu0 0.0
    %1652 = vmatmul.mubr.f32.gmra.mxu0 %v1497
    %v1653 = vpop.f32.mrf.mxu0
    %v1654 = vadd.f32 %v1544, %v1653
    %v1655 = vpop.f32.mrf.mxu0
    %v1656 = vadd.f32 %v1548, %v1655
    %1657 = vmatprep.mubr.f32.mxu0 0.0
    %1658 = vmatmul.mubr.f32.gmra.mxu0 %v1498
    %v1659 = vpop.f32.mrf.mxu0
    %v1660 = vadd.f32 %v1544, %v1659
    %v1661 = vpop.f32.mrf.mxu0
    %v1662 = vadd.f32 %v1548, %v1661
    %1663 = vmatprep.mubr.f32.mxu0 0.0
    %1664 = vmatmul.mubr.f32.gmra.mxu0 %v1499
    %v1665 = vpop.f32.mrf.mxu0
    %v1666 = vadd.f32 %v1544, %v1665
    %v1667 = vpop.f32.mrf.mxu0
    %v1668 = vadd.f32 %v1548, %v1667
    %1669 = vmatprep.mubr.f32.mxu0 0.0
    %1670 = vmatmul.mubr.f32.gmra.mxu0 %v1500
    %v1671 = vpop.f32.mrf.mxu0
    %v1672 = vadd.f32 %v1544, %v1671
    %v1673 = vpop.f32.mrf.mxu0
    %v1674 = vadd.f32 %v1548, %v1673
    %1675 = vmatprep.mubr.f32.mxu0 0.0
    %1676 = vmatmul.mubr.f32.gmra.mxu0 %v1501
    %v1677 = vpop.f32.mrf.mxu0
    %v1678 = vadd.f32 %v1544, %v1677
    %v1679 = vpop.f32.mrf.mxu0
    %v1680 = vadd.f32 %v1548, %v1679
    %1681 = vmatprep.mubr.f32.mxu0 0.0
    %1682 = vmatmul.mubr.f32.gmra.mxu0 %v1502
    %v1683 = vpop.f32.mrf.mxu0
    %v1684 = vadd.f32 %v1544, %v1683
    %v1685 = vpop.f32.mrf.mxu0
    %v1686 = vadd.f32 %v1548, %v1685
    %1687 = vmatprep.mubr.f32.mxu0 0.0
    %1688 = vmatmul.mubr.f32.gmra.mxu0 %v1503
    %v1689 = vpop.f32.mrf.mxu0
    %v1690 = vadd.f32 %v1544, %v1689
    %v1691 = vpop.f32.mrf.mxu0
    %v1692 = vadd.f32 %v1548, %v1691
    %1693 = vmatprep.mubr.f32.mxu0 0.0
    %1694 = vmatmul.mubr.f32.gmra.mxu0 %v1504
    %v1695 = vpop.f32.mrf.mxu0
    %v1696 = vadd.f32 %v1544, %v1695
    %v1697 = vpop.f32.mrf.mxu0
    %v1698 = vadd.f32 %v1548, %v1697
    %1699 = vmatprep.mubr.f32.mxu0 0.0
    %1700 = vmatmul.mubr.f32.gmra.mxu0 %v1505
    %v1701 = vpop.f32.mrf.mxu0
    %v1702 = vadd.f32 %v1544, %v1701
    %v1703 = vpop.f32.mrf.mxu0
    %v1704 = vadd.f32 %v1548, %v1703
    %1705 = vmatprep.mubr.f32.mxu0 0.0
    %1706 = vmatmul.mubr.f32.gmra.mxu0 %v1506
    %v1707 = vpop.f32.mrf.mxu0
    %v1708 = vadd.f32 %v1544, %v1707
    %v1709 = vpop.f32.mrf.mxu0
    %v1710 = vadd.f32 %v1548, %v1709
    %1711 = vdwg.mxu0
    %v1712 = vmax.f32 %v1618, 0.0
    %v1713 = vmax.f32 %v1620, 0.0
    %v1714 = vmax.f32 %v1624, 0.0
    %v1715 = vmax.f32 %v1626, 0.0
    %v1716 = vmax.f32 %v1630, 0.0
    %v1717 = vmax.f32 %v1632, 0.0
    %v1718 = vmax.f32 %v1636, 0.0
    %v1719 = vmax.f32 %v1638, 0.0
    %v1720 = vmax.f32 %v1642, 0.0
    %v1721 = vmax.f32 %v1644, 0.0
    %v1722 = vmax.f32 %v1648, 0.0
    %v1723 = vmax.f32 %v1650, 0.0
    %v1724 = vmax.f32 %v1654, 0.0
    %v1725 = vmax.f32 %v1656, 0.0
    %v1726 = vmax.f32 %v1660, 0.0
    %v1727 = vmax.f32 %v1662, 0.0
    %v1728 = vmax.f32 %v1666, 0.0
    %v1729 = vmax.f32 %v1668, 0.0
    %v1730 = vmax.f32 %v1672, 0.0
    %v1731 = vmax.f32 %v1674, 0.0
    %v1732 = vmax.f32 %v1678, 0.0
    %v1733 = vmax.f32 %v1680, 0.0
    %v1734 = vmax.f32 %v1684, 0.0
    %v1735 = vmax.f32 %v1686, 0.0
    %v1736 = vmax.f32 %v1690, 0.0
    %v1737 = vmax.f32 %v1692, 0.0
    %v1738 = vmax.f32 %v1696, 0.0
    %v1739 = vmax.f32 %v1698, 0.0
    %v1740 = vmax.f32 %v1702, 0.0
    %v1741 = vmax.f32 %v1704, 0.0
    %v1742 = vmax.f32 %v1708, 0.0
    %v1743 = vmax.f32 %v1710, 0.0
    %v1744 = vmax.f32 %v1712, %v1713
    %v1745 = vmax.f32 %v1714, %v1715
    %v1746 = vmax.f32 %v1716, %v1717
    %v1747 = vmax.f32 %v1718, %v1719
    %v1748 = vmax.f32 %v1720, %v1721
    %v1749 = vmax.f32 %v1722, %v1723
    %v1750 = vmax.f32 %v1724, %v1725
    %v1751 = vmax.f32 %v1726, %v1727
    %v1752 = vmax.f32 %v1728, %v1729
    %v1753 = vmax.f32 %v1730, %v1731
    %v1754 = vmax.f32 %v1732, %v1733
    %v1755 = vmax.f32 %v1734, %v1735
    %v1756 = vmax.f32 %v1736, %v1737
    %v1757 = vmax.f32 %v1738, %v1739
    %v1758 = vmax.f32 %v1740, %v1741
    %v1759 = vmax.f32 %v1742, %v1743
    %v1760 = vld [vmem:[%s5 + $0x30] sm:$0xff]
    %v1761 = vld [vmem:[%s5 + $0x68] sm:$0xff]
    %v1762 = vld [vmem:[%s5 + $0xa0] sm:$0xff]
    %v1763 = vld [vmem:[%s5 + $0xd8] sm:$0xff]
    %v1764 = vld [vmem:[%s5 + $0x110] sm:$0xff]
    %v1765 = vld [vmem:[%s5 + $0x148] sm:$0xff]
    %v1766 = vld [vmem:[%s5 + $0x180] sm:$0xff]
    %v1767 = vld [vmem:[%s5 + $0x1b8] sm:$0xff]
    %v1768 = vld [vmem:[%s5 + $0x1f0] sm:$0xff]
    %v1769 = vld [vmem:[%s5 + $0x228] sm:$0xff]
    %v1770 = vld [vmem:[%s5 + $0x260] sm:$0xff]
    %v1771 = vld [vmem:[%s5 + $0x298] sm:$0xff]
    %v1772 = vld [vmem:[%s5 + $0x2d0] sm:$0xff]
    %v1773 = vld [vmem:[%s5 + $0x308] sm:$0xff]
    %v1774 = vld [vmem:[%s5 + $0x340] sm:$0xff]
    %v1775 = vld [vmem:[%s5 + $0x378] sm:$0xff]
    %v1776 = vld [vmem:[%s7 + $0xc] sm:$0x1]
    %v1778 = vlaneseq
    %v1779 = vshrl.u32 %v1778, 7
    %v1780 = vsub.s32 0, %v1779
    %v1781 = vrot.slane %v1776, %v1780
    %1783 = vmatprep.subr.mxu0 0.0
    %1784 = vmatpush1.msra.mxu0 %v1775
    %1785 = vmatprep.subr.mxu0 0.0
    %1786 = vmatpush1.msra.mxu0 %v1774
    %1787 = vmatprep.subr.mxu0 0.0
    %1788 = vmatpush1.msra.mxu0 %v1773
    %1789 = vmatprep.subr.mxu0 0.0
    %1790 = vmatpush1.msra.mxu0 %v1772
    %1791 = vmatprep.subr.mxu0 0.0
    %1792 = vmatpush1.msra.mxu0 %v1771
    %1793 = vmatprep.subr.mxu0 0.0
    %1794 = vmatpush1.msra.mxu0 %v1770
    %1795 = vmatprep.subr.mxu0 0.0
    %1796 = vmatpush1.msra.mxu0 %v1769
    %1797 = vmatprep.subr.mxu0 0.0
    %1798 = vmatpush1.msra.mxu0 %v1768
    %1799 = vmatprep.subr.mxu0 0.0
    %1800 = vmatpush1.msra.mxu0 %v1767
    %1801 = vmatprep.subr.mxu0 0.0
    %1802 = vmatpush1.msra.mxu0 %v1766
    %1803 = vmatprep.subr.mxu0 0.0
    %1804 = vmatpush1.msra.mxu0 %v1765
    %1805 = vmatprep.subr.mxu0 0.0
    %1806 = vmatpush1.msra.mxu0 %v1764
    %1807 = vmatprep.subr.mxu0 0.0
    %1808 = vmatpush1.msra.mxu0 %v1763
    %1809 = vmatprep.subr.mxu0 0.0
    %1810 = vmatpush1.msra.mxu0 %v1762
    %1811 = vmatprep.subr.mxu0 0.0
    %1812 = vmatpush1.msra.mxu0 %v1761
    %1813 = vmatprep.subr.mxu0 0.0
    %1814 = vmatpush1.msra.mxu0 %v1760
    %1815 = vmatprep.subr.mxu0 0.0
    %1816 = vmatpush2.msra.mxu0 0.0
    %1817 = vmatprep.subr.mxu0 0.0
    %1818 = vmatpush2.msra.mxu0 0.0
    %1819 = vmatprep.subr.mxu0 0.0
    %1820 = vmatpush2.msra.mxu0 0.0
    %1821 = vmatprep.subr.mxu0 0.0
    %1822 = vmatpush2.msra.mxu0 0.0
    %1823 = vmatprep.subr.mxu0 0.0
    %1824 = vmatpush2.msra.mxu0 0.0
    %1825 = vmatprep.subr.mxu0 0.0
    %1826 = vmatpush2.msra.mxu0 0.0
    %1827 = vmatprep.subr.mxu0 0.0
    %1828 = vmatpush2.msra.mxu0 0.0
    %1829 = vmatprep.subr.mxu0 0.0
    %1830 = vmatpush2.msra.mxu0 0.0
    %1831 = vmatprep.subr.mxu0 0.0
    %1832 = vmatpush2.msra.mxu0 0.0
    %1833 = vmatprep.subr.mxu0 0.0
    %1834 = vmatpush2.msra.mxu0 0.0
    %1835 = vmatprep.subr.mxu0 0.0
    %1836 = vmatpush2.msra.mxu0 0.0
    %1837 = vmatprep.subr.mxu0 0.0
    %1838 = vmatpush2.msra.mxu0 0.0
    %1839 = vmatprep.subr.mxu0 0.0
    %1840 = vmatpush2.msra.mxu0 0.0
    %1841 = vmatprep.subr.mxu0 0.0
    %1842 = vmatpush2.msra.mxu0 0.0
    %1843 = vmatprep.subr.mxu0 0.0
    %1844 = vmatpush2.msra.mxu0 0.0
    %1845 = vmatprep.subr.mxu0 0.0
    %1846 = vmatpush2.msra.mxu0 0.0
    %1847 = vmatprep.mubr.f32.mxu0 0.0
    %1848 = vmatmul.mubr.f32.gmra.mxu0 %v1744
    %v1849 = vpop.f32.mrf.mxu0
    %v1850 = vadd.f32 %v1781, %v1849
    %v1851 = vpop.f32.mrf.mxu0
    %1852 = vmatprep.mubr.f32.mxu0 0.0
    %1853 = vmatmul.mubr.f32.gmra.mxu0 %v1745
    %v1854 = vpop.f32.mrf.mxu0
    %v1855 = vadd.f32 %v1781, %v1854
    %v1856 = vpop.f32.mrf.mxu0
    %1857 = vmatprep.mubr.f32.mxu0 0.0
    %1858 = vmatmul.mubr.f32.gmra.mxu0 %v1746
    %v1859 = vpop.f32.mrf.mxu0
    %v1860 = vadd.f32 %v1781, %v1859
    %v1861 = vpop.f32.mrf.mxu0
    %1862 = vmatprep.mubr.f32.mxu0 0.0
    %1863 = vmatmul.mubr.f32.gmra.mxu0 %v1747
    %v1864 = vpop.f32.mrf.mxu0
    %v1865 = vadd.f32 %v1781, %v1864
    %v1866 = vpop.f32.mrf.mxu0
    %1867 = vmatprep.mubr.f32.mxu0 0.0
    %1868 = vmatmul.mubr.f32.gmra.mxu0 %v1748
    %v1869 = vpop.f32.mrf.mxu0
    %v1870 = vadd.f32 %v1781, %v1869
    %v1871 = vpop.f32.mrf.mxu0
    %1872 = vmatprep.mubr.f32.mxu0 0.0
    %1873 = vmatmul.mubr.f32.gmra.mxu0 %v1749
    %v1874 = vpop.f32.mrf.mxu0
    %v1875 = vadd.f32 %v1781, %v1874
    %v1876 = vpop.f32.mrf.mxu0
    %1877 = vmatprep.mubr.f32.mxu0 0.0
    %1878 = vmatmul.mubr.f32.gmra.mxu0 %v1750
    %v1879 = vpop.f32.mrf.mxu0
    %v1880 = vadd.f32 %v1781, %v1879
    %v1881 = vpop.f32.mrf.mxu0
    %1882 = vmatprep.mubr.f32.mxu0 0.0
    %1883 = vmatmul.mubr.f32.gmra.mxu0 %v1751
    %v1884 = vpop.f32.mrf.mxu0
    %v1885 = vadd.f32 %v1781, %v1884
    %v1886 = vpop.f32.mrf.mxu0
    %1887 = vmatprep.mubr.f32.mxu0 0.0
    %1888 = vmatmul.mubr.f32.gmra.mxu0 %v1752
    %v1889 = vpop.f32.mrf.mxu0
    %v1890 = vadd.f32 %v1781, %v1889
    %v1891 = vpop.f32.mrf.mxu0
    %1892 = vmatprep.mubr.f32.mxu0 0.0
    %1893 = vmatmul.mubr.f32.gmra.mxu0 %v1753
    %v1894 = vpop.f32.mrf.mxu0
    %v1895 = vadd.f32 %v1781, %v1894
    %v1896 = vpop.f32.mrf.mxu0
    %1897 = vmatprep.mubr.f32.mxu0 0.0
    %1898 = vmatmul.mubr.f32.gmra.mxu0 %v1754
    %v1899 = vpop.f32.mrf.mxu0
    %v1900 = vadd.f32 %v1781, %v1899
    %v1901 = vpop.f32.mrf.mxu0
    %1902 = vmatprep.mubr.f32.mxu0 0.0
    %1903 = vmatmul.mubr.f32.gmra.mxu0 %v1755
    %v1904 = vpop.f32.mrf.mxu0
    %v1905 = vadd.f32 %v1781, %v1904
    %v1906 = vpop.f32.mrf.mxu0
    %1907 = vmatprep.mubr.f32.mxu0 0.0
    %1908 = vmatmul.mubr.f32.gmra.mxu0 %v1756
    %v1909 = vpop.f32.mrf.mxu0
    %v1910 = vadd.f32 %v1781, %v1909
    %v1911 = vpop.f32.mrf.mxu0
    %1912 = vmatprep.mubr.f32.mxu0 0.0
    %1913 = vmatmul.mubr.f32.gmra.mxu0 %v1757
    %v1914 = vpop.f32.mrf.mxu0
    %v1915 = vadd.f32 %v1781, %v1914
    %v1916 = vpop.f32.mrf.mxu0
    %1917 = vmatprep.mubr.f32.mxu0 0.0
    %1918 = vmatmul.mubr.f32.gmra.mxu0 %v1758
    %v1919 = vpop.f32.mrf.mxu0
    %v1920 = vadd.f32 %v1781, %v1919
    %v1921 = vpop.f32.mrf.mxu0
    %1922 = vmatprep.mubr.f32.mxu0 0.0
    %1923 = vmatmul.mubr.f32.gmra.mxu0 %v1759
    %v1924 = vpop.f32.mrf.mxu0
    %v1925 = vadd.f32 %v1781, %v1924
    %v1926 = vpop.f32.mrf.mxu0
    %1927 = vdwg.mxu0
    %v1928 = vld [vmem:[%s1 + $0x8] sm:$0xff]
    %v1929 = vld [vmem:[%s7 + $0xd] sm:$0x1]
    %v1931 = vlaneseq
    %v1932 = vshrl.u32 %v1931, 7
    %v1933 = vsub.s32 0, %v1932
    %v1934 = vrot.slane %v1929, %v1933
    %vm1936 = vcmask 64512
    %v1938 = vsel %vm1936, %v1850, 0
    %v1941 = vsel %vm1936, %v1855, 0
    %v1944 = vsel %vm1936, %v1860, 0
    %v1947 = vsel %vm1936, %v1865, 0
    %v1950 = vsel %vm1936, %v1870, 0
    %v1953 = vsel %vm1936, %v1875, 0
    %v1956 = vsel %vm1936, %v1880, 0
    %v1959 = vsel %vm1936, %v1885, 0
    %v1962 = vsel %vm1936, %v1890, 0
    %v1965 = vsel %vm1936, %v1895, 0
    %v1968 = vsel %vm1936, %v1900, 0
    %v1971 = vsel %vm1936, %v1905, 0
    %v1974 = vsel %vm1936, %v1910, 0
    %v1977 = vsel %vm1936, %v1915, 0
    %v1980 = vsel %vm1936, %v1920, 0
    %v1983 = vsel %vm1936, %v1925, 0
    %1985 = vmatprep.subr.mxu0 0.0
    %1986 = vmatpush1.msra.mxu0 0.0
    %1987 = vmatprep.subr.mxu0 0.0
    %1988 = vmatpush1.msra.mxu0 0.0
    %1989 = vmatprep.subr.mxu0 0.0
    %1990 = vmatpush1.msra.mxu0 0.0
    %1991 = vmatprep.subr.mxu0 0.0
    %1992 = vmatpush1.msra.mxu0 0.0
    %1993 = vmatprep.subr.mxu0 0.0
    %1994 = vmatpush1.msra.mxu0 0.0
    %1995 = vmatprep.subr.mxu0 0.0
    %1996 = vmatpush1.msra.mxu0 0.0
    %1997 = vmatprep.subr.mxu0 0.0
    %1998 = vmatpush1.msra.mxu0 0.0
    %1999 = vmatprep.subr.mxu0 0.0
    %2000 = vmatpush1.msra.mxu0 0.0
    %2001 = vmatprep.subr.mxu0 0.0
    %2002 = vmatpush1.msra.mxu0 0.0
    %2003 = vmatprep.subr.mxu0 0.0
    %2004 = vmatpush1.msra.mxu0 0.0
    %2005 = vmatprep.subr.mxu0 0.0
    %2006 = vmatpush1.msra.mxu0 0.0
    %2007 = vmatprep.subr.mxu0 0.0
    %2008 = vmatpush1.msra.mxu0 0.0
    %2009 = vmatprep.subr.mxu0 0.0
    %2010 = vmatpush1.msra.mxu0 0.0
    %2011 = vmatprep.subr.mxu0 0.0
    %2012 = vmatpush1.msra.mxu0 0.0
    %2013 = vmatprep.subr.mxu0 0.0
    %2014 = vmatpush1.msra.mxu0 0.0
    %2015 = vmatprep.subr.mxu0 0.0
    %2016 = vmatpush1.msra.mxu0 %v1928
    %2017 = vmatprep.subr.mxu0 0.0
    %2018 = vmatpush2.msra.mxu0 0.0
    %2019 = vmatprep.subr.mxu0 0.0
    %2020 = vmatpush2.msra.mxu0 0.0
    %2021 = vmatprep.subr.mxu0 0.0
    %2022 = vmatpush2.msra.mxu0 0.0
    %2023 = vmatprep.subr.mxu0 0.0
    %2024 = vmatpush2.msra.mxu0 0.0
    %2025 = vmatprep.subr.mxu0 0.0
    %2026 = vmatpush2.msra.mxu0 0.0
    %2027 = vmatprep.subr.mxu0 0.0
    %2028 = vmatpush2.msra.mxu0 0.0
    %2029 = vmatprep.subr.mxu0 0.0
    %2030 = vmatpush2.msra.mxu0 0.0
    %2031 = vmatprep.subr.mxu0 0.0
    %2032 = vmatpush2.msra.mxu0 0.0
    %2033 = vmatprep.subr.mxu0 0.0
    %2034 = vmatpush2.msra.mxu0 0.0
    %2035 = vmatprep.subr.mxu0 0.0
    %2036 = vmatpush2.msra.mxu0 0.0
    %2037 = vmatprep.subr.mxu0 0.0
    %2038 = vmatpush2.msra.mxu0 0.0
    %2039 = vmatprep.subr.mxu0 0.0
    %2040 = vmatpush2.msra.mxu0 0.0
    %2041 = vmatprep.subr.mxu0 0.0
    %2042 = vmatpush2.msra.mxu0 0.0
    %2043 = vmatprep.subr.mxu0 0.0
    %2044 = vmatpush2.msra.mxu0 0.0
    %2045 = vmatprep.subr.mxu0 0.0
    %2046 = vmatpush2.msra.mxu0 0.0
    %2047 = vmatprep.subr.mxu0 0.0
    %2048 = vmatpush2.msra.mxu0 0.0
    %2049 = vmatprep.mubr.f32.mxu0 0.0
    %2050 = vmatmul.mubr.f32.gmra.mxu0 %v1938
    %v2051 = vpop.f32.mrf.mxu0
    %v2052 = vadd.f32 %v1934, %v2051
    %v2053 = vpop.f32.mrf.mxu0
    %2054 = vmatprep.mubr.f32.mxu0 0.0
    %2055 = vmatmul.mubr.f32.gmra.mxu0 %v1941
    %v2056 = vpop.f32.mrf.mxu0
    %v2057 = vadd.f32 %v1934, %v2056
    %v2058 = vpop.f32.mrf.mxu0
    %2059 = vmatprep.mubr.f32.mxu0 0.0
    %2060 = vmatmul.mubr.f32.gmra.mxu0 %v1944
    %v2061 = vpop.f32.mrf.mxu0
    %v2062 = vadd.f32 %v1934, %v2061
    %v2063 = vpop.f32.mrf.mxu0
    %2064 = vmatprep.mubr.f32.mxu0 0.0
    %2065 = vmatmul.mubr.f32.gmra.mxu0 %v1947
    %v2066 = vpop.f32.mrf.mxu0
    %v2067 = vadd.f32 %v1934, %v2066
    %v2068 = vpop.f32.mrf.mxu0
    %2069 = vmatprep.mubr.f32.mxu0 0.0
    %2070 = vmatmul.mubr.f32.gmra.mxu0 %v1950
    %v2071 = vpop.f32.mrf.mxu0
    %v2072 = vadd.f32 %v1934, %v2071
    %v2073 = vpop.f32.mrf.mxu0
    %2074 = vmatprep.mubr.f32.mxu0 0.0
    %2075 = vmatmul.mubr.f32.gmra.mxu0 %v1953
    %v2076 = vpop.f32.mrf.mxu0
    %v2077 = vadd.f32 %v1934, %v2076
    %v2078 = vpop.f32.mrf.mxu0
    %2079 = vmatprep.mubr.f32.mxu0 0.0
    %2080 = vmatmul.mubr.f32.gmra.mxu0 %v1956
    %v2081 = vpop.f32.mrf.mxu0
    %v2082 = vadd.f32 %v1934, %v2081
    %v2083 = vpop.f32.mrf.mxu0
    %2084 = vmatprep.mubr.f32.mxu0 0.0
    %2085 = vmatmul.mubr.f32.gmra.mxu0 %v1959
    %v2086 = vpop.f32.mrf.mxu0
    %v2087 = vadd.f32 %v1934, %v2086
    %v2088 = vpop.f32.mrf.mxu0
    %2089 = vmatprep.mubr.f32.mxu0 0.0
    %2090 = vmatmul.mubr.f32.gmra.mxu0 %v1962
    %v2091 = vpop.f32.mrf.mxu0
    %v2092 = vadd.f32 %v1934, %v2091
    %v2093 = vpop.f32.mrf.mxu0
    %2094 = vmatprep.mubr.f32.mxu0 0.0
    %2095 = vmatmul.mubr.f32.gmra.mxu0 %v1965
    %v2096 = vpop.f32.mrf.mxu0
    %v2097 = vadd.f32 %v1934, %v2096
    %v2098 = vpop.f32.mrf.mxu0
    %2099 = vmatprep.mubr.f32.mxu0 0.0
    %2100 = vmatmul.mubr.f32.gmra.mxu0 %v1968
    %v2101 = vpop.f32.mrf.mxu0
    %v2102 = vadd.f32 %v1934, %v2101
    %v2103 = vpop.f32.mrf.mxu0
    %2104 = vmatprep.mubr.f32.mxu0 0.0
    %2105 = vmatmul.mubr.f32.gmra.mxu0 %v1971
    %v2106 = vpop.f32.mrf.mxu0
    %v2107 = vadd.f32 %v1934, %v2106
    %v2108 = vpop.f32.mrf.mxu0
    %2109 = vmatprep.mubr.f32.mxu0 0.0
    %2110 = vmatmul.mubr.f32.gmra.mxu0 %v1974
    %v2111 = vpop.f32.mrf.mxu0
    %v2112 = vadd.f32 %v1934, %v2111
    %v2113 = vpop.f32.mrf.mxu0
    %2114 = vmatprep.mubr.f32.mxu0 0.0
    %2115 = vmatmul.mubr.f32.gmra.mxu0 %v1977
    %v2116 = vpop.f32.mrf.mxu0
    %v2117 = vadd.f32 %v1934, %v2116
    %v2118 = vpop.f32.mrf.mxu0
    %2119 = vmatprep.mubr.f32.mxu0 0.0
    %2120 = vmatmul.mubr.f32.gmra.mxu0 %v1980
    %v2121 = vpop.f32.mrf.mxu0
    %v2122 = vadd.f32 %v1934, %v2121
    %v2123 = vpop.f32.mrf.mxu0
    %2124 = vmatprep.mubr.f32.mxu0 0.0
    %2125 = vmatmul.mubr.f32.gmra.mxu0 %v1983
    %v2126 = vpop.f32.mrf.mxu0
    %v2127 = vadd.f32 %v1934, %v2126
    %v2128 = vpop.f32.mrf.mxu0
    %2129 = vdwg.mxu0
    %v2130 = vld [vmem:[%s4] sm:$0xff]
    %v2131 = vld [vmem:[%s4 + $0x8] sm:$0xff]
    %v2132 = vld [vmem:[%s4 + $0x10] sm:$0xff]
    %v2133 = vld [vmem:[%s4 + $0x18] sm:$0xff]
    %v2134 = vld [vmem:[%s7 + $0xe] sm:$0x1]
    %v2136 = vlaneseq
    %v2137 = vshrl.u32 %v2136, 7
    %v2138 = vsub.s32 0, %v2137
    %v2139 = vrot.slane %v2134, %v2138
    %vm2141 = vcmask 261120
    %v2143 = vsel %vm2141, %v2052, 0
    %v2146 = vsel %vm2141, %v2057, 0
    %v2149 = vsel %vm2141, %v2062, 0
    %v2152 = vsel %vm2141, %v2067, 0
    %v2155 = vsel %vm2141, %v2072, 0
    %v2158 = vsel %vm2141, %v2077, 0
    %v2161 = vsel %vm2141, %v2082, 0
    %v2164 = vsel %vm2141, %v2087, 0
    %v2167 = vsel %vm2141, %v2092, 0
    %v2170 = vsel %vm2141, %v2097, 0
    %v2173 = vsel %vm2141, %v2102, 0
    %v2176 = vsel %vm2141, %v2107, 0
    %v2179 = vsel %vm2141, %v2112, 0
    %v2182 = vsel %vm2141, %v2117, 0
    %v2185 = vsel %vm2141, %v2122, 0
    %v2188 = vsel %vm2141, %v2127, 0
    %2190 = vmatprep.subr.mxu0 0.0
    %2191 = vmatpush1.msra.mxu0 0.0
    %2192 = vmatprep.subr.mxu0 0.0
    %2193 = vmatpush1.msra.mxu0 0.0
    %2194 = vmatprep.subr.mxu0 0.0
    %2195 = vmatpush1.msra.mxu0 0.0
    %2196 = vmatprep.subr.mxu0 0.0
    %2197 = vmatpush1.msra.mxu0 0.0
    %2198 = vmatprep.subr.mxu0 0.0
    %2199 = vmatpush1.msra.mxu0 0.0
    %2200 = vmatprep.subr.mxu0 0.0
    %2201 = vmatpush1.msra.mxu0 0.0
    %2202 = vmatprep.subr.mxu0 0.0
    %2203 = vmatpush1.msra.mxu0 0.0
    %2204 = vmatprep.subr.mxu0 0.0
    %2205 = vmatpush1.msra.mxu0 0.0
    %2206 = vmatprep.subr.mxu0 0.0
    %2207 = vmatpush1.msra.mxu0 0.0
    %2208 = vmatprep.subr.mxu0 0.0
    %2209 = vmatpush1.msra.mxu0 0.0
    %2210 = vmatprep.subr.mxu0 0.0
    %2211 = vmatpush1.msra.mxu0 0.0
    %2212 = vmatprep.subr.mxu0 0.0
    %2213 = vmatpush1.msra.mxu0 0.0
    %2214 = vmatprep.subr.mxu0 0.0
    %2215 = vmatpush1.msra.mxu0 %v2133
    %2216 = vmatprep.subr.mxu0 0.0
    %2217 = vmatpush1.msra.mxu0 %v2132
    %2218 = vmatprep.subr.mxu0 0.0
    %2219 = vmatpush1.msra.mxu0 %v2131
    %2220 = vmatprep.subr.mxu0 0.0
    %2221 = vmatpush1.msra.mxu0 %v2130
    %2222 = vmatprep.subr.mxu0 0.0
    %2223 = vmatpush2.msra.mxu0 0.0
    %2224 = vmatprep.subr.mxu0 0.0
    %2225 = vmatpush2.msra.mxu0 0.0
    %2226 = vmatprep.subr.mxu0 0.0
    %2227 = vmatpush2.msra.mxu0 0.0
    %2228 = vmatprep.subr.mxu0 0.0
    %2229 = vmatpush2.msra.mxu0 0.0
    %2230 = vmatprep.subr.mxu0 0.0
    %2231 = vmatpush2.msra.mxu0 0.0
    %2232 = vmatprep.subr.mxu0 0.0
    %2233 = vmatpush2.msra.mxu0 0.0
    %2234 = vmatprep.subr.mxu0 0.0
    %2235 = vmatpush2.msra.mxu0 0.0
    %2236 = vmatprep.subr.mxu0 0.0
    %2237 = vmatpush2.msra.mxu0 0.0
    %2238 = vmatprep.subr.mxu0 0.0
    %2239 = vmatpush2.msra.mxu0 0.0
    %2240 = vmatprep.subr.mxu0 0.0
    %2241 = vmatpush2.msra.mxu0 0.0
    %2242 = vmatprep.subr.mxu0 0.0
    %2243 = vmatpush2.msra.mxu0 0.0
    %2244 = vmatprep.subr.mxu0 0.0
    %2245 = vmatpush2.msra.mxu0 0.0
    %2246 = vmatprep.subr.mxu0 0.0
    %2247 = vmatpush2.msra.mxu0 0.0
    %2248 = vmatprep.subr.mxu0 0.0
    %2249 = vmatpush2.msra.mxu0 0.0
    %2250 = vmatprep.subr.mxu0 0.0
    %2251 = vmatpush2.msra.mxu0 0.0
    %2252 = vmatprep.subr.mxu0 0.0
    %2253 = vmatpush2.msra.mxu0 0.0
    %2254 = vmatprep.mubr.f32.mxu0 0.0
    %2255 = vmatmul.mubr.f32.gmra.mxu0 %v2143
    %v2256 = vpop.f32.mrf.mxu0
    %v2257 = vadd.f32 %v2139, %v2256
    %v2258 = vpop.f32.mrf.mxu0
    %2259 = vmatprep.mubr.f32.mxu0 0.0
    %2260 = vmatmul.mubr.f32.gmra.mxu0 %v2146
    %v2261 = vpop.f32.mrf.mxu0
    %v2262 = vadd.f32 %v2139, %v2261
    %v2263 = vpop.f32.mrf.mxu0
    %2264 = vmatprep.mubr.f32.mxu0 0.0
    %2265 = vmatmul.mubr.f32.gmra.mxu0 %v2149
    %v2266 = vpop.f32.mrf.mxu0
    %v2267 = vadd.f32 %v2139, %v2266
    %v2268 = vpop.f32.mrf.mxu0
    %2269 = vmatprep.mubr.f32.mxu0 0.0
    %2270 = vmatmul.mubr.f32.gmra.mxu0 %v2152
    %v2271 = vpop.f32.mrf.mxu0
    %v2272 = vadd.f32 %v2139, %v2271
    %v2273 = vpop.f32.mrf.mxu0
    %2274 = vmatprep.mubr.f32.mxu0 0.0
    %2275 = vmatmul.mubr.f32.gmra.mxu0 %v2155
    %v2276 = vpop.f32.mrf.mxu0
    %v2277 = vadd.f32 %v2139, %v2276
    %v2278 = vpop.f32.mrf.mxu0
    %2279 = vmatprep.mubr.f32.mxu0 0.0
    %2280 = vmatmul.mubr.f32.gmra.mxu0 %v2158
    %v2281 = vpop.f32.mrf.mxu0
    %v2282 = vadd.f32 %v2139, %v2281
    %v2283 = vpop.f32.mrf.mxu0
    %2284 = vmatprep.mubr.f32.mxu0 0.0
    %2285 = vmatmul.mubr.f32.gmra.mxu0 %v2161
    %v2286 = vpop.f32.mrf.mxu0
    %v2287 = vadd.f32 %v2139, %v2286
    %v2288 = vpop.f32.mrf.mxu0
    %2289 = vmatprep.mubr.f32.mxu0 0.0
    %2290 = vmatmul.mubr.f32.gmra.mxu0 %v2164
    %v2291 = vpop.f32.mrf.mxu0
    %v2292 = vadd.f32 %v2139, %v2291
    %v2293 = vpop.f32.mrf.mxu0
    %2294 = vmatprep.mubr.f32.mxu0 0.0
    %2295 = vmatmul.mubr.f32.gmra.mxu0 %v2167
    %v2296 = vpop.f32.mrf.mxu0
    %v2297 = vadd.f32 %v2139, %v2296
    %v2298 = vpop.f32.mrf.mxu0
    %2299 = vmatprep.mubr.f32.mxu0 0.0
    %2300 = vmatmul.mubr.f32.gmra.mxu0 %v2170
    %v2301 = vpop.f32.mrf.mxu0
    %v2302 = vadd.f32 %v2139, %v2301
    %v2303 = vpop.f32.mrf.mxu0
    %2304 = vmatprep.mubr.f32.mxu0 0.0
    %2305 = vmatmul.mubr.f32.gmra.mxu0 %v2173
    %v2306 = vpop.f32.mrf.mxu0
    %v2307 = vadd.f32 %v2139, %v2306
    %v2308 = vpop.f32.mrf.mxu0
    %2309 = vmatprep.mubr.f32.mxu0 0.0
    %2310 = vmatmul.mubr.f32.gmra.mxu0 %v2176
    %v2311 = vpop.f32.mrf.mxu0
    %v2312 = vadd.f32 %v2139, %v2311
    %v2313 = vpop.f32.mrf.mxu0
    %2314 = vmatprep.mubr.f32.mxu0 0.0
    %2315 = vmatmul.mubr.f32.gmra.mxu0 %v2179
    %v2316 = vpop.f32.mrf.mxu0
    %v2317 = vadd.f32 %v2139, %v2316
    %v2318 = vpop.f32.mrf.mxu0
    %2319 = vmatprep.mubr.f32.mxu0 0.0
    %2320 = vmatmul.mubr.f32.gmra.mxu0 %v2182
    %v2321 = vpop.f32.mrf.mxu0
    %v2322 = vadd.f32 %v2139, %v2321
    %v2323 = vpop.f32.mrf.mxu0
    %2324 = vmatprep.mubr.f32.mxu0 0.0
    %2325 = vmatmul.mubr.f32.gmra.mxu0 %v2185
    %v2326 = vpop.f32.mrf.mxu0
    %v2327 = vadd.f32 %v2139, %v2326
    %v2328 = vpop.f32.mrf.mxu0
    %2329 = vmatprep.mubr.f32.mxu0 0.0
    %2330 = vmatmul.mubr.f32.gmra.mxu0 %v2188
    %v2331 = vpop.f32.mrf.mxu0
    %v2332 = vadd.f32 %v2139, %v2331
    %v2333 = vpop.f32.mrf.mxu0
    %2334 = vdwg.mxu0
    %v2335 = vmax.f32 %v2257, 0.0
    %v2336 = vmax.f32 %v2262, 0.0
    %v2337 = vmax.f32 %v2267, 0.0
    %v2338 = vmax.f32 %v2272, 0.0
    %v2339 = vmax.f32 %v2277, 0.0
    %v2340 = vmax.f32 %v2282, 0.0
    %v2341 = vmax.f32 %v2287, 0.0
    %v2342 = vmax.f32 %v2292, 0.0
    %v2343 = vmax.f32 %v2297, 0.0
    %v2344 = vmax.f32 %v2302, 0.0
    %v2345 = vmax.f32 %v2307, 0.0
    %v2346 = vmax.f32 %v2312, 0.0
    %v2347 = vmax.f32 %v2317, 0.0
    %v2348 = vmax.f32 %v2322, 0.0
    %v2349 = vmax.f32 %v2327, 0.0
    %v2350 = vmax.f32 %v2332, 0.0
    %v2351 = vld [vmem:[%s5] sm:$0xff]
    %v2352 = vld [vmem:[%s5 + $0x8] sm:$0xff]
    %v2353 = vld [vmem:[%s5 + $0x10] sm:$0xff]
    %v2354 = vld [vmem:[%s5 + $0x18] sm:$0xff]
    %v2355 = vld [vmem:[%s5 + $0x38] sm:$0xff]
    %v2356 = vld [vmem:[%s5 + $0x40] sm:$0xff]
    %v2357 = vld [vmem:[%s5 + $0x48] sm:$0xff]
    %v2358 = vld [vmem:[%s5 + $0x50] sm:$0xff]
    %v2359 = vld [vmem:[%s5 + $0x70] sm:$0xff]
    %v2360 = vld [vmem:[%s5 + $0x78] sm:$0xff]
    %v2361 = vld [vmem:[%s5 + $0x80] sm:$0xff]
    %v2362 = vld [vmem:[%s5 + $0x88] sm:$0xff]
    %v2363 = vld [vmem:[%s5 + $0xa8] sm:$0xff]
    %v2364 = vld [vmem:[%s5 + $0xb0] sm:$0xff]
    %v2365 = vld [vmem:[%s5 + $0xb8] sm:$0xff]
    %v2366 = vld [vmem:[%s5 + $0xc0] sm:$0xff]
    %v2367 = vld [vmem:[%s5 + $0xe0] sm:$0xff]
    %v2368 = vld [vmem:[%s5 + $0xe8] sm:$0xff]
    %v2369 = vld [vmem:[%s5 + $0xf0] sm:$0xff]
    %v2370 = vld [vmem:[%s5 + $0xf8] sm:$0xff]
    %v2371 = vld [vmem:[%s5 + $0x118] sm:$0xff]
    %v2372 = vld [vmem:[%s5 + $0x120] sm:$0xff]
    %v2373 = vld [vmem:[%s5 + $0x128] sm:$0xff]
    %v2374 = vld [vmem:[%s5 + $0x130] sm:$0xff]
    %v2375 = vld [vmem:[%s5 + $0x150] sm:$0xff]
    %v2376 = vld [vmem:[%s5 + $0x158] sm:$0xff]
    %v2377 = vld [vmem:[%s5 + $0x160] sm:$0xff]
    %v2378 = vld [vmem:[%s5 + $0x168] sm:$0xff]
    %v2379 = vld [vmem:[%s5 + $0x188] sm:$0xff]
    %v2380 = vld [vmem:[%s5 + $0x190] sm:$0xff]
    %v2381 = vld [vmem:[%s5 + $0x198] sm:$0xff]
    %v2382 = vld [vmem:[%s5 + $0x1a0] sm:$0xff]
    %v2383 = vld [vmem:[%s5 + $0x1c0] sm:$0xff]
    %v2384 = vld [vmem:[%s5 + $0x1c8] sm:$0xff]
    %v2385 = vld [vmem:[%s5 + $0x1d0] sm:$0xff]
    %v2386 = vld [vmem:[%s5 + $0x1d8] sm:$0xff]
    %v2387 = vld [vmem:[%s5 + $0x1f8] sm:$0xff]
    %v2388 = vld [vmem:[%s5 + $0x200] sm:$0xff]
    %v2389 = vld [vmem:[%s5 + $0x208] sm:$0xff]
    %v2390 = vld [vmem:[%s5 + $0x210] sm:$0xff]
    %v2391 = vld [vmem:[%s5 + $0x230] sm:$0xff]
    %v2392 = vld [vmem:[%s5 + $0x238] sm:$0xff]
    %v2393 = vld [vmem:[%s5 + $0x240] sm:$0xff]
    %v2394 = vld [vmem:[%s5 + $0x248] sm:$0xff]
    %v2395 = vld [vmem:[%s5 + $0x268] sm:$0xff]
    %v2396 = vld [vmem:[%s5 + $0x270] sm:$0xff]
    %v2397 = vld [vmem:[%s5 + $0x278] sm:$0xff]
    %v2398 = vld [vmem:[%s5 + $0x280] sm:$0xff]
    %v2399 = vld [vmem:[%s5 + $0x2a0] sm:$0xff]
    %v2400 = vld [vmem:[%s5 + $0x2a8] sm:$0xff]
    %v2401 = vld [vmem:[%s5 + $0x2b0] sm:$0xff]
    %v2402 = vld [vmem:[%s5 + $0x2b8] sm:$0xff]
    %v2403 = vld [vmem:[%s5 + $0x2d8] sm:$0xff]
    %v2404 = vld [vmem:[%s5 + $0x2e0] sm:$0xff]
    %v2405 = vld [vmem:[%s5 + $0x2e8] sm:$0xff]
    %v2406 = vld [vmem:[%s5 + $0x2f0] sm:$0xff]
    %v2407 = vld [vmem:[%s5 + $0x310] sm:$0xff]
    %v2408 = vld [vmem:[%s5 + $0x318] sm:$0xff]
    %v2409 = vld [vmem:[%s5 + $0x320] sm:$0xff]
    %v2410 = vld [vmem:[%s5 + $0x328] sm:$0xff]
    %v2411 = vld [vmem:[%s5 + $0x348] sm:$0xff]
    %v2412 = vld [vmem:[%s5 + $0x350] sm:$0xff]
    %v2413 = vld [vmem:[%s5 + $0x358] sm:$0xff]
    %v2414 = vld [vmem:[%s5 + $0x360] sm:$0xff]
    %v2415 = vld [vmem:[%s7 + $0xf] sm:$0xf]
    %v2417 = vlaneseq
    %v2418 = vshrl.u32 %v2417, 7
    %v2419 = vsub.s32 0, %v2418
    %v2420 = vrot.slane %v2415, %v2419
    %v2421 = vlaneseq
    %v2422 = vshrl.u32 %v2421, 7
    %v2423 = vsub.s32 1, %v2422
    %v2424 = vrot.slane %v2415, %v2423
    %v2425 = vlaneseq
    %v2426 = vshrl.u32 %v2425, 7
    %v2427 = vsub.s32 2, %v2426
    %v2428 = vrot.slane %v2415, %v2427
    %v2429 = vlaneseq
    %v2430 = vshrl.u32 %v2429, 7
    %v2431 = vsub.s32 3, %v2430
    %v2432 = vrot.slane %v2415, %v2431
    %2437 = vmatprep.subr.mxu0 %v2412
    %2438 = vmatpush1.msra.mxu0 %v2411
    %2439 = vmatprep.subr.mxu0 %v2408
    %2440 = vmatpush1.msra.mxu0 %v2407
    %2441 = vmatprep.subr.mxu0 %v2404
    %2442 = vmatpush1.msra.mxu0 %v2403
    %2443 = vmatprep.subr.mxu0 %v2400
    %2444 = vmatpush1.msra.mxu0 %v2399
    %2445 = vmatprep.subr.mxu0 %v2396
    %2446 = vmatpush1.msra.mxu0 %v2395
    %2447 = vmatprep.subr.mxu0 %v2392
    %2448 = vmatpush1.msra.mxu0 %v2391
    %2449 = vmatprep.subr.mxu0 %v2388
    %2450 = vmatpush1.msra.mxu0 %v2387
    %2451 = vmatprep.subr.mxu0 %v2384
    %2452 = vmatpush1.msra.mxu0 %v2383
    %2453 = vmatprep.subr.mxu0 %v2380
    %2454 = vmatpush1.msra.mxu0 %v2379
    %2455 = vmatprep.subr.mxu0 %v2376
    %2456 = vmatpush1.msra.mxu0 %v2375
    %2457 = vmatprep.subr.mxu0 %v2372
    %2458 = vmatpush1.msra.mxu0 %v2371
    %2459 = vmatprep.subr.mxu0 %v2368
    %2460 = vmatpush1.msra.mxu0 %v2367
    %2461 = vmatprep.subr.mxu0 %v2364
    %2462 = vmatpush1.msra.mxu0 %v2363
    %2463 = vmatprep.subr.mxu0 %v2360
    %2464 = vmatpush1.msra.mxu0 %v2359
    %2465 = vmatprep.subr.mxu0 %v2356
    %2466 = vmatpush1.msra.mxu0 %v2355
    %2467 = vmatprep.subr.mxu0 %v2352
    %2468 = vmatpush1.msra.mxu0 %v2351
    %2469 = vmatprep.subr.mxu0 0.0
    %2470 = vmatpush2.msra.mxu0 0.0
    %2471 = vmatprep.subr.mxu0 0.0
    %2472 = vmatpush2.msra.mxu0 0.0
    %2473 = vmatprep.subr.mxu0 0.0
    %2474 = vmatpush2.msra.mxu0 0.0
    %2475 = vmatprep.subr.mxu0 0.0
    %2476 = vmatpush2.msra.mxu0 0.0
    %2477 = vmatprep.subr.mxu0 0.0
    %2478 = vmatpush2.msra.mxu0 0.0
    %2479 = vmatprep.subr.mxu0 0.0
    %2480 = vmatpush2.msra.mxu0 0.0
    %2481 = vmatprep.subr.mxu0 0.0
    %2482 = vmatpush2.msra.mxu0 0.0
    %2483 = vmatprep.subr.mxu0 0.0
    %2484 = vmatpush2.msra.mxu0 0.0
    %2485 = vmatprep.subr.mxu0 0.0
    %2486 = vmatpush2.msra.mxu0 0.0
    %2487 = vmatprep.subr.mxu0 0.0
    %2488 = vmatpush2.msra.mxu0 0.0
    %2489 = vmatprep.subr.mxu0 0.0
    %2490 = vmatpush2.msra.mxu0 0.0
    %2491 = vmatprep.subr.mxu0 0.0
    %2492 = vmatpush2.msra.mxu0 0.0
    %2493 = vmatprep.subr.mxu0 0.0
    %2494 = vmatpush2.msra.mxu0 0.0
    %2495 = vmatprep.subr.mxu0 0.0
    %2496 = vmatpush2.msra.mxu0 0.0
    %2497 = vmatprep.subr.mxu0 0.0
    %2498 = vmatpush2.msra.mxu0 0.0
    %2499 = vmatprep.subr.mxu0 0.0
    %2500 = vmatpush2.msra.mxu0 0.0
    %2501 = vmatprep.mubr.f32.mxu0 0.0
    %2502 = vmatmul.mubr.f32.gmra.mxu0 %v2335
    %v2503 = vpop.f32.mrf.mxu0
    %v2504 = vadd.f32 %v2420, %v2503
    %v2505 = vpop.f32.mrf.mxu0
    %v2506 = vadd.f32 %v2424, %v2505
    %2507 = vmatprep.mubr.f32.mxu0 0.0
    %2508 = vmatmul.mubr.f32.gmra.mxu0 %v2336
    %v2509 = vpop.f32.mrf.mxu0
    %v2510 = vadd.f32 %v2420, %v2509
    %v2511 = vpop.f32.mrf.mxu0
    %v2512 = vadd.f32 %v2424, %v2511
    %2513 = vmatprep.mubr.f32.mxu0 0.0
    %2514 = vmatmul.mubr.f32.gmra.mxu0 %v2337
    %v2515 = vpop.f32.mrf.mxu0
    %v2516 = vadd.f32 %v2420, %v2515
    %v2517 = vpop.f32.mrf.mxu0
    %v2518 = vadd.f32 %v2424, %v2517
    %2519 = vmatprep.mubr.f32.mxu0 0.0
    %2520 = vmatmul.mubr.f32.gmra.mxu0 %v2338
    %v2521 = vpop.f32.mrf.mxu0
    %v2522 = vadd.f32 %v2420, %v2521
    %v2523 = vpop.f32.mrf.mxu0
    %v2524 = vadd.f32 %v2424, %v2523
    %2525 = vmatprep.mubr.f32.mxu0 0.0
    %2526 = vmatmul.mubr.f32.gmra.mxu0 %v2339
    %v2527 = vpop.f32.mrf.mxu0
    %v2528 = vadd.f32 %v2420, %v2527
    %v2529 = vpop.f32.mrf.mxu0
    %v2530 = vadd.f32 %v2424, %v2529
    %2531 = vmatprep.mubr.f32.mxu0 0.0
    %2532 = vmatmul.mubr.f32.gmra.mxu0 %v2340
    %v2533 = vpop.f32.mrf.mxu0
    %v2534 = vadd.f32 %v2420, %v2533
    %v2535 = vpop.f32.mrf.mxu0
    %v2536 = vadd.f32 %v2424, %v2535
    %2537 = vmatprep.mubr.f32.mxu0 0.0
    %2538 = vmatmul.mubr.f32.gmra.mxu0 %v2341
    %v2539 = vpop.f32.mrf.mxu0
    %v2540 = vadd.f32 %v2420, %v2539
    %v2541 = vpop.f32.mrf.mxu0
    %v2542 = vadd.f32 %v2424, %v2541
    %2543 = vmatprep.mubr.f32.mxu0 0.0
    %2544 = vmatmul.mubr.f32.gmra.mxu0 %v2342
    %v2545 = vpop.f32.mrf.mxu0
    %v2546 = vadd.f32 %v2420, %v2545
    %v2547 = vpop.f32.mrf.mxu0
    %v2548 = vadd.f32 %v2424, %v2547
    %2549 = vmatprep.mubr.f32.mxu0 0.0
    %2550 = vmatmul.mubr.f32.gmra.mxu0 %v2343
    %v2551 = vpop.f32.mrf.mxu0
    %v2552 = vadd.f32 %v2420, %v2551
    %v2553 = vpop.f32.mrf.mxu0
    %v2554 = vadd.f32 %v2424, %v2553
    %2555 = vmatprep.mubr.f32.mxu0 0.0
    %2556 = vmatmul.mubr.f32.gmra.mxu0 %v2344
    %v2557 = vpop.f32.mrf.mxu0
    %v2558 = vadd.f32 %v2420, %v2557
    %v2559 = vpop.f32.mrf.mxu0
    %v2560 = vadd.f32 %v2424, %v2559
    %2561 = vmatprep.mubr.f32.mxu0 0.0
    %2562 = vmatmul.mubr.f32.gmra.mxu0 %v2345
    %v2563 = vpop.f32.mrf.mxu0
    %v2564 = vadd.f32 %v2420, %v2563
    %v2565 = vpop.f32.mrf.mxu0
    %v2566 = vadd.f32 %v2424, %v2565
    %2567 = vmatprep.mubr.f32.mxu0 0.0
    %2568 = vmatmul.mubr.f32.gmra.mxu0 %v2346
    %v2569 = vpop.f32.mrf.mxu0
    %v2570 = vadd.f32 %v2420, %v2569
    %v2571 = vpop.f32.mrf.mxu0
    %v2572 = vadd.f32 %v2424, %v2571
    %2573 = vmatprep.mubr.f32.mxu0 0.0
    %2574 = vmatmul.mubr.f32.gmra.mxu0 %v2347
    %v2575 = vpop.f32.mrf.mxu0
    %v2576 = vadd.f32 %v2420, %v2575
    %v2577 = vpop.f32.mrf.mxu0
    %v2578 = vadd.f32 %v2424, %v2577
    %2579 = vmatprep.mubr.f32.mxu0 0.0
    %2580 = vmatmul.mubr.f32.gmra.mxu0 %v2348
    %v2581 = vpop.f32.mrf.mxu0
    %v2582 = vadd.f32 %v2420, %v2581
    %v2583 = vpop.f32.mrf.mxu0
    %v2584 = vadd.f32 %v2424, %v2583
    %2585 = vmatprep.mubr.f32.mxu0 0.0
    %2586 = vmatmul.mubr.f32.gmra.mxu0 %v2349
    %v2587 = vpop.f32.mrf.mxu0
    %v2588 = vadd.f32 %v2420, %v2587
    %v2589 = vpop.f32.mrf.mxu0
    %v2590 = vadd.f32 %v2424, %v2589
    %2591 = vmatprep.mubr.f32.mxu0 0.0
    %2592 = vmatmul.mubr.f32.gmra.mxu0 %v2350
    %v2593 = vpop.f32.mrf.mxu0
    %v2594 = vadd.f32 %v2420, %v2593
    %v2595 = vpop.f32.mrf.mxu0
    %v2596 = vadd.f32 %v2424, %v2595
    %2597 = vdwg.mxu0
    %2598 = vmatprep.subr.mxu0 %v2414
    %2599 = vmatpush1.msra.mxu0 %v2413
    %2600 = vmatprep.subr.mxu0 %v2410
    %2601 = vmatpush1.msra.mxu0 %v2409
    %2602 = vmatprep.subr.mxu0 %v2406
    %2603 = vmatpush1.msra.mxu0 %v2405
    %2604 = vmatprep.subr.mxu0 %v2402
    %2605 = vmatpush1.msra.mxu0 %v2401
    %2606 = vmatprep.subr.mxu0 %v2398
    %2607 = vmatpush1.msra.mxu0 %v2397
    %2608 = vmatprep.subr.mxu0 %v2394
    %2609 = vmatpush1.msra.mxu0 %v2393
    %2610 = vmatprep.subr.mxu0 %v2390
    %2611 = vmatpush1.msra.mxu0 %v2389
    %2612 = vmatprep.subr.mxu0 %v2386
    %2613 = vmatpush1.msra.mxu0 %v2385
    %2614 = vmatprep.subr.mxu0 %v2382
    %2615 = vmatpush1.msra.mxu0 %v2381
    %2616 = vmatprep.subr.mxu0 %v2378
    %2617 = vmatpush1.msra.mxu0 %v2377
    %2618 = vmatprep.subr.mxu0 %v2374
    %2619 = vmatpush1.msra.mxu0 %v2373
    %2620 = vmatprep.subr.mxu0 %v2370
    %2621 = vmatpush1.msra.mxu0 %v2369
    %2622 = vmatprep.subr.mxu0 %v2366
    %2623 = vmatpush1.msra.mxu0 %v2365
    %2624 = vmatprep.subr.mxu0 %v2362
    %2625 = vmatpush1.msra.mxu0 %v2361
    %2626 = vmatprep.subr.mxu0 %v2358
    %2627 = vmatpush1.msra.mxu0 %v2357
    %2628 = vmatprep.subr.mxu0 %v2354
    %2629 = vmatpush1.msra.mxu0 %v2353
    %2630 = vmatprep.subr.mxu0 0.0
    %2631 = vmatpush2.msra.mxu0 0.0
    %2632 = vmatprep.subr.mxu0 0.0
    %2633 = vmatpush2.msra.mxu0 0.0
    %2634 = vmatprep.subr.mxu0 0.0
    %2635 = vmatpush2.msra.mxu0 0.0
    %2636 = vmatprep.subr.mxu0 0.0
    %2637 = vmatpush2.msra.mxu0 0.0
    %2638 = vmatprep.subr.mxu0 0.0
    %2639 = vmatpush2.msra.mxu0 0.0
    %2640 = vmatprep.subr.mxu0 0.0
    %2641 = vmatpush2.msra.mxu0 0.0
    %2642 = vmatprep.subr.mxu0 0.0
    %2643 = vmatpush2.msra.mxu0 0.0
    %2644 = vmatprep.subr.mxu0 0.0
    %2645 = vmatpush2.msra.mxu0 0.0
    %2646 = vmatprep.subr.mxu0 0.0
    %2647 = vmatpush2.msra.mxu0 0.0
    %2648 = vmatprep.subr.mxu0 0.0
    %2649 = vmatpush2.msra.mxu0 0.0
    %2650 = vmatprep.subr.mxu0 0.0
    %2651 = vmatpush2.msra.mxu0 0.0
    %2652 = vmatprep.subr.mxu0 0.0
    %2653 = vmatpush2.msra.mxu0 0.0
    %2654 = vmatprep.subr.mxu0 0.0
    %2655 = vmatpush2.msra.mxu0 0.0
    %2656 = vmatprep.subr.mxu0 0.0
    %2657 = vmatpush2.msra.mxu0 0.0
    %2658 = vmatprep.subr.mxu0 0.0
    %2659 = vmatpush2.msra.mxu0 0.0
    %2660 = vmatprep.subr.mxu0 0.0
    %2661 = vmatpush2.msra.mxu0 0.0
    %2662 = vmatprep.mubr.f32.mxu0 0.0
    %2663 = vmatmul.mubr.f32.gmra.mxu0 %v2335
    %v2664 = vpop.f32.mrf.mxu0
    %v2665 = vadd.f32 %v2428, %v2664
    %v2666 = vpop.f32.mrf.mxu0
    %v2667 = vadd.f32 %v2432, %v2666
    %2668 = vmatprep.mubr.f32.mxu0 0.0
    %2669 = vmatmul.mubr.f32.gmra.mxu0 %v2336
    %v2670 = vpop.f32.mrf.mxu0
    %v2671 = vadd.f32 %v2428, %v2670
    %v2672 = vpop.f32.mrf.mxu0
    %v2673 = vadd.f32 %v2432, %v2672
    %2674 = vmatprep.mubr.f32.mxu0 0.0
    %2675 = vmatmul.mubr.f32.gmra.mxu0 %v2337
    %v2676 = vpop.f32.mrf.mxu0
    %v2677 = vadd.f32 %v2428, %v2676
    %v2678 = vpop.f32.mrf.mxu0
    %v2679 = vadd.f32 %v2432, %v2678
    %2680 = vmatprep.mubr.f32.mxu0 0.0
    %2681 = vmatmul.mubr.f32.gmra.mxu0 %v2338
    %v2682 = vpop.f32.mrf.mxu0
    %v2683 = vadd.f32 %v2428, %v2682
    %v2684 = vpop.f32.mrf.mxu0
    %v2685 = vadd.f32 %v2432, %v2684
    %2686 = vmatprep.mubr.f32.mxu0 0.0
    %2687 = vmatmul.mubr.f32.gmra.mxu0 %v2339
    %v2688 = vpop.f32.mrf.mxu0
    %v2689 = vadd.f32 %v2428, %v2688
    %v2690 = vpop.f32.mrf.mxu0
    %v2691 = vadd.f32 %v2432, %v2690
    %2692 = vmatprep.mubr.f32.mxu0 0.0
    %2693 = vmatmul.mubr.f32.gmra.mxu0 %v2340
    %v2694 = vpop.f32.mrf.mxu0
    %v2695 = vadd.f32 %v2428, %v2694
    %v2696 = vpop.f32.mrf.mxu0
    %v2697 = vadd.f32 %v2432, %v2696
    %2698 = vmatprep.mubr.f32.mxu0 0.0
    %2699 = vmatmul.mubr.f32.gmra.mxu0 %v2341
    %v2700 = vpop.f32.mrf.mxu0
    %v2701 = vadd.f32 %v2428, %v2700
    %v2702 = vpop.f32.mrf.mxu0
    %v2703 = vadd.f32 %v2432, %v2702
    %2704 = vmatprep.mubr.f32.mxu0 0.0
    %2705 = vmatmul.mubr.f32.gmra.mxu0 %v2342
    %v2706 = vpop.f32.mrf.mxu0
    %v2707 = vadd.f32 %v2428, %v2706
    %v2708 = vpop.f32.mrf.mxu0
    %v2709 = vadd.f32 %v2432, %v2708
    %2710 = vmatprep.mubr.f32.mxu0 0.0
    %2711 = vmatmul.mubr.f32.gmra.mxu0 %v2343
    %v2712 = vpop.f32.mrf.mxu0
    %v2713 = vadd.f32 %v2428, %v2712
    %v2714 = vpop.f32.mrf.mxu0
    %v2715 = vadd.f32 %v2432, %v2714
    %2716 = vmatprep.mubr.f32.mxu0 0.0
    %2717 = vmatmul.mubr.f32.gmra.mxu0 %v2344
    %v2718 = vpop.f32.mrf.mxu0
    %v2719 = vadd.f32 %v2428, %v2718
    %v2720 = vpop.f32.mrf.mxu0
    %v2721 = vadd.f32 %v2432, %v2720
    %2722 = vmatprep.mubr.f32.mxu0 0.0
    %2723 = vmatmul.mubr.f32.gmra.mxu0 %v2345
    %v2724 = vpop.f32.mrf.mxu0
    %v2725 = vadd.f32 %v2428, %v2724
    %v2726 = vpop.f32.mrf.mxu0
    %v2727 = vadd.f32 %v2432, %v2726
    %2728 = vmatprep.mubr.f32.mxu0 0.0
    %2729 = vmatmul.mubr.f32.gmra.mxu0 %v2346
    %v2730 = vpop.f32.mrf.mxu0
    %v2731 = vadd.f32 %v2428, %v2730
    %v2732 = vpop.f32.mrf.mxu0
    %v2733 = vadd.f32 %v2432, %v2732
    %2734 = vmatprep.mubr.f32.mxu0 0.0
    %2735 = vmatmul.mubr.f32.gmra.mxu0 %v2347
    %v2736 = vpop.f32.mrf.mxu0
    %v2737 = vadd.f32 %v2428, %v2736
    %v2738 = vpop.f32.mrf.mxu0
    %v2739 = vadd.f32 %v2432, %v2738
    %2740 = vmatprep.mubr.f32.mxu0 0.0
    %2741 = vmatmul.mubr.f32.gmra.mxu0 %v2348
    %v2742 = vpop.f32.mrf.mxu0
    %v2743 = vadd.f32 %v2428, %v2742
    %v2744 = vpop.f32.mrf.mxu0
    %v2745 = vadd.f32 %v2432, %v2744
    %2746 = vmatprep.mubr.f32.mxu0 0.0
    %2747 = vmatmul.mubr.f32.gmra.mxu0 %v2349
    %v2748 = vpop.f32.mrf.mxu0
    %v2749 = vadd.f32 %v2428, %v2748
    %v2750 = vpop.f32.mrf.mxu0
    %v2751 = vadd.f32 %v2432, %v2750
    %2752 = vmatprep.mubr.f32.mxu0 0.0
    %2753 = vmatmul.mubr.f32.gmra.mxu0 %v2350
    %v2754 = vpop.f32.mrf.mxu0
    %v2755 = vadd.f32 %v2428, %v2754
    %v2756 = vpop.f32.mrf.mxu0
    %v2757 = vadd.f32 %v2432, %v2756
    %2758 = vdwg.mxu0
    %v2759 = vmax.f32 %v2504, 0.0
    %v2760 = vmax.f32 %v2506, 0.0
    %v2761 = vmax.f32 %v2665, 0.0
    %v2762 = vmax.f32 %v2667, 0.0
    %v2763 = vmax.f32 %v2510, 0.0
    %v2764 = vmax.f32 %v2512, 0.0
    %v2765 = vmax.f32 %v2671, 0.0
    %v2766 = vmax.f32 %v2673, 0.0
    %v2767 = vmax.f32 %v2516, 0.0
    %v2768 = vmax.f32 %v2518, 0.0
    %v2769 = vmax.f32 %v2677, 0.0
    %v2770 = vmax.f32 %v2679, 0.0
    %v2771 = vmax.f32 %v2522, 0.0
    %v2772 = vmax.f32 %v2524, 0.0
    %v2773 = vmax.f32 %v2683, 0.0
    %v2774 = vmax.f32 %v2685, 0.0
    %v2775 = vmax.f32 %v2528, 0.0
    %v2776 = vmax.f32 %v2530, 0.0
    %v2777 = vmax.f32 %v2689, 0.0
    %v2778 = vmax.f32 %v2691, 0.0
    %v2779 = vmax.f32 %v2534, 0.0
    %v2780 = vmax.f32 %v2536, 0.0
    %v2781 = vmax.f32 %v2695, 0.0
    %v2782 = vmax.f32 %v2697, 0.0
    %v2783 = vmax.f32 %v2540, 0.0
    %v2784 = vmax.f32 %v2542, 0.0
    %v2785 = vmax.f32 %v2701, 0.0
    %v2786 = vmax.f32 %v2703, 0.0
    %v2787 = vmax.f32 %v2546, 0.0
    %v2788 = vmax.f32 %v2548, 0.0
    %v2789 = vmax.f32 %v2707, 0.0
    %v2790 = vmax.f32 %v2709, 0.0
    %v2791 = vmax.f32 %v2552, 0.0
    %v2792 = vmax.f32 %v2554, 0.0
    %v2793 = vmax.f32 %v2713, 0.0
    %v2794 = vmax.f32 %v2715, 0.0
    %v2795 = vmax.f32 %v2558, 0.0
    %v2796 = vmax.f32 %v2560, 0.0
    %v2797 = vmax.f32 %v2719, 0.0
    %v2798 = vmax.f32 %v2721, 0.0
    %v2799 = vmax.f32 %v2564, 0.0
    %v2800 = vmax.f32 %v2566, 0.0
    %v2801 = vmax.f32 %v2725, 0.0
    %v2802 = vmax.f32 %v2727, 0.0
    %v2803 = vmax.f32 %v2570, 0.0
    %v2804 = vmax.f32 %v2572, 0.0
    %v2805 = vmax.f32 %v2731, 0.0
    %v2806 = vmax.f32 %v2733, 0.0
    %v2807 = vmax.f32 %v2576, 0.0
    %v2808 = vmax.f32 %v2578, 0.0
    %v2809 = vmax.f32 %v2737, 0.0
    %v2810 = vmax.f32 %v2739, 0.0
    %v2811 = vmax.f32 %v2582, 0.0
    %v2812 = vmax.f32 %v2584, 0.0
    %v2813 = vmax.f32 %v2743, 0.0
    %v2814 = vmax.f32 %v2745, 0.0
    %v2815 = vmax.f32 %v2588, 0.0
    %v2816 = vmax.f32 %v2590, 0.0
    %v2817 = vmax.f32 %v2749, 0.0
    %v2818 = vmax.f32 %v2751, 0.0
    %v2819 = vmax.f32 %v2594, 0.0
    %v2820 = vmax.f32 %v2596, 0.0
    %v2821 = vmax.f32 %v2755, 0.0
    %v2822 = vmax.f32 %v2757, 0.0
    %v2823 = vld [vmem:[%s6 + $0x10] sm:$0xff]
    %v2824 = vld [vmem:[%s6 + $0x28] sm:$0xff]
    %v2825 = vld [vmem:[%s6 + $0x40] sm:$0xff]
    %v2826 = vld [vmem:[%s6 + $0x58] sm:$0xff]
    %v2827 = vld [vmem:[%s6 + $0x70] sm:$0xff]
    %v2828 = vld [vmem:[%s6 + $0x88] sm:$0xff]
    %v2829 = vld [vmem:[%s6 + $0xa0] sm:$0xff]
    %v2830 = vld [vmem:[%s6 + $0xb8] sm:$0xff]
    %v2831 = vld [vmem:[%s6 + $0xd0] sm:$0xff]
    %v2832 = vld [vmem:[%s6 + $0xe8] sm:$0xff]
    %v2833 = vld [vmem:[%s6 + $0x100] sm:$0xff]
    %v2834 = vld [vmem:[%s6 + $0x118] sm:$0xff]
    %v2835 = vld [vmem:[%s6 + $0x130] sm:$0xff]
    %v2836 = vld [vmem:[%s6 + $0x148] sm:$0xff]
    %v2837 = vld [vmem:[%s6 + $0x160] sm:$0xff]
    %v2838 = vld [vmem:[%s6 + $0x178] sm:$0xff]
    %v2839 = vld [vmem:[%s6 + $0x190] sm:$0xff]
    %v2840 = vld [vmem:[%s6 + $0x1a8] sm:$0xff]
    %v2841 = vld [vmem:[%s6 + $0x1c0] sm:$0xff]
    %v2842 = vld [vmem:[%s6 + $0x1d8] sm:$0xff]
    %v2843 = vld [vmem:[%s6 + $0x1f0] sm:$0xff]
    %v2844 = vld [vmem:[%s6 + $0x208] sm:$0xff]
    %v2845 = vld [vmem:[%s6 + $0x220] sm:$0xff]
    %v2846 = vld [vmem:[%s6 + $0x238] sm:$0xff]
    %v2847 = vld [vmem:[%s6 + $0x250] sm:$0xff]
    %v2848 = vld [vmem:[%s6 + $0x268] sm:$0xff]
    %v2849 = vld [vmem:[%s6 + $0x280] sm:$0xff]
    %v2850 = vld [vmem:[%s6 + $0x298] sm:$0xff]
    %v2851 = vld [vmem:[%s6 + $0x2b0] sm:$0xff]
    %v2852 = vld [vmem:[%s6 + $0x2c8] sm:$0xff]
    %v2853 = vld [vmem:[%s6 + $0x2e0] sm:$0xff]
    %v2854 = vld [vmem:[%s6 + $0x2f8] sm:$0xff]
    %v2855 = vld [vmem:[%s6 + $0x310] sm:$0xff]
    %v2856 = vld [vmem:[%s6 + $0x328] sm:$0xff]
    %v2857 = vld [vmem:[%s6 + $0x340] sm:$0xff]
    %v2858 = vld [vmem:[%s6 + $0x358] sm:$0xff]
    %v2859 = vld [vmem:[%s6 + $0x370] sm:$0xff]
    %v2860 = vld [vmem:[%s6 + $0x388] sm:$0xff]
    %v2861 = vld [vmem:[%s6 + $0x3a0] sm:$0xff]
    %v2862 = vld [vmem:[%s6 + $0x3b8] sm:$0xff]
    %v2863 = vld [vmem:[%s6 + $0x3d0] sm:$0xff]
    %v2864 = vld [vmem:[%s6 + $0x3e8] sm:$0xff]
    %v2865 = vld [vmem:[%s6 + $0x400] sm:$0xff]
    %v2866 = vld [vmem:[%s6 + $0x418] sm:$0xff]
    %v2867 = vld [vmem:[%s6 + $0x430] sm:$0xff]
    %v2868 = vld [vmem:[%s6 + $0x448] sm:$0xff]
    %v2869 = vld [vmem:[%s6 + $0x460] sm:$0xff]
    %v2870 = vld [vmem:[%s6 + $0x478] sm:$0xff]
    %v2871 = vld [vmem:[%s6 + $0x490] sm:$0xff]
    %v2872 = vld [vmem:[%s6 + $0x4a8] sm:$0xff]
    %v2873 = vld [vmem:[%s6 + $0x4c0] sm:$0xff]
    %v2874 = vld [vmem:[%s6 + $0x4d8] sm:$0xff]
    %v2875 = vld [vmem:[%s6 + $0x4f0] sm:$0xff]
    %v2876 = vld [vmem:[%s6 + $0x508] sm:$0xff]
    %v2877 = vld [vmem:[%s6 + $0x520] sm:$0xff]
    %v2878 = vld [vmem:[%s6 + $0x538] sm:$0xff]
    %v2879 = vld [vmem:[%s6 + $0x550] sm:$0xff]
    %v2880 = vld [vmem:[%s6 + $0x568] sm:$0xff]
    %v2881 = vld [vmem:[%s6 + $0x580] sm:$0xff]
    %v2882 = vld [vmem:[%s6 + $0x598] sm:$0xff]
    %v2883 = vld [vmem:[%s6 + $0x5b0] sm:$0xff]
    %v2884 = vld [vmem:[%s6 + $0x5c8] sm:$0xff]
    %v2885 = vld [vmem:[%s6 + $0x5e0] sm:$0xff]
    %v2886 = vld [vmem:[%s6 + $0x5f8] sm:$0xff]
    %v2887 = vld [vmem:[%s7 + $0x13] sm:$0x1]
    %v2889 = vlaneseq
    %v2890 = vshrl.u32 %v2889, 7
    %v2891 = vsub.s32 0, %v2890
    %v2892 = vrot.slane %v2887, %v2891
    %2894 = vmatprep.subr.mxu0 0.0
    %2895 = vmatpush1.msra.mxu0 %v2838
    %2896 = vmatprep.subr.mxu0 0.0
    %2897 = vmatpush1.msra.mxu0 %v2837
    %2898 = vmatprep.subr.mxu0 0.0
    %2899 = vmatpush1.msra.mxu0 %v2836
    %2900 = vmatprep.subr.mxu0 0.0
    %2901 = vmatpush1.msra.mxu0 %v2835
    %2902 = vmatprep.subr.mxu0 0.0
    %2903 = vmatpush1.msra.mxu0 %v2834
    %2904 = vmatprep.subr.mxu0 0.0
    %2905 = vmatpush1.msra.mxu0 %v2833
    %2906 = vmatprep.subr.mxu0 0.0
    %2907 = vmatpush1.msra.mxu0 %v2832
    %2908 = vmatprep.subr.mxu0 0.0
    %2909 = vmatpush1.msra.mxu0 %v2831
    %2910 = vmatprep.subr.mxu0 0.0
    %2911 = vmatpush1.msra.mxu0 %v2830
    %2912 = vmatprep.subr.mxu0 0.0
    %2913 = vmatpush1.msra.mxu0 %v2829
    %2914 = vmatprep.subr.mxu0 0.0
    %2915 = vmatpush1.msra.mxu0 %v2828
    %2916 = vmatprep.subr.mxu0 0.0
    %2917 = vmatpush1.msra.mxu0 %v2827
    %2918 = vmatprep.subr.mxu0 0.0
    %2919 = vmatpush1.msra.mxu0 %v2826
    %2920 = vmatprep.subr.mxu0 0.0
    %2921 = vmatpush1.msra.mxu0 %v2825
    %2922 = vmatprep.subr.mxu0 0.0
    %2923 = vmatpush1.msra.mxu0 %v2824
    %2924 = vmatprep.subr.mxu0 0.0
    %2925 = vmatpush1.msra.mxu0 %v2823
    %2926 = vmatprep.subr.mxu0 0.0
    %2927 = vmatpush2.msra.mxu0 %v2854
    %2928 = vmatprep.subr.mxu0 0.0
    %2929 = vmatpush2.msra.mxu0 %v2853
    %2930 = vmatprep.subr.mxu0 0.0
    %2931 = vmatpush2.msra.mxu0 %v2852
    %2932 = vmatprep.subr.mxu0 0.0
    %2933 = vmatpush2.msra.mxu0 %v2851
    %2934 = vmatprep.subr.mxu0 0.0
    %2935 = vmatpush2.msra.mxu0 %v2850
    %2936 = vmatprep.subr.mxu0 0.0
    %2937 = vmatpush2.msra.mxu0 %v2849
    %2938 = vmatprep.subr.mxu0 0.0
    %2939 = vmatpush2.msra.mxu0 %v2848
    %2940 = vmatprep.subr.mxu0 0.0
    %2941 = vmatpush2.msra.mxu0 %v2847
    %2942 = vmatprep.subr.mxu0 0.0
    %2943 = vmatpush2.msra.mxu0 %v2846
    %2944 = vmatprep.subr.mxu0 0.0
    %2945 = vmatpush2.msra.mxu0 %v2845
    %2946 = vmatprep.subr.mxu0 0.0
    %2947 = vmatpush2.msra.mxu0 %v2844
    %2948 = vmatprep.subr.mxu0 0.0
    %2949 = vmatpush2.msra.mxu0 %v2843
    %2950 = vmatprep.subr.mxu0 0.0
    %2951 = vmatpush2.msra.mxu0 %v2842
    %2952 = vmatprep.subr.mxu0 0.0
    %2953 = vmatpush2.msra.mxu0 %v2841
    %2954 = vmatprep.subr.mxu0 0.0
    %2955 = vmatpush2.msra.mxu0 %v2840
    %2956 = vmatprep.subr.mxu0 0.0
    %2957 = vmatpush2.msra.mxu0 %v2839
    %2958 = vmatprep.mubr.f32.mxu0 %v2760
    %2959 = vmatmul.mubr.f32.gmra.mxu0 %v2759
    %v2960 = vpop.f32.mrf.mxu0
    %v2961 = vadd.f32 %v2892, %v2960
    %v2962 = vpop.f32.mrf.mxu0
    %2963 = vmatprep.mubr.f32.mxu0 %v2764
    %2964 = vmatmul.mubr.f32.gmra.mxu0 %v2763
    %v2965 = vpop.f32.mrf.mxu0
    %v2966 = vadd.f32 %v2892, %v2965
    %v2967 = vpop.f32.mrf.mxu0
    %2968 = vmatprep.mubr.f32.mxu0 %v2768
    %2969 = vmatmul.mubr.f32.gmra.mxu0 %v2767
    %v2970 = vpop.f32.mrf.mxu0
    %v2971 = vadd.f32 %v2892, %v2970
    %v2972 = vpop.f32.mrf.mxu0
    %2973 = vmatprep.mubr.f32.mxu0 %v2772
    %2974 = vmatmul.mubr.f32.gmra.mxu0 %v2771
    %v2975 = vpop.f32.mrf.mxu0
    %v2976 = vadd.f32 %v2892, %v2975
    %v2977 = vpop.f32.mrf.mxu0
    %2978 = vmatprep.mubr.f32.mxu0 %v2776
    %2979 = vmatmul.mubr.f32.gmra.mxu0 %v2775
    %v2980 = vpop.f32.mrf.mxu0
    %v2981 = vadd.f32 %v2892, %v2980
    %v2982 = vpop.f32.mrf.mxu0
    %2983 = vmatprep.mubr.f32.mxu0 %v2780
    %2984 = vmatmul.mubr.f32.gmra.mxu0 %v2779
    %v2985 = vpop.f32.mrf.mxu0
    %v2986 = vadd.f32 %v2892, %v2985
    %v2987 = vpop.f32.mrf.mxu0
    %2988 = vmatprep.mubr.f32.mxu0 %v2784
    %2989 = vmatmul.mubr.f32.gmra.mxu0 %v2783
    %v2990 = vpop.f32.mrf.mxu0
    %v2991 = vadd.f32 %v2892, %v2990
    %v2992 = vpop.f32.mrf.mxu0
    %2993 = vmatprep.mubr.f32.mxu0 %v2788
    %2994 = vmatmul.mubr.f32.gmra.mxu0 %v2787
    %v2995 = vpop.f32.mrf.mxu0
    %v2996 = vadd.f32 %v2892, %v2995
    %v2997 = vpop.f32.mrf.mxu0
    %2998 = vmatprep.mubr.f32.mxu0 %v2792
    %2999 = vmatmul.mubr.f32.gmra.mxu0 %v2791
    %v3000 = vpop.f32.mrf.mxu0
    %v3001 = vadd.f32 %v2892, %v3000
    %v3002 = vpop.f32.mrf.mxu0
    %3003 = vmatprep.mubr.f32.mxu0 %v2796
    %3004 = vmatmul.mubr.f32.gmra.mxu0 %v2795
    %v3005 = vpop.f32.mrf.mxu0
    %v3006 = vadd.f32 %v2892, %v3005
    %v3007 = vpop.f32.mrf.mxu0
    %3008 = vmatprep.mubr.f32.mxu0 %v2800
    %3009 = vmatmul.mubr.f32.gmra.mxu0 %v2799
    %v3010 = vpop.f32.mrf.mxu0
    %v3011 = vadd.f32 %v2892, %v3010
    %v3012 = vpop.f32.mrf.mxu0
    %3013 = vmatprep.mubr.f32.mxu0 %v2804
    %3014 = vmatmul.mubr.f32.gmra.mxu0 %v2803
    %v3015 = vpop.f32.mrf.mxu0
    %v3016 = vadd.f32 %v2892, %v3015
    %v3017 = vpop.f32.mrf.mxu0
    %3018 = vmatprep.mubr.f32.mxu0 %v2808
    %3019 = vmatmul.mubr.f32.gmra.mxu0 %v2807
    %v3020 = vpop.f32.mrf.mxu0
    %v3021 = vadd.f32 %v2892, %v3020
    %v3022 = vpop.f32.mrf.mxu0
    %3023 = vmatprep.mubr.f32.mxu0 %v2812
    %3024 = vmatmul.mubr.f32.gmra.mxu0 %v2811
    %v3025 = vpop.f32.mrf.mxu0
    %v3026 = vadd.f32 %v2892, %v3025
    %v3027 = vpop.f32.mrf.mxu0
    %3028 = vmatprep.mubr.f32.mxu0 %v2816
    %3029 = vmatmul.mubr.f32.gmra.mxu0 %v2815
    %v3030 = vpop.f32.mrf.mxu0
    %v3031 = vadd.f32 %v2892, %v3030
    %v3032 = vpop.f32.mrf.mxu0
    %3033 = vmatprep.mubr.f32.mxu0 %v2820
    %3034 = vmatmul.mubr.f32.gmra.mxu0 %v2819
    %v3035 = vpop.f32.mrf.mxu0
    %v3036 = vadd.f32 %v2892, %v3035
    %v3037 = vpop.f32.mrf.mxu0
    %3038 = vdwg.mxu0
    %3039 = vmatprep.subr.mxu0 0.0
    %3040 = vmatpush1.msra.mxu0 %v2870
    %3041 = vmatprep.subr.mxu0 0.0
    %3042 = vmatpush1.msra.mxu0 %v2869
    %3043 = vmatprep.subr.mxu0 0.0
    %3044 = vmatpush1.msra.mxu0 %v2868
    %3045 = vmatprep.subr.mxu0 0.0
    %3046 = vmatpush1.msra.mxu0 %v2867
    %3047 = vmatprep.subr.mxu0 0.0
    %3048 = vmatpush1.msra.mxu0 %v2866
    %3049 = vmatprep.subr.mxu0 0.0
    %3050 = vmatpush1.msra.mxu0 %v2865
    %3051 = vmatprep.subr.mxu0 0.0
    %3052 = vmatpush1.msra.mxu0 %v2864
    %3053 = vmatprep.subr.mxu0 0.0
    %3054 = vmatpush1.msra.mxu0 %v2863
    %3055 = vmatprep.subr.mxu0 0.0
    %3056 = vmatpush1.msra.mxu0 %v2862
    %3057 = vmatprep.subr.mxu0 0.0
    %3058 = vmatpush1.msra.mxu0 %v2861
    %3059 = vmatprep.subr.mxu0 0.0
    %3060 = vmatpush1.msra.mxu0 %v2860
    %3061 = vmatprep.subr.mxu0 0.0
    %3062 = vmatpush1.msra.mxu0 %v2859
    %3063 = vmatprep.subr.mxu0 0.0
    %3064 = vmatpush1.msra.mxu0 %v2858
    %3065 = vmatprep.subr.mxu0 0.0
    %3066 = vmatpush1.msra.mxu0 %v2857
    %3067 = vmatprep.subr.mxu0 0.0
    %3068 = vmatpush1.msra.mxu0 %v2856
    %3069 = vmatprep.subr.mxu0 0.0
    %3070 = vmatpush1.msra.mxu0 %v2855
    %3071 = vmatprep.subr.mxu0 0.0
    %3072 = vmatpush2.msra.mxu0 %v2886
    %3073 = vmatprep.subr.mxu0 0.0
    %3074 = vmatpush2.msra.mxu0 %v2885
    %3075 = vmatprep.subr.mxu0 0.0
    %3076 = vmatpush2.msra.mxu0 %v2884
    %3077 = vmatprep.subr.mxu0 0.0
    %3078 = vmatpush2.msra.mxu0 %v2883
    %3079 = vmatprep.subr.mxu0 0.0
    %3080 = vmatpush2.msra.mxu0 %v2882
    %3081 = vmatprep.subr.mxu0 0.0
    %3082 = vmatpush2.msra.mxu0 %v2881
    %3083 = vmatprep.subr.mxu0 0.0
    %3084 = vmatpush2.msra.mxu0 %v2880
    %3085 = vmatprep.subr.mxu0 0.0
    %3086 = vmatpush2.msra.mxu0 %v2879
    %3087 = vmatprep.subr.mxu0 0.0
    %3088 = vmatpush2.msra.mxu0 %v2878
    %3089 = vmatprep.subr.mxu0 0.0
    %3090 = vmatpush2.msra.mxu0 %v2877
    %3091 = vmatprep.subr.mxu0 0.0
    %3092 = vmatpush2.msra.mxu0 %v2876
    %3093 = vmatprep.subr.mxu0 0.0
    %3094 = vmatpush2.msra.mxu0 %v2875
    %3095 = vmatprep.subr.mxu0 0.0
    %3096 = vmatpush2.msra.mxu0 %v2874
    %3097 = vmatprep.subr.mxu0 0.0
    %3098 = vmatpush2.msra.mxu0 %v2873
    %3099 = vmatprep.subr.mxu0 0.0
    %3100 = vmatpush2.msra.mxu0 %v2872
    %3101 = vmatprep.subr.mxu0 0.0
    %3102 = vmatpush2.msra.mxu0 %v2871
    %3103 = vmatprep.mubr.f32.mxu0 %v2762
    %3104 = vmatmul.mubr.f32.gmra.mxu0 %v2761
    %v3105 = vpop.f32.mrf.mxu0
    %v3106 = vadd.f32 %v2961, %v3105
    %v3107 = vpop.f32.mrf.mxu0
    %3108 = vmatprep.mubr.f32.mxu0 %v2766
    %3109 = vmatmul.mubr.f32.gmra.mxu0 %v2765
    %v3110 = vpop.f32.mrf.mxu0
    %v3111 = vadd.f32 %v2966, %v3110
    %v3112 = vpop.f32.mrf.mxu0
    %3113 = vmatprep.mubr.f32.mxu0 %v2770
    %3114 = vmatmul.mubr.f32.gmra.mxu0 %v2769
    %v3115 = vpop.f32.mrf.mxu0
    %v3116 = vadd.f32 %v2971, %v3115
    %v3117 = vpop.f32.mrf.mxu0
    %3118 = vmatprep.mubr.f32.mxu0 %v2774
    %3119 = vmatmul.mubr.f32.gmra.mxu0 %v2773
    %v3120 = vpop.f32.mrf.mxu0
    %v3121 = vadd.f32 %v2976, %v3120
    %v3122 = vpop.f32.mrf.mxu0
    %3123 = vmatprep.mubr.f32.mxu0 %v2778
    %3124 = vmatmul.mubr.f32.gmra.mxu0 %v2777
    %v3125 = vpop.f32.mrf.mxu0
    %v3126 = vadd.f32 %v2981, %v3125
    %v3127 = vpop.f32.mrf.mxu0
    %3128 = vmatprep.mubr.f32.mxu0 %v2782
    %3129 = vmatmul.mubr.f32.gmra.mxu0 %v2781
    %v3130 = vpop.f32.mrf.mxu0
    %v3131 = vadd.f32 %v2986, %v3130
    %v3132 = vpop.f32.mrf.mxu0
    %3133 = vmatprep.mubr.f32.mxu0 %v2786
    %3134 = vmatmul.mubr.f32.gmra.mxu0 %v2785
    %v3135 = vpop.f32.mrf.mxu0
    %v3136 = vadd.f32 %v2991, %v3135
    %v3137 = vpop.f32.mrf.mxu0
    %3138 = vmatprep.mubr.f32.mxu0 %v2790
    %3139 = vmatmul.mubr.f32.gmra.mxu0 %v2789
    %v3140 = vpop.f32.mrf.mxu0
    %v3141 = vadd.f32 %v2996, %v3140
    %v3142 = vpop.f32.mrf.mxu0
    %3143 = vmatprep.mubr.f32.mxu0 %v2794
    %3144 = vmatmul.mubr.f32.gmra.mxu0 %v2793
    %v3145 = vpop.f32.mrf.mxu0
    %v3146 = vadd.f32 %v3001, %v3145
    %v3147 = vpop.f32.mrf.mxu0
    %3148 = vmatprep.mubr.f32.mxu0 %v2798
    %3149 = vmatmul.mubr.f32.gmra.mxu0 %v2797
    %v3150 = vpop.f32.mrf.mxu0
    %v3151 = vadd.f32 %v3006, %v3150
    %v3152 = vpop.f32.mrf.mxu0
    %3153 = vmatprep.mubr.f32.mxu0 %v2802
    %3154 = vmatmul.mubr.f32.gmra.mxu0 %v2801
    %v3155 = vpop.f32.mrf.mxu0
    %v3156 = vadd.f32 %v3011, %v3155
    %v3157 = vpop.f32.mrf.mxu0
    %3158 = vmatprep.mubr.f32.mxu0 %v2806
    %3159 = vmatmul.mubr.f32.gmra.mxu0 %v2805
    %v3160 = vpop.f32.mrf.mxu0
    %v3161 = vadd.f32 %v3016, %v3160
    %v3162 = vpop.f32.mrf.mxu0
    %3163 = vmatprep.mubr.f32.mxu0 %v2810
    %3164 = vmatmul.mubr.f32.gmra.mxu0 %v2809
    %v3165 = vpop.f32.mrf.mxu0
    %v3166 = vadd.f32 %v3021, %v3165
    %v3167 = vpop.f32.mrf.mxu0
    %3168 = vmatprep.mubr.f32.mxu0 %v2814
    %3169 = vmatmul.mubr.f32.gmra.mxu0 %v2813
    %v3170 = vpop.f32.mrf.mxu0
    %v3171 = vadd.f32 %v3026, %v3170
    %v3172 = vpop.f32.mrf.mxu0
    %3173 = vmatprep.mubr.f32.mxu0 %v2818
    %3174 = vmatmul.mubr.f32.gmra.mxu0 %v2817
    %v3175 = vpop.f32.mrf.mxu0
    %v3176 = vadd.f32 %v3031, %v3175
    %v3177 = vpop.f32.mrf.mxu0
    %3178 = vmatprep.mubr.f32.mxu0 %v2822
    %3179 = vmatmul.mubr.f32.gmra.mxu0 %v2821
    %v3180 = vpop.f32.mrf.mxu0
    %v3181 = vadd.f32 %v3036, %v3180
    %v3182 = vpop.f32.mrf.mxu0
    %3183 = vdwg.mxu0
    %v3184 = vxor.u32 %v3106, 2147483648
    %v3185 = vxor.u32 %v3111, 2147483648
    %v3186 = vxor.u32 %v3116, 2147483648
    %v3187 = vxor.u32 %v3121, 2147483648
    %v3188 = vxor.u32 %v3126, 2147483648
    %v3189 = vxor.u32 %v3131, 2147483648
    %v3190 = vxor.u32 %v3136, 2147483648
    %v3191 = vxor.u32 %v3141, 2147483648
    %v3192 = vxor.u32 %v3146, 2147483648
    %v3193 = vxor.u32 %v3151, 2147483648
    %v3194 = vxor.u32 %v3156, 2147483648
    %v3195 = vxor.u32 %v3161, 2147483648
    %v3196 = vxor.u32 %v3166, 2147483648
    %v3197 = vxor.u32 %v3171, 2147483648
    %v3198 = vxor.u32 %v3176, 2147483648
    %v3199 = vxor.u32 %v3181, 2147483648
    %v3200 = vmul.f32 %v3184, 1.442695
    %v3201 = vpow.pop %v3200
    %v3202 = vmul.f32 %v3185, 1.442695
    %v3203 = vpow.pop %v3202
    %v3204 = vmul.f32 %v3186, 1.442695
    %v3205 = vpow.pop %v3204
    %v3206 = vmul.f32 %v3187, 1.442695
    %v3207 = vpow.pop %v3206
    %v3208 = vmul.f32 %v3188, 1.442695
    %v3209 = vpow.pop %v3208
    %v3210 = vmul.f32 %v3189, 1.442695
    %v3211 = vpow.pop %v3210
    %v3212 = vmul.f32 %v3190, 1.442695
    %v3213 = vpow.pop %v3212
    %v3214 = vmul.f32 %v3191, 1.442695
    %v3215 = vpow.pop %v3214
    %v3216 = vmul.f32 %v3192, 1.442695
    %v3217 = vpow.pop %v3216
    %v3218 = vmul.f32 %v3193, 1.442695
    %v3219 = vpow.pop %v3218
    %v3220 = vmul.f32 %v3194, 1.442695
    %v3221 = vpow.pop %v3220
    %v3222 = vmul.f32 %v3195, 1.442695
    %v3223 = vpow.pop %v3222
    %v3224 = vmul.f32 %v3196, 1.442695
    %v3225 = vpow.pop %v3224
    %v3226 = vmul.f32 %v3197, 1.442695
    %v3227 = vpow.pop %v3226
    %v3228 = vmul.f32 %v3198, 1.442695
    %v3229 = vpow.pop %v3228
    %v3230 = vmul.f32 %v3199, 1.442695
    %v3231 = vpow.pop %v3230
    %v3232 = vadd.f32 %v3201, 1.0
    %v3233 = vadd.f32 %v3203, 1.0
    %v3234 = vadd.f32 %v3205, 1.0
    %v3235 = vadd.f32 %v3207, 1.0
    %v3236 = vadd.f32 %v3209, 1.0
    %v3237 = vadd.f32 %v3211, 1.0
    %v3238 = vadd.f32 %v3213, 1.0
    %v3239 = vadd.f32 %v3215, 1.0
    %v3240 = vadd.f32 %v3217, 1.0
    %v3241 = vadd.f32 %v3219, 1.0
    %v3242 = vadd.f32 %v3221, 1.0
    %v3243 = vadd.f32 %v3223, 1.0
    %v3244 = vadd.f32 %v3225, 1.0
    %v3245 = vadd.f32 %v3227, 1.0
    %v3246 = vadd.f32 %v3229, 1.0
    %v3247 = vadd.f32 %v3231, 1.0
    %v3248 = vrcp.pop %v3232
    %v3249 = vmul.f32 1.0, %v3248
    %v3250 = vrcp.pop %v3233
    %v3251 = vmul.f32 1.0, %v3250
    %v3252 = vrcp.pop %v3234
    %v3253 = vmul.f32 1.0, %v3252
    %v3254 = vrcp.pop %v3235
    %v3255 = vmul.f32 1.0, %v3254
    %v3256 = vrcp.pop %v3236
    %v3257 = vmul.f32 1.0, %v3256
    %v3258 = vrcp.pop %v3237
    %v3259 = vmul.f32 1.0, %v3258
    %v3260 = vrcp.pop %v3238
    %v3261 = vmul.f32 1.0, %v3260
    %v3262 = vrcp.pop %v3239
    %v3263 = vmul.f32 1.0, %v3262
    %v3264 = vrcp.pop %v3240
    %v3265 = vmul.f32 1.0, %v3264
    %v3266 = vrcp.pop %v3241
    %v3267 = vmul.f32 1.0, %v3266
    %v3268 = vrcp.pop %v3242
    %v3269 = vmul.f32 1.0, %v3268
    %v3270 = vrcp.pop %v3243
    %v3271 = vmul.f32 1.0, %v3270
    %v3272 = vrcp.pop %v3244
    %v3273 = vmul.f32 1.0, %v3272
    %v3274 = vrcp.pop %v3245
    %v3275 = vmul.f32 1.0, %v3274
    %v3276 = vrcp.pop %v3246
    %v3277 = vmul.f32 1.0, %v3276
    %v3278 = vrcp.pop %v3247
    %v3279 = vmul.f32 1.0, %v3278
    %v3280 = vld [vmem:[%s2] sm:$0xff]
    %v3281 = vld [vmem:[%s2 + $0x8] sm:$0xff]
    %v3282 = vld [vmem:[%s1] sm:$0xff]
    %3283 = vmatprep.subr.mxu0 0.0
    %3284 = vmatpush1.msra.mxu0 0.0
    %3285 = vmatprep.subr.mxu0 0.0
    %3286 = vmatpush1.msra.mxu0 0.0
    %3287 = vmatprep.subr.mxu0 0.0
    %3288 = vmatpush1.msra.mxu0 0.0
    %3289 = vmatprep.subr.mxu0 0.0
    %3290 = vmatpush1.msra.mxu0 0.0
    %3291 = vmatprep.subr.mxu0 0.0
    %3292 = vmatpush1.msra.mxu0 0.0
    %3293 = vmatprep.subr.mxu0 0.0
    %3294 = vmatpush1.msra.mxu0 0.0
    %3295 = vmatprep.subr.mxu0 0.0
    %3296 = vmatpush1.msra.mxu0 0.0
    %3297 = vmatprep.subr.mxu0 0.0
    %3298 = vmatpush1.msra.mxu0 0.0
    %3299 = vmatprep.subr.mxu0 0.0
    %3300 = vmatpush1.msra.mxu0 0.0
    %3301 = vmatprep.subr.mxu0 0.0
    %3302 = vmatpush1.msra.mxu0 0.0
    %3303 = vmatprep.subr.mxu0 0.0
    %3304 = vmatpush1.msra.mxu0 0.0
    %3305 = vmatprep.subr.mxu0 0.0
    %3306 = vmatpush1.msra.mxu0 0.0
    %3307 = vmatprep.subr.mxu0 0.0
    %3308 = vmatpush1.msra.mxu0 0.0
    %3309 = vmatprep.subr.mxu0 0.0
    %3310 = vmatpush1.msra.mxu0 0.0
    %3311 = vmatprep.subr.mxu0 0.0
    %3312 = vmatpush1.msra.mxu0 0.0
    %3313 = vmatprep.subr.mxu0 0.0
    %3314 = vmatpush1.msra.mxu0 %v3282
    %3315 = vmatprep.subr.mxu0 0.0
    %3316 = vmatpush2.msra.mxu0 0.0
    %3317 = vmatprep.subr.mxu0 0.0
    %3318 = vmatpush2.msra.mxu0 0.0
    %3319 = vmatprep.subr.mxu0 0.0
    %3320 = vmatpush2.msra.mxu0 0.0
    %3321 = vmatprep.subr.mxu0 0.0
    %3322 = vmatpush2.msra.mxu0 0.0
    %3323 = vmatprep.subr.mxu0 0.0
    %3324 = vmatpush2.msra.mxu0 0.0
    %3325 = vmatprep.subr.mxu0 0.0
    %3326 = vmatpush2.msra.mxu0 0.0
    %3327 = vmatprep.subr.mxu0 0.0
    %3328 = vmatpush2.msra.mxu0 0.0
    %3329 = vmatprep.subr.mxu0 0.0
    %3330 = vmatpush2.msra.mxu0 0.0
    %3331 = vmatprep.subr.mxu0 0.0
    %3332 = vmatpush2.msra.mxu0 0.0
    %3333 = vmatprep.subr.mxu0 0.0
    %3334 = vmatpush2.msra.mxu0 0.0
    %3335 = vmatprep.subr.mxu0 0.0
    %3336 = vmatpush2.msra.mxu0 0.0
    %3337 = vmatprep.subr.mxu0 0.0
    %3338 = vmatpush2.msra.mxu0 0.0
    %3339 = vmatprep.subr.mxu0 0.0
    %3340 = vmatpush2.msra.mxu0 0.0
    %3341 = vmatprep.subr.mxu0 0.0
    %3342 = vmatpush2.msra.mxu0 0.0
    %3343 = vmatprep.subr.mxu0 0.0
    %3344 = vmatpush2.msra.mxu0 0.0
    %3345 = vmatprep.subr.mxu0 0.0
    %3346 = vmatpush2.msra.mxu0 0.0
    %3347 = vmatprep.mubr.f32.mxu0 0.0
    %3348 = vmatmul.mubr.f32.gmra.mxu0 %v1938
    %v3349 = vpop.f32.mrf.mxu0
    %v3350 = vadd.f32 0.0, %v3349
    %v3351 = vpop.f32.mrf.mxu0
    %3352 = vmatprep.mubr.f32.mxu0 0.0
    %3353 = vmatmul.mubr.f32.gmra.mxu0 %v1941
    %v3354 = vpop.f32.mrf.mxu0
    %v3355 = vadd.f32 0.0, %v3354
    %v3356 = vpop.f32.mrf.mxu0
    %3357 = vmatprep.mubr.f32.mxu0 0.0
    %3358 = vmatmul.mubr.f32.gmra.mxu0 %v1944
    %v3359 = vpop.f32.mrf.mxu0
    %v3360 = vadd.f32 0.0, %v3359
    %v3361 = vpop.f32.mrf.mxu0
    %3362 = vmatprep.mubr.f32.mxu0 0.0
    %3363 = vmatmul.mubr.f32.gmra.mxu0 %v1947
    %v3364 = vpop.f32.mrf.mxu0
    %v3365 = vadd.f32 0.0, %v3364
    %v3366 = vpop.f32.mrf.mxu0
    %3367 = vmatprep.mubr.f32.mxu0 0.0
    %3368 = vmatmul.mubr.f32.gmra.mxu0 %v1950
    %v3369 = vpop.f32.mrf.mxu0
    %v3370 = vadd.f32 0.0, %v3369
    %v3371 = vpop.f32.mrf.mxu0
    %3372 = vmatprep.mubr.f32.mxu0 0.0
    %3373 = vmatmul.mubr.f32.gmra.mxu0 %v1953
    %v3374 = vpop.f32.mrf.mxu0
    %v3375 = vadd.f32 0.0, %v3374
    %v3376 = vpop.f32.mrf.mxu0
    %3377 = vmatprep.mubr.f32.mxu0 0.0
    %3378 = vmatmul.mubr.f32.gmra.mxu0 %v1956
    %v3379 = vpop.f32.mrf.mxu0
    %v3380 = vadd.f32 0.0, %v3379
    %v3381 = vpop.f32.mrf.mxu0
    %3382 = vmatprep.mubr.f32.mxu0 0.0
    %3383 = vmatmul.mubr.f32.gmra.mxu0 %v1959
    %v3384 = vpop.f32.mrf.mxu0
    %v3385 = vadd.f32 0.0, %v3384
    %v3386 = vpop.f32.mrf.mxu0
    %3387 = vmatprep.mubr.f32.mxu0 0.0
    %3388 = vmatmul.mubr.f32.gmra.mxu0 %v1962
    %v3389 = vpop.f32.mrf.mxu0
    %v3390 = vadd.f32 0.0, %v3389
    %v3391 = vpop.f32.mrf.mxu0
    %3392 = vmatprep.mubr.f32.mxu0 0.0
    %3393 = vmatmul.mubr.f32.gmra.mxu0 %v1965
    %v3394 = vpop.f32.mrf.mxu0
    %v3395 = vadd.f32 0.0, %v3394
    %v3396 = vpop.f32.mrf.mxu0
    %3397 = vmatprep.mubr.f32.mxu0 0.0
    %3398 = vmatmul.mubr.f32.gmra.mxu0 %v1968
    %v3399 = vpop.f32.mrf.mxu0
    %v3400 = vadd.f32 0.0, %v3399
    %v3401 = vpop.f32.mrf.mxu0
    %3402 = vmatprep.mubr.f32.mxu0 0.0
    %3403 = vmatmul.mubr.f32.gmra.mxu0 %v1971
    %v3404 = vpop.f32.mrf.mxu0
    %v3405 = vadd.f32 0.0, %v3404
    %v3406 = vpop.f32.mrf.mxu0
    %3407 = vmatprep.mubr.f32.mxu0 0.0
    %3408 = vmatmul.mubr.f32.gmra.mxu0 %v1974
    %v3409 = vpop.f32.mrf.mxu0
    %v3410 = vadd.f32 0.0, %v3409
    %v3411 = vpop.f32.mrf.mxu0
    %3412 = vmatprep.mubr.f32.mxu0 0.0
    %3413 = vmatmul.mubr.f32.gmra.mxu0 %v1977
    %v3414 = vpop.f32.mrf.mxu0
    %v3415 = vadd.f32 0.0, %v3414
    %v3416 = vpop.f32.mrf.mxu0
    %3417 = vmatprep.mubr.f32.mxu0 0.0
    %3418 = vmatmul.mubr.f32.gmra.mxu0 %v1980
    %v3419 = vpop.f32.mrf.mxu0
    %v3420 = vadd.f32 0.0, %v3419
    %v3421 = vpop.f32.mrf.mxu0
    %3422 = vmatprep.mubr.f32.mxu0 0.0
    %3423 = vmatmul.mubr.f32.gmra.mxu0 %v1983
    %v3424 = vpop.f32.mrf.mxu0
    %v3425 = vadd.f32 0.0, %v3424
    %v3426 = vpop.f32.mrf.mxu0
    %3427 = vdwg.mxu0
    %vm3428 = vcmask 130048
    %v3430 = vsel %vm3428, %v3249, 0
    %v3433 = vsel %vm3428, %v3251, 0
    %v3436 = vsel %vm3428, %v3253, 0
    %v3439 = vsel %vm3428, %v3255, 0
    %v3442 = vsel %vm3428, %v3257, 0
    %v3445 = vsel %vm3428, %v3259, 0
    %v3448 = vsel %vm3428, %v3261, 0
    %v3451 = vsel %vm3428, %v3263, 0
    %v3454 = vsel %vm3428, %v3265, 0
    %v3457 = vsel %vm3428, %v3267, 0
    %v3460 = vsel %vm3428, %v3269, 0
    %v3463 = vsel %vm3428, %v3271, 0
    %v3466 = vsel %vm3428, %v3273, 0
    %v3469 = vsel %vm3428, %v3275, 0
    %v3472 = vsel %vm3428, %v3277, 0
    %v3475 = vsel %vm3428, %v3279, 0
    %3477 = vmatprep.subr.mxu0 0.0
    %3478 = vmatpush1.msra.mxu0 0.0
    %3479 = vmatprep.subr.mxu0 0.0
    %3480 = vmatpush1.msra.mxu0 0.0
    %3481 = vmatprep.subr.mxu0 0.0
    %3482 = vmatpush1.msra.mxu0 0.0
    %3483 = vmatprep.subr.mxu0 0.0
    %3484 = vmatpush1.msra.mxu0 0.0
    %3485 = vmatprep.subr.mxu0 0.0
    %3486 = vmatpush1.msra.mxu0 0.0
    %3487 = vmatprep.subr.mxu0 0.0
    %3488 = vmatpush1.msra.mxu0 0.0
    %3489 = vmatprep.subr.mxu0 0.0
    %3490 = vmatpush1.msra.mxu0 0.0
    %3491 = vmatprep.subr.mxu0 0.0
    %3492 = vmatpush1.msra.mxu0 0.0
    %3493 = vmatprep.subr.mxu0 0.0
    %3494 = vmatpush1.msra.mxu0 0.0
    %3495 = vmatprep.subr.mxu0 0.0
    %3496 = vmatpush1.msra.mxu0 0.0
    %3497 = vmatprep.subr.mxu0 0.0
    %3498 = vmatpush1.msra.mxu0 0.0
    %3499 = vmatprep.subr.mxu0 0.0
    %3500 = vmatpush1.msra.mxu0 0.0
    %3501 = vmatprep.subr.mxu0 0.0
    %3502 = vmatpush1.msra.mxu0 0.0
    %3503 = vmatprep.subr.mxu0 0.0
    %3504 = vmatpush1.msra.mxu0 0.0
    %3505 = vmatprep.subr.mxu0 0.0
    %3506 = vmatpush1.msra.mxu0 %v3281
    %3507 = vmatprep.subr.mxu0 0.0
    %3508 = vmatpush1.msra.mxu0 %v3280
    %3509 = vmatprep.subr.mxu0 0.0
    %3510 = vmatpush2.msra.mxu0 0.0
    %3511 = vmatprep.subr.mxu0 0.0
    %3512 = vmatpush2.msra.mxu0 0.0
    %3513 = vmatprep.subr.mxu0 0.0
    %3514 = vmatpush2.msra.mxu0 0.0
    %3515 = vmatprep.subr.mxu0 0.0
    %3516 = vmatpush2.msra.mxu0 0.0
    %3517 = vmatprep.subr.mxu0 0.0
    %3518 = vmatpush2.msra.mxu0 0.0
    %3519 = vmatprep.subr.mxu0 0.0
    %3520 = vmatpush2.msra.mxu0 0.0
    %3521 = vmatprep.subr.mxu0 0.0
    %3522 = vmatpush2.msra.mxu0 0.0
    %3523 = vmatprep.subr.mxu0 0.0
    %3524 = vmatpush2.msra.mxu0 0.0
    %3525 = vmatprep.subr.mxu0 0.0
    %3526 = vmatpush2.msra.mxu0 0.0
    %3527 = vmatprep.subr.mxu0 0.0
    %3528 = vmatpush2.msra.mxu0 0.0
    %3529 = vmatprep.subr.mxu0 0.0
    %3530 = vmatpush2.msra.mxu0 0.0
    %3531 = vmatprep.subr.mxu0 0.0
    %3532 = vmatpush2.msra.mxu0 0.0
    %3533 = vmatprep.subr.mxu0 0.0
    %3534 = vmatpush2.msra.mxu0 0.0
    %3535 = vmatprep.subr.mxu0 0.0
    %3536 = vmatpush2.msra.mxu0 0.0
    %3537 = vmatprep.subr.mxu0 0.0
    %3538 = vmatpush2.msra.mxu0 0.0
    %3539 = vmatprep.subr.mxu0 0.0
    %3540 = vmatpush2.msra.mxu0 0.0
    %3541 = vmatprep.mubr.f32.mxu0 0.0
    %3542 = vmatmul.mubr.f32.gmra.mxu0 %v3430
    %v3543 = vpop.f32.mrf.mxu0
    %v3544 = vadd.f32 %v3350, %v3543
    %v3545 = vpop.f32.mrf.mxu0
    %3546 = vmatprep.mubr.f32.mxu0 0.0
    %3547 = vmatmul.mubr.f32.gmra.mxu0 %v3433
    %v3548 = vpop.f32.mrf.mxu0
    %v3549 = vadd.f32 %v3355, %v3548
    %v3550 = vpop.f32.mrf.mxu0
    %3551 = vmatprep.mubr.f32.mxu0 0.0
    %3552 = vmatmul.mubr.f32.gmra.mxu0 %v3436
    %v3553 = vpop.f32.mrf.mxu0
    %v3554 = vadd.f32 %v3360, %v3553
    %v3555 = vpop.f32.mrf.mxu0
    %3556 = vmatprep.mubr.f32.mxu0 0.0
    %3557 = vmatmul.mubr.f32.gmra.mxu0 %v3439
    %v3558 = vpop.f32.mrf.mxu0
    %v3559 = vadd.f32 %v3365, %v3558
    %v3560 = vpop.f32.mrf.mxu0
    %3561 = vmatprep.mubr.f32.mxu0 0.0
    %3562 = vmatmul.mubr.f32.gmra.mxu0 %v3442
    %v3563 = vpop.f32.mrf.mxu0
    %v3564 = vadd.f32 %v3370, %v3563
    %v3565 = vpop.f32.mrf.mxu0
    %3566 = vmatprep.mubr.f32.mxu0 0.0
    %3567 = vmatmul.mubr.f32.gmra.mxu0 %v3445
    %v3568 = vpop.f32.mrf.mxu0
    %v3569 = vadd.f32 %v3375, %v3568
    %v3570 = vpop.f32.mrf.mxu0
    %3571 = vmatprep.mubr.f32.mxu0 0.0
    %3572 = vmatmul.mubr.f32.gmra.mxu0 %v3448
    %v3573 = vpop.f32.mrf.mxu0
    %v3574 = vadd.f32 %v3380, %v3573
    %v3575 = vpop.f32.mrf.mxu0
    %3576 = vmatprep.mubr.f32.mxu0 0.0
    %3577 = vmatmul.mubr.f32.gmra.mxu0 %v3451
    %v3578 = vpop.f32.mrf.mxu0
    %v3579 = vadd.f32 %v3385, %v3578
    %v3580 = vpop.f32.mrf.mxu0
    %3581 = vmatprep.mubr.f32.mxu0 0.0
    %3582 = vmatmul.mubr.f32.gmra.mxu0 %v3454
    %v3583 = vpop.f32.mrf.mxu0
    %v3584 = vadd.f32 %v3390, %v3583
    %v3585 = vpop.f32.mrf.mxu0
    %3586 = vmatprep.mubr.f32.mxu0 0.0
    %3587 = vmatmul.mubr.f32.gmra.mxu0 %v3457
    %v3588 = vpop.f32.mrf.mxu0
    %v3589 = vadd.f32 %v3395, %v3588
    %v3590 = vpop.f32.mrf.mxu0
    %3591 = vmatprep.mubr.f32.mxu0 0.0
    %3592 = vmatmul.mubr.f32.gmra.mxu0 %v3460
    %v3593 = vpop.f32.mrf.mxu0
    %v3594 = vadd.f32 %v3400, %v3593
    %v3595 = vpop.f32.mrf.mxu0
    %3596 = vmatprep.mubr.f32.mxu0 0.0
    %3597 = vmatmul.mubr.f32.gmra.mxu0 %v3463
    %v3598 = vpop.f32.mrf.mxu0
    %v3599 = vadd.f32 %v3405, %v3598
    %v3600 = vpop.f32.mrf.mxu0
    %3601 = vmatprep.mubr.f32.mxu0 0.0
    %3602 = vmatmul.mubr.f32.gmra.mxu0 %v3466
    %v3603 = vpop.f32.mrf.mxu0
    %v3604 = vadd.f32 %v3410, %v3603
    %v3605 = vpop.f32.mrf.mxu0
    %3606 = vmatprep.mubr.f32.mxu0 0.0
    %3607 = vmatmul.mubr.f32.gmra.mxu0 %v3469
    %v3608 = vpop.f32.mrf.mxu0
    %v3609 = vadd.f32 %v3415, %v3608
    %v3610 = vpop.f32.mrf.mxu0
    %3611 = vmatprep.mubr.f32.mxu0 0.0
    %3612 = vmatmul.mubr.f32.gmra.mxu0 %v3472
    %v3613 = vpop.f32.mrf.mxu0
    %v3614 = vadd.f32 %v3420, %v3613
    %v3615 = vpop.f32.mrf.mxu0
    %3616 = vmatprep.mubr.f32.mxu0 0.0
    %3617 = vmatmul.mubr.f32.gmra.mxu0 %v3475
    %v3618 = vpop.f32.mrf.mxu0
    %v3619 = vadd.f32 %v3425, %v3618
    %v3620 = vpop.f32.mrf.mxu0
    %3621 = vdwg.mxu0
    %v3622 = vld [vmem:[%s7 + $0x14] sm:$0x1]
    %v3624 = vlaneseq
    %v3625 = vshrl.u32 %v3624, 7
    %v3626 = vsub.s32 0, %v3625
    %v3627 = vrot.slane %v3622, %v3626
    %v3629 = vadd.f32 %v3544, %v3627
    %v3630 = vadd.f32 %v3549, %v3627
    %v3631 = vadd.f32 %v3554, %v3627
    %v3632 = vadd.f32 %v3559, %v3627
    %v3633 = vadd.f32 %v3564, %v3627
    %v3634 = vadd.f32 %v3569, %v3627
    %v3635 = vadd.f32 %v3574, %v3627
    %v3636 = vadd.f32 %v3579, %v3627
    %v3637 = vadd.f32 %v3584, %v3627
    %v3638 = vadd.f32 %v3589, %v3627
    %v3639 = vadd.f32 %v3594, %v3627
    %v3640 = vadd.f32 %v3599, %v3627
    %v3641 = vadd.f32 %v3604, %v3627
    %v3642 = vadd.f32 %v3609, %v3627
    %v3643 = vadd.f32 %v3614, %v3627
    %v3644 = vadd.f32 %v3619, %v3627
    %3645 = vst [vmem:[#allocation2] sm:$0xff] %v3629
    %3646 = vst [vmem:[#allocation2 + $0x8] sm:$0xff] %v3630
    %3647 = vst [vmem:[#allocation2 + $0x10] sm:$0xff] %v3631
    %3648 = vst [vmem:[#allocation2 + $0x18] sm:$0xff] %v3632
    %3649 = vst [vmem:[#allocation2 + $0x20] sm:$0xff] %v3633
    %3650 = vst [vmem:[#allocation2 + $0x28] sm:$0xff] %v3634
    %3651 = vst [vmem:[#allocation2 + $0x30] sm:$0xff] %v3635
    %3652 = vst [vmem:[#allocation2 + $0x38] sm:$0xff] %v3636
    %3653 = vst [vmem:[#allocation2 + $0x40] sm:$0xff] %v3637
    %3654 = vst [vmem:[#allocation2 + $0x48] sm:$0xff] %v3638
    %3655 = vst [vmem:[#allocation2 + $0x50] sm:$0xff] %v3639
    %3656 = vst [vmem:[#allocation2 + $0x58] sm:$0xff] %v3640
    %3657 = vst [vmem:[#allocation2 + $0x60] sm:$0xff] %v3641
    %3658 = vst [vmem:[#allocation2 + $0x68] sm:$0xff] %v3642
    %3659 = vst [vmem:[#allocation2 + $0x70] sm:$0xff] %v3643
    %3660 = vst [vmem:[#allocation2 + $0x78] sm:$0xff] %v3644
    // Predicated region
    $region34: #{tpu_custom_call.1} parent=1 // pred_check
      _
    $region35: #{tpu_custom_call.1} parent=1 // pred_check_branch
      %3662 = sbr.rel (0) target = $region37
    $region36: #{tpu_custom_call.1} parent=1 // pred_region
      %s3664 = ssub.s32 2048, 2048
      %3665 = vsyncadd [#allocation3], %s3664
      %s3666 = sshll.u32 [#allocation2], 4
      %s3667 = int_to_ptr.vmem [resolvable:$true] %s3666
      %3672 = dma.vmem_to_hbm [thread:$0]  %s3667, 2048, %s8, [#allocation3], 128, 128, 8
    $region37: #{tpu_custom_call.1} parent=1 // pred_fallthru
      _
    // Predicated region
    $region38: #{tpu_custom_call.1} parent=1 // pred_check
      _
    $region39: #{tpu_custom_call.1} parent=1 // pred_check_branch
      %3674 = sbr.rel (0) target = $region41
    $region40: #{tpu_custom_call.1} parent=1 // pred_region
      %3675 = dma.done [#allocation3], 2048
    $region41: #{tpu_custom_call.1} parent=1 // pred_fallthru
      _
    %3676 = vsyncpa [#allocation3], 1

</llo_original>
